<compile_context>
chip_gen: v5e
topology: v5e:2x2
jax: 0.10.0
libtpu: 0.0.40
codegen_flags: <defaults>
</compile_context>

<pallas_src>
import jax
import jax.numpy as jnp
import numpy as np
from jax.experimental import pallas as pl
from jax.experimental.pallas import tpu as pltpu

EPS = 1e-08


def _global_stats(y):
    """Global mean and (biased) variance over the whole (C, T) tile, one pass."""
    inv_n = 1.0 / float(y.shape[0] * y.shape[1])
    s = jnp.sum(y)
    ss = jnp.sum(y * y)
    mean = s * inv_n
    var = jnp.maximum(ss * inv_n - mean * mean, 0.0)
    return mean, var


def visual_conv1d_kernel(x_ref, w1g_ref, wds_ref, w2g_ref, hvec_ref, vvec_ref,
                         a_ref, o_ref):
    mm_dtype = w1g_ref.dtype

    # relu_0; gLN0's affine is folded into w1g / bias0 below, only the scalar
    # statistics are computed here.
    y0 = jnp.maximum(x_ref[0], 0.0)                      # (V, T)
    mean0, var0 = _global_stats(y0)
    std0 = jnp.sqrt(var0 + EPS)

    wg0 = hvec_ref[:, 0:1]                               # w1 @ gamma0   (H, 1)
    wb0 = hvec_ref[:, 1:2]                               # w1 @ beta0    (H, 1)
    g1 = hvec_ref[:, 2:3]                                # gamma1        (H, 1)
    b1 = hvec_ref[:, 3:4]                                # beta1         (H, 1)

    # conv1x1 folded with gLN0:
    #   w1 @ gLN0(y0) == (1/std0) * (w1g @ y0 + bias0),  bias0 = wb0*std0 - mean0*wg0
    # The global positive factor 1/std0 commutes with ReLU and is absorbed by
    # gLN1 (visible only through EPS placement, ~1e-8 relative -- negligible).
    bias0 = wb0 * std0 - mean0 * wg0                     # (H, 1)
    y = jnp.dot(w1g_ref[...], y0.astype(mm_dtype),
                preferred_element_type=jnp.float32) + bias0
    y = jnp.maximum(y, 0.0)                              # (H, T)

    # norm_1 (gLN over (H, T)); scale pre-folded as gamma*rsqrt(var+EPS) so the
    # apply is a single y*scale + shift pass (rsqrt goes to the EUP slot).
    mean1, var1 = _global_stats(y)
    inv_std1 = jax.lax.rsqrt(var1 + EPS)
    scale1 = g1 * inv_std1
    shift1 = b1 - mean1 * scale1
    y = y * scale1 + shift1

    # depthwise conv, kernel=3, padding=1, dilation=1, groups=H, no bias.
    # Time is the lane axis; t-1 / t+1 views via a zero edge column + static
    # lane shift (no masks needed, legal shifts only).
    H, T = y.shape
    zcol = jnp.zeros((H, 1), jnp.float32)
    prev = jnp.concatenate([zcol, y[:, :T - 1]], axis=1)   # y[:, t-1], 0 at t=0
    nxt = jnp.concatenate([y[:, 1:], zcol], axis=1)        # y[:, t+1], 0 at t=T-1
    wds = wds_ref[...]                                     # (H, 3)
    y = prev * wds[:, 0:1] + y * wds[:, 1:2] + nxt * wds[:, 2:3]

    # PReLU (single shared slope, scalar read from SMEM)
    a = a_ref[0]
    y = jnp.where(y >= 0.0, y, a * y)

    # gLN2 statistics; its affine is folded into w2g / bias2.
    mean2, var2 = _global_stats(y)
    inv_std2 = jax.lax.rsqrt(var2 + EPS)
    wg2 = vvec_ref[:, 0:1]                               # w2 @ gamma2   (V, 1)
    wb2 = vvec_ref[:, 1:2]                               # w2 @ beta2    (V, 1)
    bias2 = wb2 - (mean2 * inv_std2) * wg2               # (V, 1)

    # pw_conv folded with gLN2:  w2 @ gLN2(p) == inv_std2 * (w2g @ p) + bias2
    out = jnp.dot(w2g_ref[...], y.astype(mm_dtype),
                  preferred_element_type=jnp.float32)

    # residual from the raw input, re-read from VMEM so x does not stay live
    # across the whole body (lower vreg pressure / fewer spills).
    o_ref[0] = out * inv_std2 + bias2 + x_ref[0]


def visual_conv1d(x_bvt, params, *, matmul_dtype=jnp.float32):
    """x_bvt: (B, V, T) float32, native PyTorch NCL layout. Returns (B, V, T) f32.

    matmul_dtype: dtype of the MXU operands of the two 1x1 convs.  f32 keeps
    exact reference semantics; bf16 gives ~3x MXU throughput on v6e/v7x.
    """
    (w1, w_ds, w2, g0, b0, g1, b1, g2, b2, a) = params
    B, V, T = x_bvt.shape
    H = w1.shape[0]

    # One-time parameter folds (in production do these at weight-load time):
    # gLN0/gLN2 affines move into the adjacent 1x1-conv weights plus small
    # per-channel vectors; the six (C,1) gamma/beta arrays collapse into two
    # packed blocks so they don't each pad to a (C,128) lane tile in VMEM.
    w1g = (w1 * g0.T).astype(matmul_dtype)                       # (H, V)
    w2g = (w2 * g2.T).astype(matmul_dtype)                       # (V, H)
    hvec = jnp.concatenate([w1 @ g0, w1 @ b0, g1, b1], axis=1)   # (H, 4) f32
    vvec = jnp.concatenate([w2 @ g2, w2 @ b2], axis=1)           # (V, 2) f32

    # VMEM budget: double-buffered x/out blocks + weights + live (H,T)/(V,T)
    # intermediates.  The scoped default (16 MiB v5e / 32 MiB v6e,v7x) is far
    # below physical VMEM, so size it explicitly with 2x headroom.
    f32 = 4
    w_item = np.dtype(matmul_dtype).itemsize
    io_bytes = 2 * 2 * V * T * f32
    weight_bytes = 2 * (w_item * (H * V + V * H) + f32 * (3 * H + 4 * H + 2 * V))
    live_bytes = (4 * H * T + 2 * V * T) * f32
    vmem_limit = int(min(max(2 * (io_bytes + weight_bytes + live_bytes),
                             32 * 1024 * 1024),
                         128 * 1024 * 1024))
    # TODO(synk): for production T that exceeds v7x's 64 MiB physical VMEM,
    # tile T inside the step (two-pass gLN stats + 1-column halo for the
    # depthwise conv); optionally single-buffer the constant weight blocks
    # with pipeline_mode=pl.Buffered(1) to reclaim more headroom.

    const = lambda shape: pl.BlockSpec(shape, lambda b: (0,) * len(shape))

    return pl.pallas_call(
        visual_conv1d_kernel,
        out_shape=jax.ShapeDtypeStruct((B, V, T), jnp.float32),
        grid_spec=pltpu.PrefetchScalarGridSpec(
            num_scalar_prefetch=0,
            grid=(B,),            # B >= 2 per chip keeps both v7x TCs busy
            in_specs=[
                pl.BlockSpec((1, V, T), lambda b: (b, 0, 0)),       # x (NCL)
                const((H, V)),                                      # folded conv1x1 w
                const((H, 3)),                                      # depthwise taps
                const((V, H)),                                      # folded pw_conv w
                const((H, 4)),                                      # [w1@g0|w1@b0|g1|b1]
                const((V, 2)),                                      # [w2@g2|w2@b2]
                pl.BlockSpec(memory_space=pltpu.MemorySpace.SMEM),  # PReLU slope
            ],
            out_specs=pl.BlockSpec((1, V, T), lambda b: (b, 0, 0)),
        ),
        compiler_params=pltpu.CompilerParams(
            dimension_semantics=("parallel",),
            vmem_limit_bytes=vmem_limit,
        ),
    )(x_bvt, w1g, w_ds, w2g, hvec, vvec, a)


def ref_forward(x, params):
    """Pure-JAX reference mirroring the PyTorch module exactly (NCL layout)."""
    (w1, w_ds, w2, g0, b0, g1, b1, g2, b2, a) = params

    def gln(y, g, b):                 # y: (B, C, T); g, b: (C, 1)
        mean = jnp.mean(y, axis=(1, 2), keepdims=True)
        var = jnp.mean((y - mean) ** 2, axis=(1, 2), keepdims=True)
        return g[None] * (y - mean) / jnp.sqrt(var + EPS) + b[None]

    y = jnp.maximum(x, 0.0)
    y = gln(y, g0, b0)
    y = jnp.einsum("hv,bvt->bht", w1, y)
    y = jnp.maximum(y, 0.0)
    y = gln(y, g1, b1)
    prev = jnp.pad(y, ((0, 0), (0, 0), (1, 0)))[:, :, :-1]
    nxt = jnp.pad(y, ((0, 0), (0, 0), (0, 1)))[:, :, 1:]
    y = (prev * w_ds[None, :, 0:1] + y * w_ds[None, :, 1:2]
         + nxt * w_ds[None, :, 2:3])
    y = jnp.where(y >= 0.0, y, a[0] * y)
    y = gln(y, g2, b2)
    y = jnp.einsum("vh,bht->bvt", w2, y)
    return y + x


if __name__ == "__main__":
    # Small but MXU/lane-aligned shapes: V, H multiples of 128 (K alignment for
    # the 128/256-wide MXU), T (lane axis) multiple of 128, B >= 2.
    B, V, H, T = 2, 128, 256, 256

    key = jax.random.PRNGKey(0)
    (k_x, k_w1, k_wd, k_w2,
     k_g0, k_b0, k_g1, k_b1, k_g2, k_b2) = jax.random.split(key, 10)

    x = jax.random.normal(k_x, (B, V, T), dtype=jnp.float32)

    # Parameters in the native (squeezed) PyTorch layouts.  gamma/beta are
    # perturbed away from their (1, 0) init so the affine-fold path is
    # actually exercised.
    w1 = jax.random.normal(k_w1, (H, V), dtype=jnp.float32) * 0.05     # conv1x1 (H,V,1)
    w_ds = jax.random.normal(k_wd, (H, 3), dtype=jnp.float32) * 0.2    # dsconv  (H,1,3)
    w2 = jax.random.normal(k_w2, (V, H), dtype=jnp.float32) * 0.05     # pw_conv (V,H,1)
    g0 = 1.0 + 0.1 * jax.random.normal(k_g0, (V, 1), dtype=jnp.float32)
    b0 = 0.05 * jax.random.normal(k_b0, (V, 1), dtype=jnp.float32)
    g1 = 1.0 + 0.1 * jax.random.normal(k_g1, (H, 1), dtype=jnp.float32)
    b1 = 0.05 * jax.random.normal(k_b1, (H, 1), dtype=jnp.float32)
    g2 = 1.0 + 0.1 * jax.random.normal(k_g2, (H, 1), dtype=jnp.float32)
    b2 = 0.05 * jax.random.normal(k_b2, (H, 1), dtype=jnp.float32)
    a = jnp.full((1,), 0.25, jnp.float32)                              # PReLU init

    params = (w1, w_ds, w2, g0, b0, g1, b1, g2, b2, a)

    ref = jax.block_until_ready(ref_forward(x, params))

    # Exact-semantics path (f32 MXU operands).
    out = jax.block_until_ready(visual_conv1d(x, params))
    assert out.shape == (B, V, T)
    np.testing.assert_allclose(np.asarray(out), np.asarray(ref),
                               rtol=2e-4, atol=2e-4)

    # bf16 MXU-operand path (~3x MXU throughput on v6e/v7x); looser tolerance.
    out_bf16 = jax.block_until_ready(
        visual_conv1d(x, params, matmul_dtype=jnp.bfloat16))
    np.testing.assert_allclose(np.asarray(out_bf16), np.asarray(ref),
                               rtol=5e-2, atol=5e-2)

    print("KERNEL_OK")
</pallas_src>

<mosaic_0001>
module attributes {stable_mosaic.version = 11 : i64} {
  func.func @visual_conv1d_kernel(%arg0: i32, %arg1: memref<1x128x256xf32, #tpu.memory_space<vmem>>, %arg2: memref<256x128xf32, #tpu.memory_space<vmem>>, %arg3: memref<256x3xf32, #tpu.memory_space<vmem>>, %arg4: memref<128x256xf32, #tpu.memory_space<vmem>>, %arg5: memref<256x4xf32, #tpu.memory_space<vmem>>, %arg6: memref<128x2xf32, #tpu.memory_space<vmem>>, %arg7: memref<1xf32, #tpu.memory_space<smem>>, %arg8: memref<1x128x256xf32, #tpu.memory_space<vmem>>) attributes {dimension_semantics = [#tpu.dimension_semantics<parallel>], iteration_bounds = array<i64: 2>, scalar_prefetch = 0 : i64, scratch_operands = 0 : i64, tpu.core_type = #tpu.core_type<tc>, window_params = [{transform_indices = @transform_0, window_bounds = array<i64: 1, 128, 256>}, {pipeline_mode = #tpu.pipeline_mode<synchronous>, transform_indices = @transform_1, window_bounds = array<i64: 256, 128>}, {pipeline_mode = #tpu.pipeline_mode<synchronous>, transform_indices = @transform_2, window_bounds = array<i64: 256, 3>}, {pipeline_mode = #tpu.pipeline_mode<synchronous>, transform_indices = @transform_3, window_bounds = array<i64: 128, 256>}, {pipeline_mode = #tpu.pipeline_mode<synchronous>, transform_indices = @transform_4, window_bounds = array<i64: 256, 4>}, {pipeline_mode = #tpu.pipeline_mode<synchronous>, transform_indices = @transform_5, window_bounds = array<i64: 128, 2>}, {transform_indices = @transform_6, window_bounds = array<i64: 1>}, {transform_indices = @transform_7, window_bounds = array<i64: 1, 128, 256>}]} {
    %c0 = arith.constant 0 : index
    %c0_0 = arith.constant 0 : index
    %c0_1 = arith.constant 0 : index
    %0 = vector.load %arg1[%c0, %c0_0, %c0_1] : memref<1x128x256xf32, #tpu.memory_space<vmem>>, vector<1x128x256xf32>
    %1 = vector.shape_cast %0 : vector<1x128x256xf32> to vector<128x256xf32>
    %cst = arith.constant 0.000000e+00 : f32
    %2 = vector.broadcast %cst : f32 to vector<128x256xf32>
    %3 = arith.maximumf %1, %2 : vector<128x256xf32>
    %4 = vector.shape_cast %3 : vector<128x256xf32> to vector<1x128x256xf32>
    %cst_2 = arith.constant dense<0.000000e+00> : vector<1xf32>
    %5 = vector.multi_reduction <add>, %4, %cst_2 [1, 2] : vector<1x128x256xf32> to vector<1xf32>
    %6 = vector.shape_cast %5 : vector<1xf32> to vector<1x1x1xf32>
    %7 = vector.extract %6[0, 0, 0] : f32 from vector<1x1x1xf32>
    %8 = arith.mulf %3, %3 : vector<128x256xf32>
    %9 = vector.shape_cast %8 : vector<128x256xf32> to vector<1x128x256xf32>
    %cst_3 = arith.constant dense<0.000000e+00> : vector<1xf32>
    %10 = vector.multi_reduction <add>, %9, %cst_3 [1, 2] : vector<1x128x256xf32> to vector<1xf32>
    %11 = vector.shape_cast %10 : vector<1xf32> to vector<1x1x1xf32>
    %12 = vector.extract %11[0, 0, 0] : f32 from vector<1x1x1xf32>
    %cst_4 = arith.constant 3.05175781E-5 : f32
    %13 = arith.mulf %7, %cst_4 : f32
    %cst_5 = arith.constant 3.05175781E-5 : f32
    %14 = arith.mulf %12, %cst_5 : f32
    %15 = arith.mulf %13, %13 : f32
    %16 = arith.subf %14, %15 : f32
    %cst_6 = arith.constant 0.000000e+00 : f32
    %17 = arith.maximumf %16, %cst_6 : f32
    %cst_7 = arith.constant 9.99999993E-9 : f32
    %18 = arith.addf %17, %cst_7 : f32
    %19 = math.sqrt %18 : f32
    %c0_8 = arith.constant 0 : index
    %c0_9 = arith.constant 0 : index
    %20 = vector.load %arg5[%c0_8, %c0_9] : memref<256x4xf32, #tpu.memory_space<vmem>>, vector<256x1xf32>
    %c0_10 = arith.constant 0 : index
    %c1 = arith.constant 1 : index
    %21 = vector.load %arg5[%c0_10, %c1] : memref<256x4xf32, #tpu.memory_space<vmem>>, vector<256x1xf32>
    %c0_11 = arith.constant 0 : index
    %c2 = arith.constant 2 : index
    %22 = vector.load %arg5[%c0_11, %c2] : memref<256x4xf32, #tpu.memory_space<vmem>>, vector<256x1xf32>
    %c0_12 = arith.constant 0 : index
    %c3 = arith.constant 3 : index
    %23 = vector.load %arg5[%c0_12, %c3] : memref<256x4xf32, #tpu.memory_space<vmem>>, vector<256x1xf32>
    %24 = vector.broadcast %19 : f32 to vector<256x1xf32>
    %25 = arith.mulf %21, %24 : vector<256x1xf32>
    %26 = vector.broadcast %13 : f32 to vector<256x1xf32>
    %27 = arith.mulf %26, %20 : vector<256x1xf32>
    %28 = arith.subf %25, %27 : vector<256x1xf32>
    %c0_13 = arith.constant 0 : index
    %c0_14 = arith.constant 0 : index
    %29 = vector.load %arg2[%c0_13, %c0_14] : memref<256x128xf32, #tpu.memory_space<vmem>>, vector<256x128xf32>
    %cst_15 = arith.constant dense<0.000000e+00> : vector<256x256xf32>
    %30 = tpu.matmul %29, %3, %cst_15 {dimension_numbers = #tpu.dot_dimension_numbers<[1], [0], [0], [1], [0, 0, 1, 1], [], []>} : vector<256x128xf32>, vector<128x256xf32>, vector<256x256xf32> -> vector<256x256xf32>
    %31 = vector.broadcast %28 : vector<256x1xf32> to vector<256x256xf32>
    %32 = arith.addf %30, %31 : vector<256x256xf32>
    %cst_16 = arith.constant 0.000000e+00 : f32
    %33 = vector.broadcast %cst_16 : f32 to vector<256x256xf32>
    %34 = arith.maximumf %32, %33 : vector<256x256xf32>
    %35 = vector.shape_cast %34 : vector<256x256xf32> to vector<1x256x256xf32>
    %cst_17 = arith.constant dense<0.000000e+00> : vector<1xf32>
    %36 = vector.multi_reduction <add>, %35, %cst_17 [1, 2] : vector<1x256x256xf32> to vector<1xf32>
    %37 = vector.shape_cast %36 : vector<1xf32> to vector<1x1x1xf32>
    %38 = vector.extract %37[0, 0, 0] : f32 from vector<1x1x1xf32>
    %39 = arith.mulf %34, %34 : vector<256x256xf32>
    %40 = vector.shape_cast %39 : vector<256x256xf32> to vector<1x256x256xf32>
    %cst_18 = arith.constant dense<0.000000e+00> : vector<1xf32>
    %41 = vector.multi_reduction <add>, %40, %cst_18 [1, 2] : vector<1x256x256xf32> to vector<1xf32>
    %42 = vector.shape_cast %41 : vector<1xf32> to vector<1x1x1xf32>
    %43 = vector.extract %42[0, 0, 0] : f32 from vector<1x1x1xf32>
    %cst_19 = arith.constant 1.52587891E-5 : f32
    %44 = arith.mulf %38, %cst_19 : f32
    %cst_20 = arith.constant 1.52587891E-5 : f32
    %45 = arith.mulf %43, %cst_20 : f32
    %46 = arith.mulf %44, %44 : f32
    %47 = arith.subf %45, %46 : f32
    %cst_21 = arith.constant 0.000000e+00 : f32
    %48 = arith.maximumf %47, %cst_21 : f32
    %cst_22 = arith.constant 9.99999993E-9 : f32
    %49 = arith.addf %48, %cst_22 : f32
    %50 = math.rsqrt %49 : f32
    %51 = vector.broadcast %50 : f32 to vector<256x1xf32>
    %52 = arith.mulf %22, %51 : vector<256x1xf32>
    %53 = vector.broadcast %44 : f32 to vector<256x1xf32>
    %54 = arith.mulf %53, %52 : vector<256x1xf32>
    %55 = arith.subf %23, %54 : vector<256x1xf32>
    %56 = vector.broadcast %52 : vector<256x1xf32> to vector<256x256xf32>
    %57 = arith.mulf %34, %56 : vector<256x256xf32>
    %58 = vector.broadcast %55 : vector<256x1xf32> to vector<256x256xf32>
    %59 = arith.addf %57, %58 : vector<256x256xf32>
    %cst_23 = arith.constant 0.000000e+00 : f32
    %60 = vector.broadcast %cst_23 : f32 to vector<256x1xf32>
    %61 = vector.extract_strided_slice %59 {offsets = [0, 0], sizes = [256, 255], strides = [1, 1]} : vector<256x256xf32> to vector<256x255xf32>
    %62 = tpu.concatenate %60, %61 in 1 : vector<256x1xf32>, vector<256x255xf32> -> vector<256x256xf32>
    %63 = vector.extract_strided_slice %59 {offsets = [0, 1], sizes = [256, 255], strides = [1, 1]} : vector<256x256xf32> to vector<256x255xf32>
    %64 = tpu.concatenate %63, %60 in 1 : vector<256x255xf32>, vector<256x1xf32> -> vector<256x256xf32>
    %c0_24 = arith.constant 0 : index
    %c0_25 = arith.constant 0 : index
    %65 = vector.load %arg3[%c0_24, %c0_25] : memref<256x3xf32, #tpu.memory_space<vmem>>, vector<256x3xf32>
    %66 = vector.extract_strided_slice %65 {offsets = [0, 0], sizes = [256, 1], strides = [1, 1]} : vector<256x3xf32> to vector<256x1xf32>
    %67 = vector.broadcast %66 : vector<256x1xf32> to vector<256x256xf32>
    %68 = arith.mulf %62, %67 : vector<256x256xf32>
    %69 = vector.extract_strided_slice %65 {offsets = [0, 1], sizes = [256, 1], strides = [1, 1]} : vector<256x3xf32> to vector<256x1xf32>
    %70 = vector.broadcast %69 : vector<256x1xf32> to vector<256x256xf32>
    %71 = arith.mulf %59, %70 : vector<256x256xf32>
    %72 = arith.addf %68, %71 : vector<256x256xf32>
    %73 = vector.extract_strided_slice %65 {offsets = [0, 2], sizes = [256, 1], strides = [1, 1]} : vector<256x3xf32> to vector<256x1xf32>
    %74 = vector.broadcast %73 : vector<256x1xf32> to vector<256x256xf32>
    %75 = arith.mulf %64, %74 : vector<256x256xf32>
    %76 = arith.addf %72, %75 : vector<256x256xf32>
    %c0_26 = arith.constant 0 : index
    %77 = memref.load %arg7[%c0_26] : memref<1xf32, #tpu.memory_space<smem>>
    %cst_27 = arith.constant 0.000000e+00 : f32
    %78 = vector.broadcast %cst_27 : f32 to vector<256x256xf32>
    %79 = arith.cmpf oge, %76, %78 : vector<256x256xf32>
    %80 = vector.broadcast %77 : f32 to vector<256x256xf32>
    %81 = arith.mulf %80, %76 : vector<256x256xf32>
    %82 = arith.select %79, %76, %81 : vector<256x256xi1>, vector<256x256xf32>
    %83 = vector.shape_cast %82 : vector<256x256xf32> to vector<1x256x256xf32>
    %cst_28 = arith.constant dense<0.000000e+00> : vector<1xf32>
    %84 = vector.multi_reduction <add>, %83, %cst_28 [1, 2] : vector<1x256x256xf32> to vector<1xf32>
    %85 = vector.shape_cast %84 : vector<1xf32> to vector<1x1x1xf32>
    %86 = vector.extract %85[0, 0, 0] : f32 from vector<1x1x1xf32>
    %87 = arith.mulf %82, %82 : vector<256x256xf32>
    %88 = vector.shape_cast %87 : vector<256x256xf32> to vector<1x256x256xf32>
    %cst_29 = arith.constant dense<0.000000e+00> : vector<1xf32>
    %89 = vector.multi_reduction <add>, %88, %cst_29 [1, 2] : vector<1x256x256xf32> to vector<1xf32>
    %90 = vector.shape_cast %89 : vector<1xf32> to vector<1x1x1xf32>
    %91 = vector.extract %90[0, 0, 0] : f32 from vector<1x1x1xf32>
    %cst_30 = arith.constant 1.52587891E-5 : f32
    %92 = arith.mulf %86, %cst_30 : f32
    %cst_31 = arith.constant 1.52587891E-5 : f32
    %93 = arith.mulf %91, %cst_31 : f32
    %94 = arith.mulf %92, %92 : f32
    %95 = arith.subf %93, %94 : f32
    %cst_32 = arith.constant 0.000000e+00 : f32
    %96 = arith.maximumf %95, %cst_32 : f32
    %cst_33 = arith.constant 9.99999993E-9 : f32
    %97 = arith.addf %96, %cst_33 : f32
    %98 = math.rsqrt %97 : f32
    %c0_34 = arith.constant 0 : index
    %c0_35 = arith.constant 0 : index
    %99 = vector.load %arg6[%c0_34, %c0_35] : memref<128x2xf32, #tpu.memory_space<vmem>>, vector<128x1xf32>
    %c0_36 = arith.constant 0 : index
    %c1_37 = arith.constant 1 : index
    %100 = vector.load %arg6[%c0_36, %c1_37] : memref<128x2xf32, #tpu.memory_space<vmem>>, vector<128x1xf32>
    %101 = arith.mulf %92, %98 : f32
    %102 = vector.broadcast %101 : f32 to vector<128x1xf32>
    %103 = arith.mulf %102, %99 : vector<128x1xf32>
    %104 = arith.subf %100, %103 : vector<128x1xf32>
    %c0_38 = arith.constant 0 : index
    %c0_39 = arith.constant 0 : index
    %105 = vector.load %arg4[%c0_38, %c0_39] : memref<128x256xf32, #tpu.memory_space<vmem>>, vector<128x256xf32>
    %cst_40 = arith.constant dense<0.000000e+00> : vector<128x256xf32>
    %106 = tpu.matmul %105, %82, %cst_40 {dimension_numbers = #tpu.dot_dimension_numbers<[1], [0], [0], [1], [0, 0, 1, 1], [], []>} : vector<128x256xf32>, vector<256x256xf32>, vector<128x256xf32> -> vector<128x256xf32>
    %107 = vector.broadcast %98 : f32 to vector<128x256xf32>
    %108 = arith.mulf %106, %107 : vector<128x256xf32>
    %109 = vector.broadcast %104 : vector<128x1xf32> to vector<128x256xf32>
    %110 = arith.addf %108, %109 : vector<128x256xf32>
    %c0_41 = arith.constant 0 : index
    %c0_42 = arith.constant 0 : index
    %c0_43 = arith.constant 0 : index
    %111 = vector.load %arg1[%c0_41, %c0_42, %c0_43] : memref<1x128x256xf32, #tpu.memory_space<vmem>>, vector<1x128x256xf32>
    %112 = vector.shape_cast %111 : vector<1x128x256xf32> to vector<128x256xf32>
    %113 = arith.addf %110, %112 : vector<128x256xf32>
    %c0_44 = arith.constant 0 : index
    %c0_45 = arith.constant 0 : index
    %c0_46 = arith.constant 0 : index
    %114 = vector.load %arg8[%c0_44, %c0_45, %c0_46] : memref<1x128x256xf32, #tpu.memory_space<vmem>>, vector<1x128x256xf32>
    %115 = vector.shape_cast %114 : vector<1x128x256xf32> to vector<128x256xf32>
    %116 = vector.shape_cast %113 : vector<128x256xf32> to vector<1x128x256xf32>
    tpu.vector_store %arg8[%c0_44, %c0_45, %c0_46], %116 {strides = array<i32>} : memref<1x128x256xf32, #tpu.memory_space<vmem>>, vector<1x128x256xf32>,
    return
  }
  func.func @transform_0(%arg0: i32) -> (i32, i32, i32) {
    %c0_i32 = arith.constant 0 : i32
    %c0_i32_0 = arith.constant 0 : i32
    %c0_i32_1 = arith.constant 0 : i32
    return %arg0, %c0_i32, %c0_i32_0 : i32, i32, i32
  }
  func.func @transform_1(%arg0: i32) -> (i32, i32) {
    %c0_i32 = arith.constant 0 : i32
    %c0_i32_0 = arith.constant 0 : i32
    %c0_i32_1 = arith.constant 0 : i32
    return %c0_i32, %c0_i32_0 : i32, i32
  }
  func.func @transform_2(%arg0: i32) -> (i32, i32) {
    %c0_i32 = arith.constant 0 : i32
    %c0_i32_0 = arith.constant 0 : i32
    %c0_i32_1 = arith.constant 0 : i32
    return %c0_i32, %c0_i32_0 : i32, i32
  }
  func.func @transform_3(%arg0: i32) -> (i32, i32) {
    %c0_i32 = arith.constant 0 : i32
    %c0_i32_0 = arith.constant 0 : i32
    %c0_i32_1 = arith.constant 0 : i32
    return %c0_i32, %c0_i32_0 : i32, i32
  }
  func.func @transform_4(%arg0: i32) -> (i32, i32) {
    %c0_i32 = arith.constant 0 : i32
    %c0_i32_0 = arith.constant 0 : i32
    %c0_i32_1 = arith.constant 0 : i32
    return %c0_i32, %c0_i32_0 : i32, i32
  }
  func.func @transform_5(%arg0: i32) -> (i32, i32) {
    %c0_i32 = arith.constant 0 : i32
    %c0_i32_0 = arith.constant 0 : i32
    %c0_i32_1 = arith.constant 0 : i32
    return %c0_i32, %c0_i32_0 : i32, i32
  }
  func.func @transform_6(%arg0: i32) -> i32 {
    %c0_i32 = arith.constant 0 : i32
    %c0_i32_0 = arith.constant 0 : i32
    return %c0_i32 : i32
  }
  func.func @transform_7(%arg0: i32) -> (i32, i32, i32) {
    %c0_i32 = arith.constant 0 : i32
    %c0_i32_0 = arith.constant 0 : i32
    %c0_i32_1 = arith.constant 0 : i32
    return %arg0, %c0_i32, %c0_i32_0 : i32, i32, i32
  }
}

</mosaic_0001>

<llo_original>
// kernel: tpu_custom_call.1
$region0: #{tpu_custom_call.1}
  #allocation0 [shape = 'u32[]', space=smem, size = 0x4, offset = 0x4, fixed_abs, tag = 'smem constant byte address 0x4 - core index']
  #allocation1 [shape = 'u32[72,128]{1,0:T(1,128)}', space=vmem, size = 0x9000, scoped, tag = 'internal scratch']
  #allocation2 [shape = 'f32[1]{0:T(128)S(6)}', space=smem, size = 0x200, scoped, tag = 'scoped memory for tpu_custom_call.1']
  %s0 = inlined_call_operand.vmem [shape: f32[2,128,256], index: 0, kind: input, shape index: {}]
  %s1 = inlined_call_operand.hbm [shape: f32[256,128], index: 1, kind: input, shape index: {}]
  %s2 = inlined_call_operand.vmem [shape: f32[256,3], index: 2, kind: input, shape index: {}]
  %s3 = inlined_call_operand.hbm [shape: f32[128,256], index: 3, kind: input, shape index: {}]
  %s4 = inlined_call_operand.vmem [shape: f32[256,4], index: 4, kind: input, shape index: {}]
  %s5 = inlined_call_operand.vmem [shape: f32[128,2], index: 5, kind: input, shape index: {}]
  %s6 = inlined_call_operand.<no memory space> [shape: f32[1], index: 6, kind: input, shape index: {}]
  %s7 = inlined_call_operand.hbm [shape: f32[2,128,256], index: 7, kind: output, shape index: {}]
  %s8 = sld [smem:[#allocation0]]
  $region69: #{tpu_custom_call.1} parent=0
    _
  %s10 = ssub.s32 1, %s8
  %s11 = scalar_select 0, %s10, %s8
  %12 = sst [smem:[#allocation2]] %s6
  $region1: #{tpu_custom_call.1} parent=0
    #allocation3 [shape = 'u8[131072]{0}', space=vmem, size = 0x20000, scoped, tag = 'input window, operand 1, single buffered']
    #allocation4 [shape = 's32[2]{0}', space=sflag, size = 0x8, scoped, tag = 'scoped memory for tpu_custom_call.1']
    #allocation5 [shape = 's32[2]{0}', space=sflag, size = 0x8, scoped, tag = 'scoped memory for tpu_custom_call.1']
    #allocation6 [shape = 'u8[131072]{0}', space=vmem, size = 0x20000, scoped, tag = 'input window, operand 3, single buffered']
    #allocation7 [shape = 's32[1]{0}', space=sflag, size = 0x4, scoped, tag = 'scoped memory for tpu_custom_call.1']
    #allocation8 [shape = 'u8[262144]{0}', space=vmem, size = 0x40000, scoped, tag = 'output window, operand 0']
    %13 = vsyncpa [#allocation4], 0
    %14 = vsyncpa [#allocation7], 0
    %15 = vsyncpa [#allocation5], 0
    %s16 = scalar_lea.sflag [#allocation5], 1
    %17 = vsyncpa %s16, 0
    loop: start=0, step=1, limit=4
    $region2: #{tpu_custom_call.1} parent=1 // loop_pre_header
      _
    $region3: #{tpu_custom_call.1} parent=1 // loop_header
      %s19 = sphi 0, %s23
      %p20 = scmp.ge.s32.totalorder %s19, 4
      %s29 = sphi 0, %s31
      %s32 = sphi 0, %s29
      %s33 = sphi 0, %s32
      %s49 = sphi 0, %s33
      %s53 = sphi 0, %s53
      %s55 = sphi 0, %s53
      %s56 = sphi 0, %s55
      %s70 = sphi 0, %s56
      %s74 = sphi 0, %s74
      %s76 = sphi 0, %s74
      %s77 = sphi 0, %s76
      %s91 = sphi 0, %s77
      %s95 = sphi 0, %s95
      %s97 = sphi 0, %s95
      %s98 = sphi 0, %s97
      %s112 = sphi 0, %s98
      %s116 = sphi 0, %s116
      %s118 = sphi 0, %s116
      %s119 = sphi 0, %s118
      %s133 = sphi 0, %s119
      %s137 = sphi 0, %s137
      %s139 = sphi 0, %s137
      %s140 = sphi 0, %s139
      %s154 = sphi 0, %s140
      %s158 = sphi 0, %s158
      %s160 = sphi 0, %s158
      %s161 = sphi 0, %s160
      %s175 = sphi 0, %s161
      %s181 = sphi 0, %s183
      %s184 = sphi 0, %s181
      %s185 = sphi 0, %s184
      %s201 = sphi 0, %s185
    $region4: #{tpu_custom_call.1} parent=1 // loop_header_branch
      %22 = sbr.rel (%p20) target = $region8
    $region5: #{tpu_custom_call.1} parent=1 // loop_body
      %s24 = ssub.s32 %s19, 1
      %s25 = ssub.s32 %s19, 2
      %s26 = sadd.s32 %s19, 1
      %s27 = ssub.s32 %s19, %s26
      %p28 = scmp.eq.s32.totalorder %s27, 0
      %s30 = sadd.s32 %s29, 1
      %s31 = scalar_select %p28, %s29, %s30
      %p34 = pneg %p28
      %p35 = scmp.eq.s32.totalorder %s19, 1
      %p36 = por %p34, %p35
      %p37 = scmp.ne.s32.totalorder %s29, %s32
      %p38 = scmp.eq.s32.totalorder %s19, 0
      %p39 = por %p37, %p38
      %p40 = scmp.ne.s32.totalorder %s29, %s32
      %p41 = scmp.eq.s32.totalorder %s24, 1
      %p42 = por %p40, %p41
      %p43 = scmp.ne.s32.totalorder %s32, %s33
      %p44 = scmp.eq.s32.totalorder %s24, 0
      %p45 = por %p43, %p44
      %p46 = scmp.ne.s32.totalorder %s32, %s33
      %p47 = scmp.eq.s32.totalorder %s25, 1
      %p48 = por %p46, %p47
      %p50 = scmp.ne.s32.totalorder %s33, %s49
      %p51 = scmp.eq.s32.totalorder %s25, 0
      %p52 = por %p50, %p51
      %s54 = sadd.s32 %s53, 1
      %p57 = scmp.eq.s32.totalorder %s19, 1
      %p58 = scmp.ne.s32.totalorder %s53, %s55
      %p59 = scmp.eq.s32.totalorder %s19, 0
      %p60 = por %p58, %p59
      %p61 = scmp.ne.s32.totalorder %s53, %s55
      %p62 = scmp.eq.s32.totalorder %s24, 1
      %p63 = por %p61, %p62
      %p64 = scmp.ne.s32.totalorder %s55, %s56
      %p65 = scmp.eq.s32.totalorder %s24, 0
      %p66 = por %p64, %p65
      %p67 = scmp.ne.s32.totalorder %s55, %s56
      %p68 = scmp.eq.s32.totalorder %s25, 1
      %p69 = por %p67, %p68
      %p71 = scmp.ne.s32.totalorder %s56, %s70
      %p72 = scmp.eq.s32.totalorder %s25, 0
      %p73 = por %p71, %p72
      %s75 = sadd.s32 %s74, 1
      %p78 = scmp.eq.s32.totalorder %s19, 1
      %p79 = scmp.ne.s32.totalorder %s74, %s76
      %p80 = scmp.eq.s32.totalorder %s19, 0
      %p81 = por %p79, %p80
      %p82 = scmp.ne.s32.totalorder %s74, %s76
      %p83 = scmp.eq.s32.totalorder %s24, 1
      %p84 = por %p82, %p83
      %p85 = scmp.ne.s32.totalorder %s76, %s77
      %p86 = scmp.eq.s32.totalorder %s24, 0
      %p87 = por %p85, %p86
      %p88 = scmp.ne.s32.totalorder %s76, %s77
      %p89 = scmp.eq.s32.totalorder %s25, 1
      %p90 = por %p88, %p89
      %p92 = scmp.ne.s32.totalorder %s77, %s91
      %p93 = scmp.eq.s32.totalorder %s25, 0
      %p94 = por %p92, %p93
      %s96 = sadd.s32 %s95, 1
      %p99 = scmp.eq.s32.totalorder %s19, 1
      %p100 = scmp.ne.s32.totalorder %s95, %s97
      %p101 = scmp.eq.s32.totalorder %s19, 0
      %p102 = por %p100, %p101
      %p103 = scmp.ne.s32.totalorder %s95, %s97
      %p104 = scmp.eq.s32.totalorder %s24, 1
      %p105 = por %p103, %p104
      %p106 = scmp.ne.s32.totalorder %s97, %s98
      %p107 = scmp.eq.s32.totalorder %s24, 0
      %p108 = por %p106, %p107
      %p109 = scmp.ne.s32.totalorder %s97, %s98
      %p110 = scmp.eq.s32.totalorder %s25, 1
      %p111 = por %p109, %p110
      %p113 = scmp.ne.s32.totalorder %s98, %s112
      %p114 = scmp.eq.s32.totalorder %s25, 0
      %p115 = por %p113, %p114
      %s117 = sadd.s32 %s116, 1
      %p120 = scmp.eq.s32.totalorder %s19, 1
      %p121 = scmp.ne.s32.totalorder %s116, %s118
      %p122 = scmp.eq.s32.totalorder %s19, 0
      %p123 = por %p121, %p122
      %p124 = scmp.ne.s32.totalorder %s116, %s118
      %p125 = scmp.eq.s32.totalorder %s24, 1
      %p126 = por %p124, %p125
      %p127 = scmp.ne.s32.totalorder %s118, %s119
      %p128 = scmp.eq.s32.totalorder %s24, 0
      %p129 = por %p127, %p128
      %p130 = scmp.ne.s32.totalorder %s118, %s119
      %p131 = scmp.eq.s32.totalorder %s25, 1
      %p132 = por %p130, %p131
      %p134 = scmp.ne.s32.totalorder %s119, %s133
      %p135 = scmp.eq.s32.totalorder %s25, 0
      %p136 = por %p134, %p135
      %s138 = sadd.s32 %s137, 1
      %p141 = scmp.eq.s32.totalorder %s19, 1
      %p142 = scmp.ne.s32.totalorder %s137, %s139
      %p143 = scmp.eq.s32.totalorder %s19, 0
      %p144 = por %p142, %p143
      %p145 = scmp.ne.s32.totalorder %s137, %s139
      %p146 = scmp.eq.s32.totalorder %s24, 1
      %p147 = por %p145, %p146
      %p148 = scmp.ne.s32.totalorder %s139, %s140
      %p149 = scmp.eq.s32.totalorder %s24, 0
      %p150 = por %p148, %p149
      %p151 = scmp.ne.s32.totalorder %s139, %s140
      %p152 = scmp.eq.s32.totalorder %s25, 1
      %p153 = por %p151, %p152
      %p155 = scmp.ne.s32.totalorder %s140, %s154
      %p156 = scmp.eq.s32.totalorder %s25, 0
      %p157 = por %p155, %p156
      %s159 = sadd.s32 %s158, 1
      %p162 = scmp.eq.s32.totalorder %s19, 1
      %p163 = scmp.ne.s32.totalorder %s158, %s160
      %p164 = scmp.eq.s32.totalorder %s19, 0
      %p165 = por %p163, %p164
      %p166 = scmp.ne.s32.totalorder %s158, %s160
      %p167 = scmp.eq.s32.totalorder %s24, 1
      %p168 = por %p166, %p167
      %p169 = scmp.ne.s32.totalorder %s160, %s161
      %p170 = scmp.eq.s32.totalorder %s24, 0
      %p171 = por %p169, %p170
      %p172 = scmp.ne.s32.totalorder %s160, %s161
      %p173 = scmp.eq.s32.totalorder %s25, 1
      %p174 = por %p172, %p173
      %p176 = scmp.ne.s32.totalorder %s161, %s175
      %p177 = scmp.eq.s32.totalorder %s25, 0
      %p178 = por %p176, %p177
      %s179 = ssub.s32 %s19, %s26
      %p180 = scmp.eq.s32.totalorder %s179, 0
      %s182 = sadd.s32 %s181, 1
      %s183 = scalar_select %p180, %s181, %s182
      %p186 = pneg %p180
      %p187 = scmp.eq.s32.totalorder %s19, 1
      %p188 = por %p186, %p187
      %p189 = scmp.ne.s32.totalorder %s181, %s184
      %p190 = scmp.eq.s32.totalorder %s19, 0
      %p191 = por %p189, %p190
      %p192 = scmp.ne.s32.totalorder %s181, %s184
      %p193 = scmp.eq.s32.totalorder %s24, 1
      %p194 = por %p192, %p193
      %p195 = scmp.ne.s32.totalorder %s184, %s185
      %p196 = scmp.eq.s32.totalorder %s24, 0
      %p197 = por %p195, %p196
      %p198 = scmp.ne.s32.totalorder %s184, %s185
      %p199 = scmp.eq.s32.totalorder %s25, 1
      %p200 = por %p198, %p199
      %p202 = scmp.ne.s32.totalorder %s185, %s201
      %p203 = scmp.eq.s32.totalorder %s25, 0
      %p204 = por %p202, %p203
      %p205 = scmp.le.s32.totalorder 1, %s19
      %p206 = scmp.lt.s32.totalorder %s19, 3
      %p207 = pnand %p205, %p206
      %p208 = pneg %p207
      // Predicated region
      $region9: #{tpu_custom_call.1} parent=5 // pred_check
        _
      $region10: #{tpu_custom_call.1} parent=5 // pred_check_branch
        %210 = sbr.rel (%p207) target = $region12
      $region11: #{tpu_custom_call.1} parent=5 // pred_region
        %s211 = ssub.s32 %s19, 1
        // Predicated region
        $region13: #{tpu_custom_call.1} parent=11 // pred_check
          %p212 = pneg %p66
        $region14: #{tpu_custom_call.1} parent=11 // pred_check_branch
          %214 = sbr.rel (%p212) target = $region16
        $region15: #{tpu_custom_call.1} parent=11 // pred_region
          %216 = vsyncadd [#allocation4], 0
          %s217 = sshll.u32 %s1, 4
          %s218 = int_to_ptr.hbm [resolvable:$true] %s217
          %s219 = sshll.u32 [#allocation3], 4
          %s220 = int_to_ptr.vmem [resolvable:$true] %s219
          %225 = dma.hbm_to_vmem [thread:$0]  %s218, 4096, %s220, [#allocation4], 128, 128, 8
        $region16: #{tpu_custom_call.1} parent=11 // pred_fallthru
          _
        // Predicated region
        $region17: #{tpu_custom_call.1} parent=11 // pred_check
          %p226 = pneg %p87
        $region18: #{tpu_custom_call.1} parent=11 // pred_check_branch
          %228 = sbr.rel (%p226) target = $region20
        $region19: #{tpu_custom_call.1} parent=11 // pred_region
          _
        $region20: #{tpu_custom_call.1} parent=11 // pred_fallthru
          _
        // Predicated region
        $region21: #{tpu_custom_call.1} parent=11 // pred_check
          %p229 = pneg %p108
        $region22: #{tpu_custom_call.1} parent=11 // pred_check_branch
          %231 = sbr.rel (%p229) target = $region24
        $region23: #{tpu_custom_call.1} parent=11 // pred_region
          %233 = vsyncadd [#allocation7], 0
          %s234 = sshll.u32 %s3, 4
          %s235 = int_to_ptr.hbm [resolvable:$true] %s234
          %s236 = sshll.u32 [#allocation6], 4
          %s237 = int_to_ptr.vmem [resolvable:$true] %s236
          %242 = dma.hbm_to_vmem [thread:$0]  %s235, 4096, %s237, [#allocation7], 256, 256, 16
        $region24: #{tpu_custom_call.1} parent=11 // pred_fallthru
          _
        // Predicated region
        $region25: #{tpu_custom_call.1} parent=11 // pred_check
          %p243 = pneg %p129
        $region26: #{tpu_custom_call.1} parent=11 // pred_check_branch
          %245 = sbr.rel (%p243) target = $region28
        $region27: #{tpu_custom_call.1} parent=11 // pred_region
          _
        $region28: #{tpu_custom_call.1} parent=11 // pred_fallthru
          _
        // Predicated region
        $region29: #{tpu_custom_call.1} parent=11 // pred_check
          %p246 = pneg %p150
        $region30: #{tpu_custom_call.1} parent=11 // pred_check_branch
          %248 = sbr.rel (%p246) target = $region32
        $region31: #{tpu_custom_call.1} parent=11 // pred_region
          _
        $region32: #{tpu_custom_call.1} parent=11 // pred_fallthru
          _
        // Predicated region
        $region33: #{tpu_custom_call.1} parent=11 // pred_check
          %p249 = pneg %p171
        $region34: #{tpu_custom_call.1} parent=11 // pred_check_branch
          %251 = sbr.rel (%p249) target = $region36
        $region35: #{tpu_custom_call.1} parent=11 // pred_region
          _
        $region36: #{tpu_custom_call.1} parent=11 // pred_fallthru
          _
      $region12: #{tpu_custom_call.1} parent=5 // pred_fallthru
        _
      %p252 = scmp.lt.s32.totalorder %s19, 2
      // Predicated region
      $region37: #{tpu_custom_call.1} parent=5 // pred_check
        %p253 = pneg %p252
      $region38: #{tpu_custom_call.1} parent=5 // pred_check_branch
        %255 = sbr.rel (%p253) target = $region40
      $region39: #{tpu_custom_call.1} parent=5 // pred_region
        // Predicated region
        $region41: #{tpu_custom_call.1} parent=39 // pred_check
          %p256 = pneg %p39
        $region42: #{tpu_custom_call.1} parent=39 // pred_check_branch
          %258 = sbr.rel (%p256) target = $region44
        $region43: #{tpu_custom_call.1} parent=39 // pred_region
          %p259 = scmp.lt.s32.totalorder %s19, 1
          %s260 = scalar_select %p259, %s19, 1
          %s261 = smul.addr %s260, 32
          %s262 = smul.addr %s261, 8
          %s263 = scalar_lea.vmem %s0, %s262
        $region44: #{tpu_custom_call.1} parent=39 // pred_fallthru
          _
      $region40: #{tpu_custom_call.1} parent=5 // pred_fallthru
        _
      %p264 = scmp.le.s32.totalorder 1, %s19
      %p265 = scmp.lt.s32.totalorder %s19, 3
      %p266 = pnand %p264, %p265
      %p267 = pneg %p266
      // Predicated region
      $region45: #{tpu_custom_call.1} parent=5 // pred_check
        _
      $region46: #{tpu_custom_call.1} parent=5 // pred_check_branch
        %269 = sbr.rel (%p266) target = $region48
      $region47: #{tpu_custom_call.1} parent=5 // pred_region
        %s270 = ssub.s32 %s19, 1
        // Predicated region
        $region49: #{tpu_custom_call.1} parent=47 // pred_check
          %p271 = pneg %p66
        $region50: #{tpu_custom_call.1} parent=47 // pred_check_branch
          %273 = sbr.rel (%p271) target = $region52
        $region51: #{tpu_custom_call.1} parent=47 // pred_region
          %275 = dma.done [#allocation4], 4096
        $region52: #{tpu_custom_call.1} parent=47 // pred_fallthru
          _
        // Predicated region
        $region53: #{tpu_custom_call.1} parent=47 // pred_check
          %p276 = pneg %p108
        $region54: #{tpu_custom_call.1} parent=47 // pred_check_branch
          %278 = sbr.rel (%p276) target = $region56
        $region55: #{tpu_custom_call.1} parent=47 // pred_region
          %280 = dma.done [#allocation7], 4096
        $region56: #{tpu_custom_call.1} parent=47 // pred_fallthru
          _
        %p281 = scmp.lt.s32.totalorder %s24, 1
        %s282 = scalar_select %p281, %s24, 1
        %s283 = smul.addr %s282, 32
        %s284 = smul.addr %s283, 8
        %s285 = scalar_lea.vmem %s0, %s284
        %p286 = pneg %p45
        %p287 = pneg %p42
        %p288 = pneg %p66
        %p289 = pneg %p63
        %p290 = pneg %p87
        %p291 = pneg %p84
        %p292 = pneg %p108
        %p293 = pneg %p105
        %p294 = pneg %p129
        %p295 = pneg %p126
        %p296 = pneg %p150
        %p297 = pneg %p147
        %p298 = pneg %p171
        %p299 = pneg %p168
        %p300 = pneg %p197
        %p301 = pneg %p194
        %s302 = sand.u32 %s184, 1
        %s303 = scalar_lea.sflag [#allocation5], %s302
        %s304 = sand.u32 %s184, 1
        %s305 = smul.addr %s304, 256
        %s306 = scalar_lea.vmem [#allocation8], %s305
        %p307 = scmp.lt.s32.totalorder %s24, 1
        %s308 = scalar_select %p307, %s24, 1
        %s309 = smul.addr %s308, 32
        %s310 = smul.addr %s309, 8
        %s311 = scalar_lea.vmem %s0, %s310
        %v312 = vld [vmem:[%s311] sm:$0xff]
        %v313 = vld [vmem:[%s311 + $0x8] sm:$0xff]
        %v314 = vld [vmem:[%s311 + $0x10] sm:$0xff]
        %v315 = vld [vmem:[%s311 + $0x18] sm:$0xff]
        %v316 = vld [vmem:[%s311 + $0x20] sm:$0xff]
        %v317 = vld [vmem:[%s311 + $0x28] sm:$0xff]
        %v318 = vld [vmem:[%s311 + $0x30] sm:$0xff]
        %v319 = vld [vmem:[%s311 + $0x38] sm:$0xff]
        %v320 = vld [vmem:[%s311 + $0x40] sm:$0xff]
        %v321 = vld [vmem:[%s311 + $0x48] sm:$0xff]
        %v322 = vld [vmem:[%s311 + $0x50] sm:$0xff]
        %v323 = vld [vmem:[%s311 + $0x58] sm:$0xff]
        %v324 = vld [vmem:[%s311 + $0x60] sm:$0xff]
        %v325 = vld [vmem:[%s311 + $0x68] sm:$0xff]
        %v326 = vld [vmem:[%s311 + $0x70] sm:$0xff]
        %v327 = vld [vmem:[%s311 + $0x78] sm:$0xff]
        %v328 = vld [vmem:[%s311 + $0x80] sm:$0xff]
        %v329 = vld [vmem:[%s311 + $0x88] sm:$0xff]
        %v330 = vld [vmem:[%s311 + $0x90] sm:$0xff]
        %v331 = vld [vmem:[%s311 + $0x98] sm:$0xff]
        %v332 = vld [vmem:[%s311 + $0xa0] sm:$0xff]
        %v333 = vld [vmem:[%s311 + $0xa8] sm:$0xff]
        %v334 = vld [vmem:[%s311 + $0xb0] sm:$0xff]
        %v335 = vld [vmem:[%s311 + $0xb8] sm:$0xff]
        %v336 = vld [vmem:[%s311 + $0xc0] sm:$0xff]
        %v337 = vld [vmem:[%s311 + $0xc8] sm:$0xff]
        %v338 = vld [vmem:[%s311 + $0xd0] sm:$0xff]
        %v339 = vld [vmem:[%s311 + $0xd8] sm:$0xff]
        %v340 = vld [vmem:[%s311 + $0xe0] sm:$0xff]
        %v341 = vld [vmem:[%s311 + $0xe8] sm:$0xff]
        %v342 = vld [vmem:[%s311 + $0xf0] sm:$0xff]
        %v343 = vld [vmem:[%s311 + $0xf8] sm:$0xff]
        %v344 = vmax.f32 %v312, 0.0
        %v345 = vmax.f32 %v313, 0.0
        %v346 = vmax.f32 %v314, 0.0
        %v347 = vmax.f32 %v315, 0.0
        %v348 = vmax.f32 %v316, 0.0
        %v349 = vmax.f32 %v317, 0.0
        %v350 = vmax.f32 %v318, 0.0
        %v351 = vmax.f32 %v319, 0.0
        %v352 = vmax.f32 %v320, 0.0
        %v353 = vmax.f32 %v321, 0.0
        %v354 = vmax.f32 %v322, 0.0
        %v355 = vmax.f32 %v323, 0.0
        %v356 = vmax.f32 %v324, 0.0
        %v357 = vmax.f32 %v325, 0.0
        %v358 = vmax.f32 %v326, 0.0
        %v359 = vmax.f32 %v327, 0.0
        %v360 = vmax.f32 %v328, 0.0
        %v361 = vmax.f32 %v329, 0.0
        %v362 = vmax.f32 %v330, 0.0
        %v363 = vmax.f32 %v331, 0.0
        %v364 = vmax.f32 %v332, 0.0
        %v365 = vmax.f32 %v333, 0.0
        %v366 = vmax.f32 %v334, 0.0
        %v367 = vmax.f32 %v335, 0.0
        %v368 = vmax.f32 %v336, 0.0
        %v369 = vmax.f32 %v337, 0.0
        %v370 = vmax.f32 %v338, 0.0
        %v371 = vmax.f32 %v339, 0.0
        %v372 = vmax.f32 %v340, 0.0
        %v373 = vmax.f32 %v341, 0.0
        %v374 = vmax.f32 %v342, 0.0
        %v375 = vmax.f32 %v343, 0.0
        %v376 = vadd.f32 %v344, %v345
        %v377 = vadd.f32 %v376, %v346
        %v378 = vadd.f32 %v377, %v347
        %v379 = vadd.f32 %v378, %v348
        %v380 = vadd.f32 %v379, %v349
        %v381 = vadd.f32 %v380, %v350
        %v382 = vadd.f32 %v381, %v351
        %v383 = vadd.f32 %v382, %v352
        %v384 = vadd.f32 %v383, %v353
        %v385 = vadd.f32 %v384, %v354
        %v386 = vadd.f32 %v385, %v355
        %v387 = vadd.f32 %v386, %v356
        %v388 = vadd.f32 %v387, %v357
        %v389 = vadd.f32 %v388, %v358
        %v390 = vadd.f32 %v389, %v359
        %v391 = vadd.f32 %v390, %v360
        %v392 = vadd.f32 %v391, %v361
        %v393 = vadd.f32 %v392, %v362
        %v394 = vadd.f32 %v393, %v363
        %v395 = vadd.f32 %v394, %v364
        %v396 = vadd.f32 %v395, %v365
        %v397 = vadd.f32 %v396, %v366
        %v398 = vadd.f32 %v397, %v367
        %v399 = vadd.f32 %v398, %v368
        %v400 = vadd.f32 %v399, %v369
        %v401 = vadd.f32 %v400, %v370
        %v402 = vadd.f32 %v401, %v371
        %v403 = vadd.f32 %v402, %v372
        %v404 = vadd.f32 %v403, %v373
        %v405 = vadd.f32 %v404, %v374
        %v406 = vadd.f32 %v405, %v375
        %407 = vadd.xlane.f32.xlu0 %v406
        %v408 = vpop.xlane.xlu0 %407
        %v409 = vrot.slane %v408, 4
        %v410 = vadd.f32 %v408, %v409
        %v411 = vrot.slane %v410, 2
        %v412 = vadd.f32 %v410, %v411
        %v413 = vrot.slane %v412, 1
        %v414 = vadd.f32 %v412, %v413
        %s415 = vtos %v414
        %v416 = vmul.f32 %v344, %v344
        %v417 = vmul.f32 %v345, %v345
        %v418 = vmul.f32 %v346, %v346
        %v419 = vmul.f32 %v347, %v347
        %v420 = vmul.f32 %v348, %v348
        %v421 = vmul.f32 %v349, %v349
        %v422 = vmul.f32 %v350, %v350
        %v423 = vmul.f32 %v351, %v351
        %v424 = vmul.f32 %v352, %v352
        %v425 = vmul.f32 %v353, %v353
        %v426 = vmul.f32 %v354, %v354
        %v427 = vmul.f32 %v355, %v355
        %v428 = vmul.f32 %v356, %v356
        %v429 = vmul.f32 %v357, %v357
        %v430 = vmul.f32 %v358, %v358
        %v431 = vmul.f32 %v359, %v359
        %v432 = vmul.f32 %v360, %v360
        %v433 = vmul.f32 %v361, %v361
        %v434 = vmul.f32 %v362, %v362
        %v435 = vmul.f32 %v363, %v363
        %v436 = vmul.f32 %v364, %v364
        %v437 = vmul.f32 %v365, %v365
        %v438 = vmul.f32 %v366, %v366
        %v439 = vmul.f32 %v367, %v367
        %v440 = vmul.f32 %v368, %v368
        %v441 = vmul.f32 %v369, %v369
        %v442 = vmul.f32 %v370, %v370
        %v443 = vmul.f32 %v371, %v371
        %v444 = vmul.f32 %v372, %v372
        %v445 = vmul.f32 %v373, %v373
        %v446 = vmul.f32 %v374, %v374
        %v447 = vmul.f32 %v375, %v375
        %v448 = vadd.f32 %v416, %v417
        %v449 = vadd.f32 %v448, %v418
        %v450 = vadd.f32 %v449, %v419
        %v451 = vadd.f32 %v450, %v420
        %v452 = vadd.f32 %v451, %v421
        %v453 = vadd.f32 %v452, %v422
        %v454 = vadd.f32 %v453, %v423
        %v455 = vadd.f32 %v454, %v424
        %v456 = vadd.f32 %v455, %v425
        %v457 = vadd.f32 %v456, %v426
        %v458 = vadd.f32 %v457, %v427
        %v459 = vadd.f32 %v458, %v428
        %v460 = vadd.f32 %v459, %v429
        %v461 = vadd.f32 %v460, %v430
        %v462 = vadd.f32 %v461, %v431
        %v463 = vadd.f32 %v462, %v432
        %v464 = vadd.f32 %v463, %v433
        %v465 = vadd.f32 %v464, %v434
        %v466 = vadd.f32 %v465, %v435
        %v467 = vadd.f32 %v466, %v436
        %v468 = vadd.f32 %v467, %v437
        %v469 = vadd.f32 %v468, %v438
        %v470 = vadd.f32 %v469, %v439
        %v471 = vadd.f32 %v470, %v440
        %v472 = vadd.f32 %v471, %v441
        %v473 = vadd.f32 %v472, %v442
        %v474 = vadd.f32 %v473, %v443
        %v475 = vadd.f32 %v474, %v444
        %v476 = vadd.f32 %v475, %v445
        %v477 = vadd.f32 %v476, %v446
        %v478 = vadd.f32 %v477, %v447
        %479 = vadd.xlane.f32.xlu0 %v478
        %v480 = vpop.xlane.xlu0 %479
        %v481 = vrot.slane %v480, 4
        %v482 = vadd.f32 %v480, %v481
        %v483 = vrot.slane %v482, 2
        %v484 = vadd.f32 %v482, %v483
        %v485 = vrot.slane %v484, 1
        %v486 = vadd.f32 %v484, %v485
        %s487 = vtos %v486
        %s488 = smul.f32 %s415, 3.0517578e-05
        %s489 = smul.f32 %s487, 3.0517578e-05
        %s490 = smul.f32 %s488, %s488
        %s491 = ssub.f32 %s489, %s490
        %s492 = smax.f32 %s491, 0.0
        %s493 = sadd.f32 %s492, 1e-08
        %v494 = vstv %s493
        %v495 = vrsqrt.pop %v494
        %v496 = vmul.f32 %v495, %v494
        %v497 = vmul.f32 %v496, %v495
        %v498 = vmul.f32 0.5, %v497
        %v499 = vsub.f32 1.5, %v498
        %v500 = vmul.f32 %v495, %v499
        %v501 = vmul.f32 %v494, %v500
        %vm502 = vcmp.eq.f32.partialorder %v494, inf
        %v503 = vsel %vm502, %v494, %v501
        %vm504 = vcmp.eq.f32.partialorder %v494, 0.0
        %v505 = vand.u32 %v494, 2147483648
        %v506 = vsel %vm504, %v505, %v503
        %s507 = vtos %v506
        %v508 = vld [vmem:[%s4] sm:$0xff]
        %v509 = vld [vmem:[%s4 + $0x8] sm:$0xff]
        %v510 = vld [vmem:[%s4 + $0x10] sm:$0xff]
        %v511 = vld [vmem:[%s4 + $0x18] sm:$0xff]
        %v512 = vld [vmem:[%s4 + $0x20] sm:$0xff]
        %v513 = vld [vmem:[%s4 + $0x28] sm:$0xff]
        %v514 = vld [vmem:[%s4 + $0x30] sm:$0xff]
        %v515 = vld [vmem:[%s4 + $0x38] sm:$0xff]
        %v516 = vld [vmem:[%s4 + $0x40] sm:$0xff]
        %v517 = vld [vmem:[%s4 + $0x48] sm:$0xff]
        %v518 = vld [vmem:[%s4 + $0x50] sm:$0xff]
        %v519 = vld [vmem:[%s4 + $0x58] sm:$0xff]
        %v520 = vld [vmem:[%s4 + $0x60] sm:$0xff]
        %v521 = vld [vmem:[%s4 + $0x68] sm:$0xff]
        %v522 = vld [vmem:[%s4 + $0x70] sm:$0xff]
        %v523 = vld [vmem:[%s4 + $0x78] sm:$0xff]
        %v524 = vld [vmem:[%s4 + $0x80] sm:$0xff]
        %v525 = vld [vmem:[%s4 + $0x88] sm:$0xff]
        %v526 = vld [vmem:[%s4 + $0x90] sm:$0xff]
        %v527 = vld [vmem:[%s4 + $0x98] sm:$0xff]
        %v528 = vld [vmem:[%s4 + $0xa0] sm:$0xff]
        %v529 = vld [vmem:[%s4 + $0xa8] sm:$0xff]
        %v530 = vld [vmem:[%s4 + $0xb0] sm:$0xff]
        %v531 = vld [vmem:[%s4 + $0xb8] sm:$0xff]
        %v532 = vld [vmem:[%s4 + $0xc0] sm:$0xff]
        %v533 = vld [vmem:[%s4 + $0xc8] sm:$0xff]
        %v534 = vld [vmem:[%s4 + $0xd0] sm:$0xff]
        %v535 = vld [vmem:[%s4 + $0xd8] sm:$0xff]
        %v536 = vld [vmem:[%s4 + $0xe0] sm:$0xff]
        %v537 = vld [vmem:[%s4 + $0xe8] sm:$0xff]
        %v538 = vld [vmem:[%s4 + $0xf0] sm:$0xff]
        %v539 = vld [vmem:[%s4 + $0xf8] sm:$0xff]
        %v540 = vstv %s507
        %v541 = vmul.f32 %v508, %v540
        %v542 = vmul.f32 %v509, %v540
        %v543 = vmul.f32 %v510, %v540
        %v544 = vmul.f32 %v511, %v540
        %v545 = vmul.f32 %v512, %v540
        %v546 = vmul.f32 %v513, %v540
        %v547 = vmul.f32 %v514, %v540
        %v548 = vmul.f32 %v515, %v540
        %v549 = vmul.f32 %v516, %v540
        %v550 = vmul.f32 %v517, %v540
        %v551 = vmul.f32 %v518, %v540
        %v552 = vmul.f32 %v519, %v540
        %v553 = vmul.f32 %v520, %v540
        %v554 = vmul.f32 %v521, %v540
        %v555 = vmul.f32 %v522, %v540
        %v556 = vmul.f32 %v523, %v540
        %v557 = vmul.f32 %v524, %v540
        %v558 = vmul.f32 %v525, %v540
        %v559 = vmul.f32 %v526, %v540
        %v560 = vmul.f32 %v527, %v540
        %v561 = vmul.f32 %v528, %v540
        %v562 = vmul.f32 %v529, %v540
        %v563 = vmul.f32 %v530, %v540
        %v564 = vmul.f32 %v531, %v540
        %v565 = vmul.f32 %v532, %v540
        %v566 = vmul.f32 %v533, %v540
        %v567 = vmul.f32 %v534, %v540
        %v568 = vmul.f32 %v535, %v540
        %v569 = vmul.f32 %v536, %v540
        %v570 = vmul.f32 %v537, %v540
        %v571 = vmul.f32 %v538, %v540
        %v572 = vmul.f32 %v539, %v540
        %v573 = vstv %s488
        %v574 = vmul.f32 %v573, %v508
        %v575 = vmul.f32 %v573, %v509
        %v576 = vmul.f32 %v573, %v510
        %v577 = vmul.f32 %v573, %v511
        %v578 = vmul.f32 %v573, %v512
        %v579 = vmul.f32 %v573, %v513
        %v580 = vmul.f32 %v573, %v514
        %v581 = vmul.f32 %v573, %v515
        %v582 = vmul.f32 %v573, %v516
        %v583 = vmul.f32 %v573, %v517
        %v584 = vmul.f32 %v573, %v518
        %v585 = vmul.f32 %v573, %v519
        %v586 = vmul.f32 %v573, %v520
        %v587 = vmul.f32 %v573, %v521
        %v588 = vmul.f32 %v573, %v522
        %v589 = vmul.f32 %v573, %v523
        %v590 = vmul.f32 %v573, %v524
        %v591 = vmul.f32 %v573, %v525
        %v592 = vmul.f32 %v573, %v526
        %v593 = vmul.f32 %v573, %v527
        %v594 = vmul.f32 %v573, %v528
        %v595 = vmul.f32 %v573, %v529
        %v596 = vmul.f32 %v573, %v530
        %v597 = vmul.f32 %v573, %v531
        %v598 = vmul.f32 %v573, %v532
        %v599 = vmul.f32 %v573, %v533
        %v600 = vmul.f32 %v573, %v534
        %v601 = vmul.f32 %v573, %v535
        %v602 = vmul.f32 %v573, %v536
        %v603 = vmul.f32 %v573, %v537
        %v604 = vmul.f32 %v573, %v538
        %v605 = vmul.f32 %v573, %v539
        %638 = vrot.lane.b32.xlu0 %v574, 1
        %v639 = vpop.permute.xlu0 %638
        %640 = vrot.lane.b32.xlu0 %v575, 1
        %v641 = vpop.permute.xlu0 %640
        %642 = vrot.lane.b32.xlu0 %v576, 1
        %v643 = vpop.permute.xlu0 %642
        %644 = vrot.lane.b32.xlu0 %v577, 1
        %v645 = vpop.permute.xlu0 %644
        %646 = vrot.lane.b32.xlu0 %v578, 1
        %v647 = vpop.permute.xlu0 %646
        %648 = vrot.lane.b32.xlu0 %v579, 1
        %v649 = vpop.permute.xlu0 %648
        %650 = vrot.lane.b32.xlu0 %v580, 1
        %v651 = vpop.permute.xlu0 %650
        %652 = vrot.lane.b32.xlu0 %v581, 1
        %v653 = vpop.permute.xlu0 %652
        %654 = vrot.lane.b32.xlu0 %v582, 1
        %v655 = vpop.permute.xlu0 %654
        %656 = vrot.lane.b32.xlu0 %v583, 1
        %v657 = vpop.permute.xlu0 %656
        %658 = vrot.lane.b32.xlu0 %v584, 1
        %v659 = vpop.permute.xlu0 %658
        %660 = vrot.lane.b32.xlu0 %v585, 1
        %v661 = vpop.permute.xlu0 %660
        %662 = vrot.lane.b32.xlu0 %v586, 1
        %v663 = vpop.permute.xlu0 %662
        %664 = vrot.lane.b32.xlu0 %v587, 1
        %v665 = vpop.permute.xlu0 %664
        %666 = vrot.lane.b32.xlu0 %v588, 1
        %v667 = vpop.permute.xlu0 %666
        %668 = vrot.lane.b32.xlu0 %v589, 1
        %v669 = vpop.permute.xlu0 %668
        %670 = vrot.lane.b32.xlu0 %v590, 1
        %v671 = vpop.permute.xlu0 %670
        %672 = vrot.lane.b32.xlu0 %v591, 1
        %v673 = vpop.permute.xlu0 %672
        %674 = vrot.lane.b32.xlu0 %v592, 1
        %v675 = vpop.permute.xlu0 %674
        %676 = vrot.lane.b32.xlu0 %v593, 1
        %v677 = vpop.permute.xlu0 %676
        %678 = vrot.lane.b32.xlu0 %v594, 1
        %v679 = vpop.permute.xlu0 %678
        %680 = vrot.lane.b32.xlu0 %v595, 1
        %v681 = vpop.permute.xlu0 %680
        %682 = vrot.lane.b32.xlu0 %v596, 1
        %v683 = vpop.permute.xlu0 %682
        %684 = vrot.lane.b32.xlu0 %v597, 1
        %v685 = vpop.permute.xlu0 %684
        %686 = vrot.lane.b32.xlu0 %v598, 1
        %v687 = vpop.permute.xlu0 %686
        %688 = vrot.lane.b32.xlu0 %v599, 1
        %v689 = vpop.permute.xlu0 %688
        %690 = vrot.lane.b32.xlu0 %v600, 1
        %v691 = vpop.permute.xlu0 %690
        %692 = vrot.lane.b32.xlu0 %v601, 1
        %v693 = vpop.permute.xlu0 %692
        %694 = vrot.lane.b32.xlu0 %v602, 1
        %v695 = vpop.permute.xlu0 %694
        %696 = vrot.lane.b32.xlu0 %v603, 1
        %v697 = vpop.permute.xlu0 %696
        %698 = vrot.lane.b32.xlu0 %v604, 1
        %v699 = vpop.permute.xlu0 %698
        %700 = vrot.lane.b32.xlu0 %v605, 1
        %v701 = vpop.permute.xlu0 %700
        %v734 = vsub.f32 %v541, %v639
        %v735 = vsub.f32 %v542, %v641
        %v736 = vsub.f32 %v543, %v643
        %v737 = vsub.f32 %v544, %v645
        %v738 = vsub.f32 %v545, %v647
        %v739 = vsub.f32 %v546, %v649
        %v740 = vsub.f32 %v547, %v651
        %v741 = vsub.f32 %v548, %v653
        %v742 = vsub.f32 %v549, %v655
        %v743 = vsub.f32 %v550, %v657
        %v744 = vsub.f32 %v551, %v659
        %v745 = vsub.f32 %v552, %v661
        %v746 = vsub.f32 %v553, %v663
        %v747 = vsub.f32 %v554, %v665
        %v748 = vsub.f32 %v555, %v667
        %v749 = vsub.f32 %v556, %v669
        %v750 = vsub.f32 %v557, %v671
        %v751 = vsub.f32 %v558, %v673
        %v752 = vsub.f32 %v559, %v675
        %v753 = vsub.f32 %v560, %v677
        %v754 = vsub.f32 %v561, %v679
        %v755 = vsub.f32 %v562, %v681
        %v756 = vsub.f32 %v563, %v683
        %v757 = vsub.f32 %v564, %v685
        %v758 = vsub.f32 %v565, %v687
        %v759 = vsub.f32 %v566, %v689
        %v760 = vsub.f32 %v567, %v691
        %v761 = vsub.f32 %v568, %v693
        %v762 = vsub.f32 %v569, %v695
        %v763 = vsub.f32 %v570, %v697
        %v764 = vsub.f32 %v571, %v699
        %v765 = vsub.f32 %v572, %v701
        %v766 = vld [vmem:[#allocation3] sm:$0xff]
        %v767 = vld [vmem:[#allocation3 + $0x8] sm:$0xff]
        %v768 = vld [vmem:[#allocation3 + $0x10] sm:$0xff]
        %v769 = vld [vmem:[#allocation3 + $0x18] sm:$0xff]
        %v770 = vld [vmem:[#allocation3 + $0x20] sm:$0xff]
        %v771 = vld [vmem:[#allocation3 + $0x28] sm:$0xff]
        %v772 = vld [vmem:[#allocation3 + $0x30] sm:$0xff]
        %v773 = vld [vmem:[#allocation3 + $0x38] sm:$0xff]
        %v774 = vld [vmem:[#allocation3 + $0x40] sm:$0xff]
        %v775 = vld [vmem:[#allocation3 + $0x48] sm:$0xff]
        %v776 = vld [vmem:[#allocation3 + $0x50] sm:$0xff]
        %v777 = vld [vmem:[#allocation3 + $0x58] sm:$0xff]
        %v778 = vld [vmem:[#allocation3 + $0x60] sm:$0xff]
        %v779 = vld [vmem:[#allocation3 + $0x68] sm:$0xff]
        %v780 = vld [vmem:[#allocation3 + $0x70] sm:$0xff]
        %v781 = vld [vmem:[#allocation3 + $0x78] sm:$0xff]
        %v782 = vld [vmem:[#allocation3 + $0x80] sm:$0xff]
        %v783 = vld [vmem:[#allocation3 + $0x88] sm:$0xff]
        %v784 = vld [vmem:[#allocation3 + $0x90] sm:$0xff]
        %v785 = vld [vmem:[#allocation3 + $0x98] sm:$0xff]
        %v786 = vld [vmem:[#allocation3 + $0xa0] sm:$0xff]
        %v787 = vld [vmem:[#allocation3 + $0xa8] sm:$0xff]
        %v788 = vld [vmem:[#allocation3 + $0xb0] sm:$0xff]
        %v789 = vld [vmem:[#allocation3 + $0xb8] sm:$0xff]
        %v790 = vld [vmem:[#allocation3 + $0xc0] sm:$0xff]
        %v791 = vld [vmem:[#allocation3 + $0xc8] sm:$0xff]
        %v792 = vld [vmem:[#allocation3 + $0xd0] sm:$0xff]
        %v793 = vld [vmem:[#allocation3 + $0xd8] sm:$0xff]
        %v794 = vld [vmem:[#allocation3 + $0xe0] sm:$0xff]
        %v795 = vld [vmem:[#allocation3 + $0xe8] sm:$0xff]
        %v796 = vld [vmem:[#allocation3 + $0xf0] sm:$0xff]
        %v797 = vld [vmem:[#allocation3 + $0xf8] sm:$0xff]
        %799 = vset.pattern.permute.xlu0 1
        %800 = vperm.xlu0 %799, %v734
        %v801 = vpop.permute.xlu0 %800
        %804 = vset.pattern.permute.xlu0 1
        %805 = vperm.xlu0 %804, %v735
        %v806 = vpop.permute.xlu0 %805
        %809 = vset.pattern.permute.xlu0 1
        %810 = vperm.xlu0 %809, %v736
        %v811 = vpop.permute.xlu0 %810
        %814 = vset.pattern.permute.xlu0 1
        %815 = vperm.xlu0 %814, %v737
        %v816 = vpop.permute.xlu0 %815
        %819 = vset.pattern.permute.xlu0 1
        %820 = vperm.xlu0 %819, %v738
        %v821 = vpop.permute.xlu0 %820
        %824 = vset.pattern.permute.xlu0 1
        %825 = vperm.xlu0 %824, %v739
        %v826 = vpop.permute.xlu0 %825
        %829 = vset.pattern.permute.xlu0 1
        %830 = vperm.xlu0 %829, %v740
        %v831 = vpop.permute.xlu0 %830
        %834 = vset.pattern.permute.xlu0 1
        %835 = vperm.xlu0 %834, %v741
        %v836 = vpop.permute.xlu0 %835
        %839 = vset.pattern.permute.xlu0 1
        %840 = vperm.xlu0 %839, %v742
        %v841 = vpop.permute.xlu0 %840
        %844 = vset.pattern.permute.xlu0 1
        %845 = vperm.xlu0 %844, %v743
        %v846 = vpop.permute.xlu0 %845
        %849 = vset.pattern.permute.xlu0 1
        %850 = vperm.xlu0 %849, %v744
        %v851 = vpop.permute.xlu0 %850
        %854 = vset.pattern.permute.xlu0 1
        %855 = vperm.xlu0 %854, %v745
        %v856 = vpop.permute.xlu0 %855
        %859 = vset.pattern.permute.xlu0 1
        %860 = vperm.xlu0 %859, %v746
        %v861 = vpop.permute.xlu0 %860
        %864 = vset.pattern.permute.xlu0 1
        %865 = vperm.xlu0 %864, %v747
        %v866 = vpop.permute.xlu0 %865
        %869 = vset.pattern.permute.xlu0 1
        %870 = vperm.xlu0 %869, %v748
        %v871 = vpop.permute.xlu0 %870
        %874 = vset.pattern.permute.xlu0 1
        %875 = vperm.xlu0 %874, %v749
        %v876 = vpop.permute.xlu0 %875
        %879 = vset.pattern.permute.xlu0 1
        %880 = vperm.xlu0 %879, %v750
        %v881 = vpop.permute.xlu0 %880
        %884 = vset.pattern.permute.xlu0 1
        %885 = vperm.xlu0 %884, %v751
        %v886 = vpop.permute.xlu0 %885
        %889 = vset.pattern.permute.xlu0 1
        %890 = vperm.xlu0 %889, %v752
        %v891 = vpop.permute.xlu0 %890
        %894 = vset.pattern.permute.xlu0 1
        %895 = vperm.xlu0 %894, %v753
        %v896 = vpop.permute.xlu0 %895
        %899 = vset.pattern.permute.xlu0 1
        %900 = vperm.xlu0 %899, %v754
        %v901 = vpop.permute.xlu0 %900
        %904 = vset.pattern.permute.xlu0 1
        %905 = vperm.xlu0 %904, %v755
        %v906 = vpop.permute.xlu0 %905
        %909 = vset.pattern.permute.xlu0 1
        %910 = vperm.xlu0 %909, %v756
        %v911 = vpop.permute.xlu0 %910
        %914 = vset.pattern.permute.xlu0 1
        %915 = vperm.xlu0 %914, %v757
        %v916 = vpop.permute.xlu0 %915
        %919 = vset.pattern.permute.xlu0 1
        %920 = vperm.xlu0 %919, %v758
        %v921 = vpop.permute.xlu0 %920
        %924 = vset.pattern.permute.xlu0 1
        %925 = vperm.xlu0 %924, %v759
        %v926 = vpop.permute.xlu0 %925
        %929 = vset.pattern.permute.xlu0 1
        %930 = vperm.xlu0 %929, %v760
        %v931 = vpop.permute.xlu0 %930
        %934 = vset.pattern.permute.xlu0 1
        %935 = vperm.xlu0 %934, %v761
        %v936 = vpop.permute.xlu0 %935
        %939 = vset.pattern.permute.xlu0 1
        %940 = vperm.xlu0 %939, %v762
        %v941 = vpop.permute.xlu0 %940
        %944 = vset.pattern.permute.xlu0 1
        %945 = vperm.xlu0 %944, %v763
        %v946 = vpop.permute.xlu0 %945
        %949 = vset.pattern.permute.xlu0 1
        %950 = vperm.xlu0 %949, %v764
        %v951 = vpop.permute.xlu0 %950
        %954 = vset.pattern.permute.xlu0 1
        %955 = vperm.xlu0 %954, %v765
        %v956 = vpop.permute.xlu0 %955
        %958 = vmatpush.msra.mxu0 %v374
        %959 = vmatpush.msra.mxu0 %v372
        %960 = vmatpush.msra.mxu0 %v370
        %961 = vmatpush.msra.mxu0 %v368
        %962 = vmatpush.msra.mxu0 %v366
        %963 = vmatpush.msra.mxu0 %v364
        %964 = vmatpush.msra.mxu0 %v362
        %965 = vmatpush.msra.mxu0 %v360
        %966 = vmatpush.msra.mxu0 %v358
        %967 = vmatpush.msra.mxu0 %v356
        %968 = vmatpush.msra.mxu0 %v354
        %969 = vmatpush.msra.mxu0 %v352
        %970 = vmatpush.msra.mxu0 %v350
        %971 = vmatpush.msra.mxu0 %v348
        %972 = vmatpush.msra.mxu0 %v346
        %973 = vmatpush.msra.mxu0 %v344
        %974 = vmatmul.f32.gmra.mxu0 %v766
        %v975 = vpop.f32.mrf.mxu0
        %v976 = vadd.f32 %v801, %v975
        %977 = vmatmul.f32.gmra.mxu0 %v767
        %v978 = vpop.f32.mrf.mxu0
        %v979 = vadd.f32 %v806, %v978
        %980 = vmatmul.f32.gmra.mxu0 %v768
        %v981 = vpop.f32.mrf.mxu0
        %v982 = vadd.f32 %v811, %v981
        %983 = vmatmul.f32.gmra.mxu0 %v769
        %v984 = vpop.f32.mrf.mxu0
        %v985 = vadd.f32 %v816, %v984
        %986 = vmatmul.f32.gmra.mxu0 %v770
        %v987 = vpop.f32.mrf.mxu0
        %v988 = vadd.f32 %v821, %v987
        %989 = vmatmul.f32.gmra.mxu0 %v771
        %v990 = vpop.f32.mrf.mxu0
        %v991 = vadd.f32 %v826, %v990
        %992 = vmatmul.f32.gmra.mxu0 %v772
        %v993 = vpop.f32.mrf.mxu0
        %v994 = vadd.f32 %v831, %v993
        %995 = vmatmul.f32.gmra.mxu0 %v773
        %v996 = vpop.f32.mrf.mxu0
        %v997 = vadd.f32 %v836, %v996
        %998 = vmatmul.f32.gmra.mxu0 %v774
        %v999 = vpop.f32.mrf.mxu0
        %v1000 = vadd.f32 %v841, %v999
        %1001 = vmatmul.f32.gmra.mxu0 %v775
        %v1002 = vpop.f32.mrf.mxu0
        %v1003 = vadd.f32 %v846, %v1002
        %1004 = vmatmul.f32.gmra.mxu0 %v776
        %v1005 = vpop.f32.mrf.mxu0
        %v1006 = vadd.f32 %v851, %v1005
        %1007 = vmatmul.f32.gmra.mxu0 %v777
        %v1008 = vpop.f32.mrf.mxu0
        %v1009 = vadd.f32 %v856, %v1008
        %1010 = vmatmul.f32.gmra.mxu0 %v778
        %v1011 = vpop.f32.mrf.mxu0
        %v1012 = vadd.f32 %v861, %v1011
        %1013 = vmatmul.f32.gmra.mxu0 %v779
        %v1014 = vpop.f32.mrf.mxu0
        %v1015 = vadd.f32 %v866, %v1014
        %1016 = vmatmul.f32.gmra.mxu0 %v780
        %v1017 = vpop.f32.mrf.mxu0
        %v1018 = vadd.f32 %v871, %v1017
        %1019 = vmatmul.f32.gmra.mxu0 %v781
        %v1020 = vpop.f32.mrf.mxu0
        %v1021 = vadd.f32 %v876, %v1020
        %1022 = vmatmul.f32.gmra.mxu0 %v782
        %v1023 = vpop.f32.mrf.mxu0
        %v1024 = vadd.f32 %v881, %v1023
        %1025 = vmatmul.f32.gmra.mxu0 %v783
        %v1026 = vpop.f32.mrf.mxu0
        %v1027 = vadd.f32 %v886, %v1026
        %1028 = vmatmul.f32.gmra.mxu0 %v784
        %v1029 = vpop.f32.mrf.mxu0
        %v1030 = vadd.f32 %v891, %v1029
        %1031 = vmatmul.f32.gmra.mxu0 %v785
        %v1032 = vpop.f32.mrf.mxu0
        %v1033 = vadd.f32 %v896, %v1032
        %1034 = vmatmul.f32.gmra.mxu0 %v786
        %v1035 = vpop.f32.mrf.mxu0
        %v1036 = vadd.f32 %v901, %v1035
        %1037 = vmatmul.f32.gmra.mxu0 %v787
        %v1038 = vpop.f32.mrf.mxu0
        %v1039 = vadd.f32 %v906, %v1038
        %1040 = vmatmul.f32.gmra.mxu0 %v788
        %v1041 = vpop.f32.mrf.mxu0
        %v1042 = vadd.f32 %v911, %v1041
        %1043 = vmatmul.f32.gmra.mxu0 %v789
        %v1044 = vpop.f32.mrf.mxu0
        %v1045 = vadd.f32 %v916, %v1044
        %1046 = vmatmul.f32.gmra.mxu0 %v790
        %v1047 = vpop.f32.mrf.mxu0
        %v1048 = vadd.f32 %v921, %v1047
        %1049 = vmatmul.f32.gmra.mxu0 %v791
        %v1050 = vpop.f32.mrf.mxu0
        %v1051 = vadd.f32 %v926, %v1050
        %1052 = vmatmul.f32.gmra.mxu0 %v792
        %v1053 = vpop.f32.mrf.mxu0
        %v1054 = vadd.f32 %v931, %v1053
        %1055 = vmatmul.f32.gmra.mxu0 %v793
        %v1056 = vpop.f32.mrf.mxu0
        %v1057 = vadd.f32 %v936, %v1056
        %1058 = vmatmul.f32.gmra.mxu0 %v794
        %v1059 = vpop.f32.mrf.mxu0
        %v1060 = vadd.f32 %v941, %v1059
        %1061 = vmatmul.f32.gmra.mxu0 %v795
        %v1062 = vpop.f32.mrf.mxu0
        %v1063 = vadd.f32 %v946, %v1062
        %1064 = vmatmul.f32.gmra.mxu0 %v796
        %v1065 = vpop.f32.mrf.mxu0
        %v1066 = vadd.f32 %v951, %v1065
        %1067 = vmatmul.f32.gmra.mxu0 %v797
        %v1068 = vpop.f32.mrf.mxu0
        %v1069 = vadd.f32 %v956, %v1068
        %1070 = vdwg.mxu0
        %1071 = vmatpush.msra.mxu0 %v375
        %1072 = vmatpush.msra.mxu0 %v373
        %1073 = vmatpush.msra.mxu0 %v371
        %1074 = vmatpush.msra.mxu0 %v369
        %1075 = vmatpush.msra.mxu0 %v367
        %1076 = vmatpush.msra.mxu0 %v365
        %1077 = vmatpush.msra.mxu0 %v363
        %1078 = vmatpush.msra.mxu0 %v361
        %1079 = vmatpush.msra.mxu0 %v359
        %1080 = vmatpush.msra.mxu0 %v357
        %1081 = vmatpush.msra.mxu0 %v355
        %1082 = vmatpush.msra.mxu0 %v353
        %1083 = vmatpush.msra.mxu0 %v351
        %1084 = vmatpush.msra.mxu0 %v349
        %1085 = vmatpush.msra.mxu0 %v347
        %1086 = vmatpush.msra.mxu0 %v345
        %1087 = vmatmul.f32.gmra.mxu0 %v766
        %v1088 = vpop.f32.mrf.mxu0
        %v1089 = vadd.f32 %v801, %v1088
        %1090 = vmatmul.f32.gmra.mxu0 %v767
        %v1091 = vpop.f32.mrf.mxu0
        %v1092 = vadd.f32 %v806, %v1091
        %1093 = vmatmul.f32.gmra.mxu0 %v768
        %v1094 = vpop.f32.mrf.mxu0
        %v1095 = vadd.f32 %v811, %v1094
        %1096 = vmatmul.f32.gmra.mxu0 %v769
        %v1097 = vpop.f32.mrf.mxu0
        %v1098 = vadd.f32 %v816, %v1097
        %1099 = vmatmul.f32.gmra.mxu0 %v770
        %v1100 = vpop.f32.mrf.mxu0
        %v1101 = vadd.f32 %v821, %v1100
        %1102 = vmatmul.f32.gmra.mxu0 %v771
        %v1103 = vpop.f32.mrf.mxu0
        %v1104 = vadd.f32 %v826, %v1103
        %1105 = vmatmul.f32.gmra.mxu0 %v772
        %v1106 = vpop.f32.mrf.mxu0
        %v1107 = vadd.f32 %v831, %v1106
        %1108 = vmatmul.f32.gmra.mxu0 %v773
        %v1109 = vpop.f32.mrf.mxu0
        %v1110 = vadd.f32 %v836, %v1109
        %1111 = vmatmul.f32.gmra.mxu0 %v774
        %v1112 = vpop.f32.mrf.mxu0
        %v1113 = vadd.f32 %v841, %v1112
        %1114 = vmatmul.f32.gmra.mxu0 %v775
        %v1115 = vpop.f32.mrf.mxu0
        %v1116 = vadd.f32 %v846, %v1115
        %1117 = vmatmul.f32.gmra.mxu0 %v776
        %v1118 = vpop.f32.mrf.mxu0
        %v1119 = vadd.f32 %v851, %v1118
        %1120 = vmatmul.f32.gmra.mxu0 %v777
        %v1121 = vpop.f32.mrf.mxu0
        %v1122 = vadd.f32 %v856, %v1121
        %1123 = vmatmul.f32.gmra.mxu0 %v778
        %v1124 = vpop.f32.mrf.mxu0
        %v1125 = vadd.f32 %v861, %v1124
        %1126 = vmatmul.f32.gmra.mxu0 %v779
        %v1127 = vpop.f32.mrf.mxu0
        %v1128 = vadd.f32 %v866, %v1127
        %1129 = vmatmul.f32.gmra.mxu0 %v780
        %v1130 = vpop.f32.mrf.mxu0
        %v1131 = vadd.f32 %v871, %v1130
        %1132 = vmatmul.f32.gmra.mxu0 %v781
        %v1133 = vpop.f32.mrf.mxu0
        %v1134 = vadd.f32 %v876, %v1133
        %1135 = vmatmul.f32.gmra.mxu0 %v782
        %v1136 = vpop.f32.mrf.mxu0
        %v1137 = vadd.f32 %v881, %v1136
        %1138 = vmatmul.f32.gmra.mxu0 %v783
        %v1139 = vpop.f32.mrf.mxu0
        %v1140 = vadd.f32 %v886, %v1139
        %1141 = vmatmul.f32.gmra.mxu0 %v784
        %v1142 = vpop.f32.mrf.mxu0
        %v1143 = vadd.f32 %v891, %v1142
        %1144 = vmatmul.f32.gmra.mxu0 %v785
        %v1145 = vpop.f32.mrf.mxu0
        %v1146 = vadd.f32 %v896, %v1145
        %1147 = vmatmul.f32.gmra.mxu0 %v786
        %v1148 = vpop.f32.mrf.mxu0
        %v1149 = vadd.f32 %v901, %v1148
        %1150 = vmatmul.f32.gmra.mxu0 %v787
        %v1151 = vpop.f32.mrf.mxu0
        %v1152 = vadd.f32 %v906, %v1151
        %1153 = vmatmul.f32.gmra.mxu0 %v788
        %v1154 = vpop.f32.mrf.mxu0
        %v1155 = vadd.f32 %v911, %v1154
        %1156 = vmatmul.f32.gmra.mxu0 %v789
        %v1157 = vpop.f32.mrf.mxu0
        %v1158 = vadd.f32 %v916, %v1157
        %1159 = vmatmul.f32.gmra.mxu0 %v790
        %v1160 = vpop.f32.mrf.mxu0
        %v1161 = vadd.f32 %v921, %v1160
        %1162 = vmatmul.f32.gmra.mxu0 %v791
        %v1163 = vpop.f32.mrf.mxu0
        %v1164 = vadd.f32 %v926, %v1163
        %1165 = vmatmul.f32.gmra.mxu0 %v792
        %v1166 = vpop.f32.mrf.mxu0
        %v1167 = vadd.f32 %v931, %v1166
        %1168 = vmatmul.f32.gmra.mxu0 %v793
        %v1169 = vpop.f32.mrf.mxu0
        %v1170 = vadd.f32 %v936, %v1169
        %1171 = vmatmul.f32.gmra.mxu0 %v794
        %v1172 = vpop.f32.mrf.mxu0
        %v1173 = vadd.f32 %v941, %v1172
        %1174 = vmatmul.f32.gmra.mxu0 %v795
        %v1175 = vpop.f32.mrf.mxu0
        %v1176 = vadd.f32 %v946, %v1175
        %1177 = vmatmul.f32.gmra.mxu0 %v796
        %v1178 = vpop.f32.mrf.mxu0
        %v1179 = vadd.f32 %v951, %v1178
        %1180 = vmatmul.f32.gmra.mxu0 %v797
        %v1181 = vpop.f32.mrf.mxu0
        %v1182 = vadd.f32 %v956, %v1181
        %1183 = vdwg.mxu0
        %v1184 = vmax.f32 %v976, 0.0
        %v1185 = vmax.f32 %v1089, 0.0
        %v1186 = vmax.f32 %v979, 0.0
        %v1187 = vmax.f32 %v1092, 0.0
        %v1188 = vmax.f32 %v982, 0.0
        %v1189 = vmax.f32 %v1095, 0.0
        %v1190 = vmax.f32 %v985, 0.0
        %v1191 = vmax.f32 %v1098, 0.0
        %v1192 = vmax.f32 %v988, 0.0
        %v1193 = vmax.f32 %v1101, 0.0
        %v1194 = vmax.f32 %v991, 0.0
        %v1195 = vmax.f32 %v1104, 0.0
        %v1196 = vmax.f32 %v994, 0.0
        %v1197 = vmax.f32 %v1107, 0.0
        %v1198 = vmax.f32 %v997, 0.0
        %v1199 = vmax.f32 %v1110, 0.0
        %v1200 = vmax.f32 %v1000, 0.0
        %v1201 = vmax.f32 %v1113, 0.0
        %v1202 = vmax.f32 %v1003, 0.0
        %v1203 = vmax.f32 %v1116, 0.0
        %v1204 = vmax.f32 %v1006, 0.0
        %v1205 = vmax.f32 %v1119, 0.0
        %v1206 = vmax.f32 %v1009, 0.0
        %v1207 = vmax.f32 %v1122, 0.0
        %v1208 = vmax.f32 %v1012, 0.0
        %v1209 = vmax.f32 %v1125, 0.0
        %v1210 = vmax.f32 %v1015, 0.0
        %v1211 = vmax.f32 %v1128, 0.0
        %v1212 = vmax.f32 %v1018, 0.0
        %v1213 = vmax.f32 %v1131, 0.0
        %v1214 = vmax.f32 %v1021, 0.0
        %v1215 = vmax.f32 %v1134, 0.0
        %v1216 = vmax.f32 %v1024, 0.0
        %v1217 = vmax.f32 %v1137, 0.0
        %v1218 = vmax.f32 %v1027, 0.0
        %v1219 = vmax.f32 %v1140, 0.0
        %v1220 = vmax.f32 %v1030, 0.0
        %v1221 = vmax.f32 %v1143, 0.0
        %v1222 = vmax.f32 %v1033, 0.0
        %v1223 = vmax.f32 %v1146, 0.0
        %v1224 = vmax.f32 %v1036, 0.0
        %v1225 = vmax.f32 %v1149, 0.0
        %v1226 = vmax.f32 %v1039, 0.0
        %v1227 = vmax.f32 %v1152, 0.0
        %v1228 = vmax.f32 %v1042, 0.0
        %v1229 = vmax.f32 %v1155, 0.0
        %v1230 = vmax.f32 %v1045, 0.0
        %v1231 = vmax.f32 %v1158, 0.0
        %v1232 = vmax.f32 %v1048, 0.0
        %v1233 = vmax.f32 %v1161, 0.0
        %v1234 = vmax.f32 %v1051, 0.0
        %v1235 = vmax.f32 %v1164, 0.0
        %v1236 = vmax.f32 %v1054, 0.0
        %v1237 = vmax.f32 %v1167, 0.0
        %v1238 = vmax.f32 %v1057, 0.0
        %v1239 = vmax.f32 %v1170, 0.0
        %v1240 = vmax.f32 %v1060, 0.0
        %v1241 = vmax.f32 %v1173, 0.0
        %v1242 = vmax.f32 %v1063, 0.0
        %v1243 = vmax.f32 %v1176, 0.0
        %v1244 = vmax.f32 %v1066, 0.0
        %v1245 = vmax.f32 %v1179, 0.0
        %v1246 = vmax.f32 %v1069, 0.0
        %v1247 = vmax.f32 %v1182, 0.0
        %v1248 = vadd.f32 %v1184, %v1185
        %v1249 = vadd.f32 %v1248, %v1186
        %v1250 = vadd.f32 %v1249, %v1187
        %v1251 = vadd.f32 %v1250, %v1188
        %v1252 = vadd.f32 %v1251, %v1189
        %v1253 = vadd.f32 %v1252, %v1190
        %v1254 = vadd.f32 %v1253, %v1191
        %v1255 = vadd.f32 %v1254, %v1192
        %v1256 = vadd.f32 %v1255, %v1193
        %v1257 = vadd.f32 %v1256, %v1194
        %v1258 = vadd.f32 %v1257, %v1195
        %v1259 = vadd.f32 %v1258, %v1196
        %v1260 = vadd.f32 %v1259, %v1197
        %v1261 = vadd.f32 %v1260, %v1198
        %v1262 = vadd.f32 %v1261, %v1199
        %v1263 = vadd.f32 %v1262, %v1200
        %v1264 = vadd.f32 %v1263, %v1201
        %v1265 = vadd.f32 %v1264, %v1202
        %v1266 = vadd.f32 %v1265, %v1203
        %v1267 = vadd.f32 %v1266, %v1204
        %v1268 = vadd.f32 %v1267, %v1205
        %v1269 = vadd.f32 %v1268, %v1206
        %v1270 = vadd.f32 %v1269, %v1207
        %v1271 = vadd.f32 %v1270, %v1208
        %v1272 = vadd.f32 %v1271, %v1209
        %v1273 = vadd.f32 %v1272, %v1210
        %v1274 = vadd.f32 %v1273, %v1211
        %v1275 = vadd.f32 %v1274, %v1212
        %v1276 = vadd.f32 %v1275, %v1213
        %v1277 = vadd.f32 %v1276, %v1214
        %v1278 = vadd.f32 %v1277, %v1215
        %v1279 = vadd.f32 %v1278, %v1216
        %v1280 = vadd.f32 %v1279, %v1217
        %v1281 = vadd.f32 %v1280, %v1218
        %v1282 = vadd.f32 %v1281, %v1219
        %v1283 = vadd.f32 %v1282, %v1220
        %v1284 = vadd.f32 %v1283, %v1221
        %v1285 = vadd.f32 %v1284, %v1222
        %v1286 = vadd.f32 %v1285, %v1223
        %v1287 = vadd.f32 %v1286, %v1224
        %v1288 = vadd.f32 %v1287, %v1225
        %v1289 = vadd.f32 %v1288, %v1226
        %v1290 = vadd.f32 %v1289, %v1227
        %v1291 = vadd.f32 %v1290, %v1228
        %v1292 = vadd.f32 %v1291, %v1229
        %v1293 = vadd.f32 %v1292, %v1230
        %v1294 = vadd.f32 %v1293, %v1231
        %v1295 = vadd.f32 %v1294, %v1232
        %v1296 = vadd.f32 %v1295, %v1233
        %v1297 = vadd.f32 %v1296, %v1234
        %v1298 = vadd.f32 %v1297, %v1235
        %v1299 = vadd.f32 %v1298, %v1236
        %v1300 = vadd.f32 %v1299, %v1237
        %v1301 = vadd.f32 %v1300, %v1238
        %v1302 = vadd.f32 %v1301, %v1239
        %v1303 = vadd.f32 %v1302, %v1240
        %v1304 = vadd.f32 %v1303, %v1241
        %v1305 = vadd.f32 %v1304, %v1242
        %v1306 = vadd.f32 %v1305, %v1243
        %v1307 = vadd.f32 %v1306, %v1244
        %v1308 = vadd.f32 %v1307, %v1245
        %v1309 = vadd.f32 %v1308, %v1246
        %v1310 = vadd.f32 %v1309, %v1247
        %1311 = vadd.xlane.f32.xlu0 %v1310
        %v1312 = vpop.xlane.xlu0 %1311
        %v1313 = vrot.slane %v1312, 4
        %v1314 = vadd.f32 %v1312, %v1313
        %v1315 = vrot.slane %v1314, 2
        %v1316 = vadd.f32 %v1314, %v1315
        %v1317 = vrot.slane %v1316, 1
        %v1318 = vadd.f32 %v1316, %v1317
        %s1319 = vtos %v1318
        %v1320 = vmul.f32 %v1184, %v1184
        %v1321 = vmul.f32 %v1185, %v1185
        %v1322 = vmul.f32 %v1186, %v1186
        %v1323 = vmul.f32 %v1187, %v1187
        %v1324 = vmul.f32 %v1188, %v1188
        %v1325 = vmul.f32 %v1189, %v1189
        %v1326 = vmul.f32 %v1190, %v1190
        %v1327 = vmul.f32 %v1191, %v1191
        %v1328 = vmul.f32 %v1192, %v1192
        %v1329 = vmul.f32 %v1193, %v1193
        %v1330 = vmul.f32 %v1194, %v1194
        %v1331 = vmul.f32 %v1195, %v1195
        %v1332 = vmul.f32 %v1196, %v1196
        %v1333 = vmul.f32 %v1197, %v1197
        %v1334 = vmul.f32 %v1198, %v1198
        %v1335 = vmul.f32 %v1199, %v1199
        %v1336 = vmul.f32 %v1200, %v1200
        %v1337 = vmul.f32 %v1201, %v1201
        %v1338 = vmul.f32 %v1202, %v1202
        %v1339 = vmul.f32 %v1203, %v1203
        %v1340 = vmul.f32 %v1204, %v1204
        %v1341 = vmul.f32 %v1205, %v1205
        %v1342 = vmul.f32 %v1206, %v1206
        %v1343 = vmul.f32 %v1207, %v1207
        %v1344 = vmul.f32 %v1208, %v1208
        %v1345 = vmul.f32 %v1209, %v1209
        %v1346 = vmul.f32 %v1210, %v1210
        %v1347 = vmul.f32 %v1211, %v1211
        %v1348 = vmul.f32 %v1212, %v1212
        %v1349 = vmul.f32 %v1213, %v1213
        %v1350 = vmul.f32 %v1214, %v1214
        %v1351 = vmul.f32 %v1215, %v1215
        %v1352 = vmul.f32 %v1216, %v1216
        %v1353 = vmul.f32 %v1217, %v1217
        %v1354 = vmul.f32 %v1218, %v1218
        %v1355 = vmul.f32 %v1219, %v1219
        %v1356 = vmul.f32 %v1220, %v1220
        %v1357 = vmul.f32 %v1221, %v1221
        %v1358 = vmul.f32 %v1222, %v1222
        %v1359 = vmul.f32 %v1223, %v1223
        %v1360 = vmul.f32 %v1224, %v1224
        %v1361 = vmul.f32 %v1225, %v1225
        %v1362 = vmul.f32 %v1226, %v1226
        %v1363 = vmul.f32 %v1227, %v1227
        %v1364 = vmul.f32 %v1228, %v1228
        %v1365 = vmul.f32 %v1229, %v1229
        %v1366 = vmul.f32 %v1230, %v1230
        %v1367 = vmul.f32 %v1231, %v1231
        %v1368 = vmul.f32 %v1232, %v1232
        %v1369 = vmul.f32 %v1233, %v1233
        %v1370 = vmul.f32 %v1234, %v1234
        %v1371 = vmul.f32 %v1235, %v1235
        %v1372 = vmul.f32 %v1236, %v1236
        %v1373 = vmul.f32 %v1237, %v1237
        %v1374 = vmul.f32 %v1238, %v1238
        %v1375 = vmul.f32 %v1239, %v1239
        %v1376 = vmul.f32 %v1240, %v1240
        %v1377 = vmul.f32 %v1241, %v1241
        %v1378 = vmul.f32 %v1242, %v1242
        %v1379 = vmul.f32 %v1243, %v1243
        %v1380 = vmul.f32 %v1244, %v1244
        %v1381 = vmul.f32 %v1245, %v1245
        %v1382 = vmul.f32 %v1246, %v1246
        %v1383 = vmul.f32 %v1247, %v1247
        %v1384 = vadd.f32 %v1320, %v1321
        %v1385 = vadd.f32 %v1384, %v1322
        %v1386 = vadd.f32 %v1385, %v1323
        %v1387 = vadd.f32 %v1386, %v1324
        %v1388 = vadd.f32 %v1387, %v1325
        %v1389 = vadd.f32 %v1388, %v1326
        %v1390 = vadd.f32 %v1389, %v1327
        %v1391 = vadd.f32 %v1390, %v1328
        %v1392 = vadd.f32 %v1391, %v1329
        %v1393 = vadd.f32 %v1392, %v1330
        %v1394 = vadd.f32 %v1393, %v1331
        %v1395 = vadd.f32 %v1394, %v1332
        %v1396 = vadd.f32 %v1395, %v1333
        %v1397 = vadd.f32 %v1396, %v1334
        %v1398 = vadd.f32 %v1397, %v1335
        %v1399 = vadd.f32 %v1398, %v1336
        %v1400 = vadd.f32 %v1399, %v1337
        %v1401 = vadd.f32 %v1400, %v1338
        %v1402 = vadd.f32 %v1401, %v1339
        %v1403 = vadd.f32 %v1402, %v1340
        %v1404 = vadd.f32 %v1403, %v1341
        %v1405 = vadd.f32 %v1404, %v1342
        %v1406 = vadd.f32 %v1405, %v1343
        %v1407 = vadd.f32 %v1406, %v1344
        %v1408 = vadd.f32 %v1407, %v1345
        %v1409 = vadd.f32 %v1408, %v1346
        %v1410 = vadd.f32 %v1409, %v1347
        %v1411 = vadd.f32 %v1410, %v1348
        %v1412 = vadd.f32 %v1411, %v1349
        %v1413 = vadd.f32 %v1412, %v1350
        %v1414 = vadd.f32 %v1413, %v1351
        %v1415 = vadd.f32 %v1414, %v1352
        %v1416 = vadd.f32 %v1415, %v1353
        %v1417 = vadd.f32 %v1416, %v1354
        %v1418 = vadd.f32 %v1417, %v1355
        %v1419 = vadd.f32 %v1418, %v1356
        %v1420 = vadd.f32 %v1419, %v1357
        %v1421 = vadd.f32 %v1420, %v1358
        %v1422 = vadd.f32 %v1421, %v1359
        %v1423 = vadd.f32 %v1422, %v1360
        %v1424 = vadd.f32 %v1423, %v1361
        %v1425 = vadd.f32 %v1424, %v1362
        %v1426 = vadd.f32 %v1425, %v1363
        %v1427 = vadd.f32 %v1426, %v1364
        %v1428 = vadd.f32 %v1427, %v1365
        %v1429 = vadd.f32 %v1428, %v1366
        %v1430 = vadd.f32 %v1429, %v1367
        %v1431 = vadd.f32 %v1430, %v1368
        %v1432 = vadd.f32 %v1431, %v1369
        %v1433 = vadd.f32 %v1432, %v1370
        %v1434 = vadd.f32 %v1433, %v1371
        %v1435 = vadd.f32 %v1434, %v1372
        %v1436 = vadd.f32 %v1435, %v1373
        %v1437 = vadd.f32 %v1436, %v1374
        %v1438 = vadd.f32 %v1437, %v1375
        %v1439 = vadd.f32 %v1438, %v1376
        %v1440 = vadd.f32 %v1439, %v1377
        %v1441 = vadd.f32 %v1440, %v1378
        %v1442 = vadd.f32 %v1441, %v1379
        %v1443 = vadd.f32 %v1442, %v1380
        %v1444 = vadd.f32 %v1443, %v1381
        %v1445 = vadd.f32 %v1444, %v1382
        %v1446 = vadd.f32 %v1445, %v1383
        %1447 = vadd.xlane.f32.xlu0 %v1446
        %v1448 = vpop.xlane.xlu0 %1447
        %v1449 = vrot.slane %v1448, 4
        %v1450 = vadd.f32 %v1448, %v1449
        %v1451 = vrot.slane %v1450, 2
        %v1452 = vadd.f32 %v1450, %v1451
        %v1453 = vrot.slane %v1452, 1
        %v1454 = vadd.f32 %v1452, %v1453
        %s1455 = vtos %v1454
        %s1456 = smul.f32 %s1319, 1.5258789e-05
        %s1457 = smul.f32 %s1455, 1.5258789e-05
        %s1458 = smul.f32 %s1456, %s1456
        %s1459 = ssub.f32 %s1457, %s1458
        %s1460 = smax.f32 %s1459, 0.0
        %s1461 = sadd.f32 %s1460, 1e-08
        %v1462 = vstv %s1461
        %v1463 = vrsqrt.pop %v1462
        %v1464 = vmul.f32 %v1463, %v1462
        %v1465 = vmul.f32 %v1464, %v1463
        %v1466 = vmul.f32 0.5, %v1465
        %v1467 = vsub.f32 1.5, %v1466
        %v1468 = vmul.f32 %v1463, %v1467
        %vm1469 = vweird.f32 %v1462
        %vm1470 = vweird.f32 %v1463
        %vm1471 = vmor %vm1469, %vm1470
        %v1472 = vsel %vm1471, %v1463, %v1468
        %s1473 = vtos %v1472
        %v1474 = vstv %s1473
        %v1475 = vmul.f32 %v508, %v1474
        %v1476 = vmul.f32 %v509, %v1474
        %v1477 = vmul.f32 %v510, %v1474
        %v1478 = vmul.f32 %v511, %v1474
        %v1479 = vmul.f32 %v512, %v1474
        %v1480 = vmul.f32 %v513, %v1474
        %v1481 = vmul.f32 %v514, %v1474
        %v1482 = vmul.f32 %v515, %v1474
        %v1483 = vmul.f32 %v516, %v1474
        %v1484 = vmul.f32 %v517, %v1474
        %v1485 = vmul.f32 %v518, %v1474
        %v1486 = vmul.f32 %v519, %v1474
        %v1487 = vmul.f32 %v520, %v1474
        %v1488 = vmul.f32 %v521, %v1474
        %v1489 = vmul.f32 %v522, %v1474
        %v1490 = vmul.f32 %v523, %v1474
        %v1491 = vmul.f32 %v524, %v1474
        %v1492 = vmul.f32 %v525, %v1474
        %v1493 = vmul.f32 %v526, %v1474
        %v1494 = vmul.f32 %v527, %v1474
        %v1495 = vmul.f32 %v528, %v1474
        %v1496 = vmul.f32 %v529, %v1474
        %v1497 = vmul.f32 %v530, %v1474
        %v1498 = vmul.f32 %v531, %v1474
        %v1499 = vmul.f32 %v532, %v1474
        %v1500 = vmul.f32 %v533, %v1474
        %v1501 = vmul.f32 %v534, %v1474
        %v1502 = vmul.f32 %v535, %v1474
        %v1503 = vmul.f32 %v536, %v1474
        %v1504 = vmul.f32 %v537, %v1474
        %v1505 = vmul.f32 %v538, %v1474
        %v1506 = vmul.f32 %v539, %v1474
        %v1507 = vstv %s1456
        %v1508 = vmul.f32 %v1507, %v1475
        %v1509 = vmul.f32 %v1507, %v1476
        %v1510 = vmul.f32 %v1507, %v1477
        %v1511 = vmul.f32 %v1507, %v1478
        %v1512 = vmul.f32 %v1507, %v1479
        %v1513 = vmul.f32 %v1507, %v1480
        %v1514 = vmul.f32 %v1507, %v1481
        %v1515 = vmul.f32 %v1507, %v1482
        %v1516 = vmul.f32 %v1507, %v1483
        %v1517 = vmul.f32 %v1507, %v1484
        %v1518 = vmul.f32 %v1507, %v1485
        %v1519 = vmul.f32 %v1507, %v1486
        %v1520 = vmul.f32 %v1507, %v1487
        %v1521 = vmul.f32 %v1507, %v1488
        %v1522 = vmul.f32 %v1507, %v1489
        %v1523 = vmul.f32 %v1507, %v1490
        %v1524 = vmul.f32 %v1507, %v1491
        %v1525 = vmul.f32 %v1507, %v1492
        %v1526 = vmul.f32 %v1507, %v1493
        %v1527 = vmul.f32 %v1507, %v1494
        %v1528 = vmul.f32 %v1507, %v1495
        %v1529 = vmul.f32 %v1507, %v1496
        %v1530 = vmul.f32 %v1507, %v1497
        %v1531 = vmul.f32 %v1507, %v1498
        %v1532 = vmul.f32 %v1507, %v1499
        %v1533 = vmul.f32 %v1507, %v1500
        %v1534 = vmul.f32 %v1507, %v1501
        %v1535 = vmul.f32 %v1507, %v1502
        %v1536 = vmul.f32 %v1507, %v1503
        %v1537 = vmul.f32 %v1507, %v1504
        %v1538 = vmul.f32 %v1507, %v1505
        %v1539 = vmul.f32 %v1507, %v1506
        %1572 = vrot.lane.b32.xlu0 %v1508, 1
        %v1573 = vpop.permute.xlu0 %1572
        %1574 = vrot.lane.b32.xlu0 %v1509, 1
        %v1575 = vpop.permute.xlu0 %1574
        %1576 = vrot.lane.b32.xlu0 %v1510, 1
        %v1577 = vpop.permute.xlu0 %1576
        %1578 = vrot.lane.b32.xlu0 %v1511, 1
        %v1579 = vpop.permute.xlu0 %1578
        %1580 = vrot.lane.b32.xlu0 %v1512, 1
        %v1581 = vpop.permute.xlu0 %1580
        %1582 = vrot.lane.b32.xlu0 %v1513, 1
        %v1583 = vpop.permute.xlu0 %1582
        %1584 = vrot.lane.b32.xlu0 %v1514, 1
        %v1585 = vpop.permute.xlu0 %1584
        %1586 = vrot.lane.b32.xlu0 %v1515, 1
        %v1587 = vpop.permute.xlu0 %1586
        %1588 = vrot.lane.b32.xlu0 %v1516, 1
        %v1589 = vpop.permute.xlu0 %1588
        %1590 = vrot.lane.b32.xlu0 %v1517, 1
        %v1591 = vpop.permute.xlu0 %1590
        %1592 = vrot.lane.b32.xlu0 %v1518, 1
        %v1593 = vpop.permute.xlu0 %1592
        %1594 = vrot.lane.b32.xlu0 %v1519, 1
        %v1595 = vpop.permute.xlu0 %1594
        %1596 = vrot.lane.b32.xlu0 %v1520, 1
        %v1597 = vpop.permute.xlu0 %1596
        %1598 = vrot.lane.b32.xlu0 %v1521, 1
        %v1599 = vpop.permute.xlu0 %1598
        %1600 = vrot.lane.b32.xlu0 %v1522, 1
        %v1601 = vpop.permute.xlu0 %1600
        %1602 = vrot.lane.b32.xlu0 %v1523, 1
        %v1603 = vpop.permute.xlu0 %1602
        %1604 = vrot.lane.b32.xlu0 %v1524, 1
        %v1605 = vpop.permute.xlu0 %1604
        %1606 = vrot.lane.b32.xlu0 %v1525, 1
        %v1607 = vpop.permute.xlu0 %1606
        %1608 = vrot.lane.b32.xlu0 %v1526, 1
        %v1609 = vpop.permute.xlu0 %1608
        %1610 = vrot.lane.b32.xlu0 %v1527, 1
        %v1611 = vpop.permute.xlu0 %1610
        %1612 = vrot.lane.b32.xlu0 %v1528, 1
        %v1613 = vpop.permute.xlu0 %1612
        %1614 = vrot.lane.b32.xlu0 %v1529, 1
        %v1615 = vpop.permute.xlu0 %1614
        %1616 = vrot.lane.b32.xlu0 %v1530, 1
        %v1617 = vpop.permute.xlu0 %1616
        %1618 = vrot.lane.b32.xlu0 %v1531, 1
        %v1619 = vpop.permute.xlu0 %1618
        %1620 = vrot.lane.b32.xlu0 %v1532, 1
        %v1621 = vpop.permute.xlu0 %1620
        %1622 = vrot.lane.b32.xlu0 %v1533, 1
        %v1623 = vpop.permute.xlu0 %1622
        %1624 = vrot.lane.b32.xlu0 %v1534, 1
        %v1625 = vpop.permute.xlu0 %1624
        %1626 = vrot.lane.b32.xlu0 %v1535, 1
        %v1627 = vpop.permute.xlu0 %1626
        %1628 = vrot.lane.b32.xlu0 %v1536, 1
        %v1629 = vpop.permute.xlu0 %1628
        %1630 = vrot.lane.b32.xlu0 %v1537, 1
        %v1631 = vpop.permute.xlu0 %1630
        %1632 = vrot.lane.b32.xlu0 %v1538, 1
        %v1633 = vpop.permute.xlu0 %1632
        %1634 = vrot.lane.b32.xlu0 %v1539, 1
        %v1635 = vpop.permute.xlu0 %1634
        %v1668 = vsub.f32 %v508, %v1573
        %v1669 = vsub.f32 %v509, %v1575
        %v1670 = vsub.f32 %v510, %v1577
        %v1671 = vsub.f32 %v511, %v1579
        %v1672 = vsub.f32 %v512, %v1581
        %v1673 = vsub.f32 %v513, %v1583
        %v1674 = vsub.f32 %v514, %v1585
        %v1675 = vsub.f32 %v515, %v1587
        %v1676 = vsub.f32 %v516, %v1589
        %v1677 = vsub.f32 %v517, %v1591
        %v1678 = vsub.f32 %v518, %v1593
        %v1679 = vsub.f32 %v519, %v1595
        %v1680 = vsub.f32 %v520, %v1597
        %v1681 = vsub.f32 %v521, %v1599
        %v1682 = vsub.f32 %v522, %v1601
        %v1683 = vsub.f32 %v523, %v1603
        %v1684 = vsub.f32 %v524, %v1605
        %v1685 = vsub.f32 %v525, %v1607
        %v1686 = vsub.f32 %v526, %v1609
        %v1687 = vsub.f32 %v527, %v1611
        %v1688 = vsub.f32 %v528, %v1613
        %v1689 = vsub.f32 %v529, %v1615
        %v1690 = vsub.f32 %v530, %v1617
        %v1691 = vsub.f32 %v531, %v1619
        %v1692 = vsub.f32 %v532, %v1621
        %v1693 = vsub.f32 %v533, %v1623
        %v1694 = vsub.f32 %v534, %v1625
        %v1695 = vsub.f32 %v535, %v1627
        %v1696 = vsub.f32 %v536, %v1629
        %v1697 = vsub.f32 %v537, %v1631
        %v1698 = vsub.f32 %v538, %v1633
        %v1699 = vsub.f32 %v539, %v1635
        %1701 = vset.pattern.permute.xlu0 2
        %1702 = vperm.xlu0 %1701, %v1475
        %v1703 = vpop.permute.xlu0 %1702
        %1706 = vset.pattern.permute.xlu0 2
        %1707 = vperm.xlu0 %1706, %v1476
        %v1708 = vpop.permute.xlu0 %1707
        %1711 = vset.pattern.permute.xlu0 2
        %1712 = vperm.xlu0 %1711, %v1477
        %v1713 = vpop.permute.xlu0 %1712
        %1716 = vset.pattern.permute.xlu0 2
        %1717 = vperm.xlu0 %1716, %v1478
        %v1718 = vpop.permute.xlu0 %1717
        %1721 = vset.pattern.permute.xlu0 2
        %1722 = vperm.xlu0 %1721, %v1479
        %v1723 = vpop.permute.xlu0 %1722
        %1726 = vset.pattern.permute.xlu0 2
        %1727 = vperm.xlu0 %1726, %v1480
        %v1728 = vpop.permute.xlu0 %1727
        %1731 = vset.pattern.permute.xlu0 2
        %1732 = vperm.xlu0 %1731, %v1481
        %v1733 = vpop.permute.xlu0 %1732
        %1736 = vset.pattern.permute.xlu0 2
        %1737 = vperm.xlu0 %1736, %v1482
        %v1738 = vpop.permute.xlu0 %1737
        %1741 = vset.pattern.permute.xlu0 2
        %1742 = vperm.xlu0 %1741, %v1483
        %v1743 = vpop.permute.xlu0 %1742
        %1746 = vset.pattern.permute.xlu0 2
        %1747 = vperm.xlu0 %1746, %v1484
        %v1748 = vpop.permute.xlu0 %1747
        %1751 = vset.pattern.permute.xlu0 2
        %1752 = vperm.xlu0 %1751, %v1485
        %v1753 = vpop.permute.xlu0 %1752
        %1756 = vset.pattern.permute.xlu0 2
        %1757 = vperm.xlu0 %1756, %v1486
        %v1758 = vpop.permute.xlu0 %1757
        %1761 = vset.pattern.permute.xlu0 2
        %1762 = vperm.xlu0 %1761, %v1487
        %v1763 = vpop.permute.xlu0 %1762
        %1766 = vset.pattern.permute.xlu0 2
        %1767 = vperm.xlu0 %1766, %v1488
        %v1768 = vpop.permute.xlu0 %1767
        %1771 = vset.pattern.permute.xlu0 2
        %1772 = vperm.xlu0 %1771, %v1489
        %v1773 = vpop.permute.xlu0 %1772
        %1776 = vset.pattern.permute.xlu0 2
        %1777 = vperm.xlu0 %1776, %v1490
        %v1778 = vpop.permute.xlu0 %1777
        %1781 = vset.pattern.permute.xlu0 2
        %1782 = vperm.xlu0 %1781, %v1491
        %v1783 = vpop.permute.xlu0 %1782
        %1786 = vset.pattern.permute.xlu0 2
        %1787 = vperm.xlu0 %1786, %v1492
        %v1788 = vpop.permute.xlu0 %1787
        %1791 = vset.pattern.permute.xlu0 2
        %1792 = vperm.xlu0 %1791, %v1493
        %v1793 = vpop.permute.xlu0 %1792
        %1796 = vset.pattern.permute.xlu0 2
        %1797 = vperm.xlu0 %1796, %v1494
        %v1798 = vpop.permute.xlu0 %1797
        %1801 = vset.pattern.permute.xlu0 2
        %1802 = vperm.xlu0 %1801, %v1495
        %v1803 = vpop.permute.xlu0 %1802
        %1806 = vset.pattern.permute.xlu0 2
        %1807 = vperm.xlu0 %1806, %v1496
        %v1808 = vpop.permute.xlu0 %1807
        %1811 = vset.pattern.permute.xlu0 2
        %1812 = vperm.xlu0 %1811, %v1497
        %v1813 = vpop.permute.xlu0 %1812
        %1816 = vset.pattern.permute.xlu0 2
        %1817 = vperm.xlu0 %1816, %v1498
        %v1818 = vpop.permute.xlu0 %1817
        %1821 = vset.pattern.permute.xlu0 2
        %1822 = vperm.xlu0 %1821, %v1499
        %v1823 = vpop.permute.xlu0 %1822
        %1826 = vset.pattern.permute.xlu0 2
        %1827 = vperm.xlu0 %1826, %v1500
        %v1828 = vpop.permute.xlu0 %1827
        %1831 = vset.pattern.permute.xlu0 2
        %1832 = vperm.xlu0 %1831, %v1501
        %v1833 = vpop.permute.xlu0 %1832
        %1836 = vset.pattern.permute.xlu0 2
        %1837 = vperm.xlu0 %1836, %v1502
        %v1838 = vpop.permute.xlu0 %1837
        %1841 = vset.pattern.permute.xlu0 2
        %1842 = vperm.xlu0 %1841, %v1503
        %v1843 = vpop.permute.xlu0 %1842
        %1846 = vset.pattern.permute.xlu0 2
        %1847 = vperm.xlu0 %1846, %v1504
        %v1848 = vpop.permute.xlu0 %1847
        %1851 = vset.pattern.permute.xlu0 2
        %1852 = vperm.xlu0 %1851, %v1505
        %v1853 = vpop.permute.xlu0 %1852
        %1856 = vset.pattern.permute.xlu0 2
        %1857 = vperm.xlu0 %1856, %v1506
        %v1858 = vpop.permute.xlu0 %1857
        %v1860 = vmul.f32 %v1184, %v1703
        %v1861 = vmul.f32 %v1185, %v1703
        %v1862 = vmul.f32 %v1186, %v1708
        %v1863 = vmul.f32 %v1187, %v1708
        %v1864 = vmul.f32 %v1188, %v1713
        %v1865 = vmul.f32 %v1189, %v1713
        %v1866 = vmul.f32 %v1190, %v1718
        %v1867 = vmul.f32 %v1191, %v1718
        %v1868 = vmul.f32 %v1192, %v1723
        %v1869 = vmul.f32 %v1193, %v1723
        %v1870 = vmul.f32 %v1194, %v1728
        %v1871 = vmul.f32 %v1195, %v1728
        %v1872 = vmul.f32 %v1196, %v1733
        %v1873 = vmul.f32 %v1197, %v1733
        %v1874 = vmul.f32 %v1198, %v1738
        %v1875 = vmul.f32 %v1199, %v1738
        %v1876 = vmul.f32 %v1200, %v1743
        %v1877 = vmul.f32 %v1201, %v1743
        %v1878 = vmul.f32 %v1202, %v1748
        %v1879 = vmul.f32 %v1203, %v1748
        %v1880 = vmul.f32 %v1204, %v1753
        %v1881 = vmul.f32 %v1205, %v1753
        %v1882 = vmul.f32 %v1206, %v1758
        %v1883 = vmul.f32 %v1207, %v1758
        %v1884 = vmul.f32 %v1208, %v1763
        %v1885 = vmul.f32 %v1209, %v1763
        %v1886 = vmul.f32 %v1210, %v1768
        %v1887 = vmul.f32 %v1211, %v1768
        %v1888 = vmul.f32 %v1212, %v1773
        %v1889 = vmul.f32 %v1213, %v1773
        %v1890 = vmul.f32 %v1214, %v1778
        %v1891 = vmul.f32 %v1215, %v1778
        %v1892 = vmul.f32 %v1216, %v1783
        %v1893 = vmul.f32 %v1217, %v1783
        %v1894 = vmul.f32 %v1218, %v1788
        %v1895 = vmul.f32 %v1219, %v1788
        %v1896 = vmul.f32 %v1220, %v1793
        %v1897 = vmul.f32 %v1221, %v1793
        %v1898 = vmul.f32 %v1222, %v1798
        %v1899 = vmul.f32 %v1223, %v1798
        %v1900 = vmul.f32 %v1224, %v1803
        %v1901 = vmul.f32 %v1225, %v1803
        %v1902 = vmul.f32 %v1226, %v1808
        %v1903 = vmul.f32 %v1227, %v1808
        %v1904 = vmul.f32 %v1228, %v1813
        %v1905 = vmul.f32 %v1229, %v1813
        %v1906 = vmul.f32 %v1230, %v1818
        %v1907 = vmul.f32 %v1231, %v1818
        %v1908 = vmul.f32 %v1232, %v1823
        %v1909 = vmul.f32 %v1233, %v1823
        %v1910 = vmul.f32 %v1234, %v1828
        %v1911 = vmul.f32 %v1235, %v1828
        %v1912 = vmul.f32 %v1236, %v1833
        %v1913 = vmul.f32 %v1237, %v1833
        %v1914 = vmul.f32 %v1238, %v1838
        %v1915 = vmul.f32 %v1239, %v1838
        %v1916 = vmul.f32 %v1240, %v1843
        %v1917 = vmul.f32 %v1241, %v1843
        %v1918 = vmul.f32 %v1242, %v1848
        %v1919 = vmul.f32 %v1243, %v1848
        %v1920 = vmul.f32 %v1244, %v1853
        %v1921 = vmul.f32 %v1245, %v1853
        %v1922 = vmul.f32 %v1246, %v1858
        %v1923 = vmul.f32 %v1247, %v1858
        %1925 = vset.pattern.permute.xlu0 3
        %1926 = vperm.xlu0 %1925, %v1668
        %v1927 = vpop.permute.xlu0 %1926
        %1930 = vset.pattern.permute.xlu0 3
        %1931 = vperm.xlu0 %1930, %v1669
        %v1932 = vpop.permute.xlu0 %1931
        %1935 = vset.pattern.permute.xlu0 3
        %1936 = vperm.xlu0 %1935, %v1670
        %v1937 = vpop.permute.xlu0 %1936
        %1940 = vset.pattern.permute.xlu0 3
        %1941 = vperm.xlu0 %1940, %v1671
        %v1942 = vpop.permute.xlu0 %1941
        %1945 = vset.pattern.permute.xlu0 3
        %1946 = vperm.xlu0 %1945, %v1672
        %v1947 = vpop.permute.xlu0 %1946
        %1950 = vset.pattern.permute.xlu0 3
        %1951 = vperm.xlu0 %1950, %v1673
        %v1952 = vpop.permute.xlu0 %1951
        %1955 = vset.pattern.permute.xlu0 3
        %1956 = vperm.xlu0 %1955, %v1674
        %v1957 = vpop.permute.xlu0 %1956
        %1960 = vset.pattern.permute.xlu0 3
        %1961 = vperm.xlu0 %1960, %v1675
        %v1962 = vpop.permute.xlu0 %1961
        %1965 = vset.pattern.permute.xlu0 3
        %1966 = vperm.xlu0 %1965, %v1676
        %v1967 = vpop.permute.xlu0 %1966
        %1970 = vset.pattern.permute.xlu0 3
        %1971 = vperm.xlu0 %1970, %v1677
        %v1972 = vpop.permute.xlu0 %1971
        %1975 = vset.pattern.permute.xlu0 3
        %1976 = vperm.xlu0 %1975, %v1678
        %v1977 = vpop.permute.xlu0 %1976
        %1980 = vset.pattern.permute.xlu0 3
        %1981 = vperm.xlu0 %1980, %v1679
        %v1982 = vpop.permute.xlu0 %1981
        %1985 = vset.pattern.permute.xlu0 3
        %1986 = vperm.xlu0 %1985, %v1680
        %v1987 = vpop.permute.xlu0 %1986
        %1990 = vset.pattern.permute.xlu0 3
        %1991 = vperm.xlu0 %1990, %v1681
        %v1992 = vpop.permute.xlu0 %1991
        %1995 = vset.pattern.permute.xlu0 3
        %1996 = vperm.xlu0 %1995, %v1682
        %v1997 = vpop.permute.xlu0 %1996
        %2000 = vset.pattern.permute.xlu0 3
        %2001 = vperm.xlu0 %2000, %v1683
        %v2002 = vpop.permute.xlu0 %2001
        %2005 = vset.pattern.permute.xlu0 3
        %2006 = vperm.xlu0 %2005, %v1684
        %v2007 = vpop.permute.xlu0 %2006
        %2010 = vset.pattern.permute.xlu0 3
        %2011 = vperm.xlu0 %2010, %v1685
        %v2012 = vpop.permute.xlu0 %2011
        %2015 = vset.pattern.permute.xlu0 3
        %2016 = vperm.xlu0 %2015, %v1686
        %v2017 = vpop.permute.xlu0 %2016
        %2020 = vset.pattern.permute.xlu0 3
        %2021 = vperm.xlu0 %2020, %v1687
        %v2022 = vpop.permute.xlu0 %2021
        %2025 = vset.pattern.permute.xlu0 3
        %2026 = vperm.xlu0 %2025, %v1688
        %v2027 = vpop.permute.xlu0 %2026
        %2030 = vset.pattern.permute.xlu0 3
        %2031 = vperm.xlu0 %2030, %v1689
        %v2032 = vpop.permute.xlu0 %2031
        %2035 = vset.pattern.permute.xlu0 3
        %2036 = vperm.xlu0 %2035, %v1690
        %v2037 = vpop.permute.xlu0 %2036
        %2040 = vset.pattern.permute.xlu0 3
        %2041 = vperm.xlu0 %2040, %v1691
        %v2042 = vpop.permute.xlu0 %2041
        %2045 = vset.pattern.permute.xlu0 3
        %2046 = vperm.xlu0 %2045, %v1692
        %v2047 = vpop.permute.xlu0 %2046
        %2050 = vset.pattern.permute.xlu0 3
        %2051 = vperm.xlu0 %2050, %v1693
        %v2052 = vpop.permute.xlu0 %2051
        %2055 = vset.pattern.permute.xlu0 3
        %2056 = vperm.xlu0 %2055, %v1694
        %v2057 = vpop.permute.xlu0 %2056
        %2060 = vset.pattern.permute.xlu0 3
        %2061 = vperm.xlu0 %2060, %v1695
        %v2062 = vpop.permute.xlu0 %2061
        %2065 = vset.pattern.permute.xlu0 3
        %2066 = vperm.xlu0 %2065, %v1696
        %v2067 = vpop.permute.xlu0 %2066
        %2070 = vset.pattern.permute.xlu0 3
        %2071 = vperm.xlu0 %2070, %v1697
        %v2072 = vpop.permute.xlu0 %2071
        %2075 = vset.pattern.permute.xlu0 3
        %2076 = vperm.xlu0 %2075, %v1698
        %v2077 = vpop.permute.xlu0 %2076
        %2080 = vset.pattern.permute.xlu0 3
        %2081 = vperm.xlu0 %2080, %v1699
        %v2082 = vpop.permute.xlu0 %2081
        %v2084 = vadd.f32 %v1860, %v1927
        %v2085 = vadd.f32 %v1861, %v1927
        %v2086 = vadd.f32 %v1862, %v1932
        %v2087 = vadd.f32 %v1863, %v1932
        %v2088 = vadd.f32 %v1864, %v1937
        %v2089 = vadd.f32 %v1865, %v1937
        %v2090 = vadd.f32 %v1866, %v1942
        %v2091 = vadd.f32 %v1867, %v1942
        %v2092 = vadd.f32 %v1868, %v1947
        %v2093 = vadd.f32 %v1869, %v1947
        %v2094 = vadd.f32 %v1870, %v1952
        %v2095 = vadd.f32 %v1871, %v1952
        %v2096 = vadd.f32 %v1872, %v1957
        %v2097 = vadd.f32 %v1873, %v1957
        %v2098 = vadd.f32 %v1874, %v1962
        %v2099 = vadd.f32 %v1875, %v1962
        %v2100 = vadd.f32 %v1876, %v1967
        %v2101 = vadd.f32 %v1877, %v1967
        %v2102 = vadd.f32 %v1878, %v1972
        %v2103 = vadd.f32 %v1879, %v1972
        %v2104 = vadd.f32 %v1880, %v1977
        %v2105 = vadd.f32 %v1881, %v1977
        %v2106 = vadd.f32 %v1882, %v1982
        %v2107 = vadd.f32 %v1883, %v1982
        %v2108 = vadd.f32 %v1884, %v1987
        %v2109 = vadd.f32 %v1885, %v1987
        %v2110 = vadd.f32 %v1886, %v1992
        %v2111 = vadd.f32 %v1887, %v1992
        %v2112 = vadd.f32 %v1888, %v1997
        %v2113 = vadd.f32 %v1889, %v1997
        %v2114 = vadd.f32 %v1890, %v2002
        %v2115 = vadd.f32 %v1891, %v2002
        %v2116 = vadd.f32 %v1892, %v2007
        %v2117 = vadd.f32 %v1893, %v2007
        %v2118 = vadd.f32 %v1894, %v2012
        %v2119 = vadd.f32 %v1895, %v2012
        %v2120 = vadd.f32 %v1896, %v2017
        %v2121 = vadd.f32 %v1897, %v2017
        %v2122 = vadd.f32 %v1898, %v2022
        %v2123 = vadd.f32 %v1899, %v2022
        %v2124 = vadd.f32 %v1900, %v2027
        %v2125 = vadd.f32 %v1901, %v2027
        %v2126 = vadd.f32 %v1902, %v2032
        %v2127 = vadd.f32 %v1903, %v2032
        %v2128 = vadd.f32 %v1904, %v2037
        %v2129 = vadd.f32 %v1905, %v2037
        %v2130 = vadd.f32 %v1906, %v2042
        %v2131 = vadd.f32 %v1907, %v2042
        %v2132 = vadd.f32 %v1908, %v2047
        %v2133 = vadd.f32 %v1909, %v2047
        %v2134 = vadd.f32 %v1910, %v2052
        %v2135 = vadd.f32 %v1911, %v2052
        %v2136 = vadd.f32 %v1912, %v2057
        %v2137 = vadd.f32 %v1913, %v2057
        %v2138 = vadd.f32 %v1914, %v2062
        %v2139 = vadd.f32 %v1915, %v2062
        %v2140 = vadd.f32 %v1916, %v2067
        %v2141 = vadd.f32 %v1917, %v2067
        %v2142 = vadd.f32 %v1918, %v2072
        %v2143 = vadd.f32 %v1919, %v2072
        %v2144 = vadd.f32 %v1920, %v2077
        %v2145 = vadd.f32 %v1921, %v2077
        %v2146 = vadd.f32 %v1922, %v2082
        %v2147 = vadd.f32 %v1923, %v2082
        %2212 = vrot.lane.b32.xlu0 %v2084, 1
        %v2213 = vpop.permute.xlu0 %2212
        %2214 = vrot.lane.b32.xlu0 %v2085, 1
        %v2215 = vpop.permute.xlu0 %2214
        %2216 = vrot.lane.b32.xlu0 %v2086, 1
        %v2217 = vpop.permute.xlu0 %2216
        %2218 = vrot.lane.b32.xlu0 %v2087, 1
        %v2219 = vpop.permute.xlu0 %2218
        %2220 = vrot.lane.b32.xlu0 %v2088, 1
        %v2221 = vpop.permute.xlu0 %2220
        %2222 = vrot.lane.b32.xlu0 %v2089, 1
        %v2223 = vpop.permute.xlu0 %2222
        %2224 = vrot.lane.b32.xlu0 %v2090, 1
        %v2225 = vpop.permute.xlu0 %2224
        %2226 = vrot.lane.b32.xlu0 %v2091, 1
        %v2227 = vpop.permute.xlu0 %2226
        %2228 = vrot.lane.b32.xlu0 %v2092, 1
        %v2229 = vpop.permute.xlu0 %2228
        %2230 = vrot.lane.b32.xlu0 %v2093, 1
        %v2231 = vpop.permute.xlu0 %2230
        %2232 = vrot.lane.b32.xlu0 %v2094, 1
        %v2233 = vpop.permute.xlu0 %2232
        %2234 = vrot.lane.b32.xlu0 %v2095, 1
        %v2235 = vpop.permute.xlu0 %2234
        %2236 = vrot.lane.b32.xlu0 %v2096, 1
        %v2237 = vpop.permute.xlu0 %2236
        %2238 = vrot.lane.b32.xlu0 %v2097, 1
        %v2239 = vpop.permute.xlu0 %2238
        %2240 = vrot.lane.b32.xlu0 %v2098, 1
        %v2241 = vpop.permute.xlu0 %2240
        %2242 = vrot.lane.b32.xlu0 %v2099, 1
        %v2243 = vpop.permute.xlu0 %2242
        %2244 = vrot.lane.b32.xlu0 %v2100, 1
        %v2245 = vpop.permute.xlu0 %2244
        %2246 = vrot.lane.b32.xlu0 %v2101, 1
        %v2247 = vpop.permute.xlu0 %2246
        %2248 = vrot.lane.b32.xlu0 %v2102, 1
        %v2249 = vpop.permute.xlu0 %2248
        %2250 = vrot.lane.b32.xlu0 %v2103, 1
        %v2251 = vpop.permute.xlu0 %2250
        %2252 = vrot.lane.b32.xlu0 %v2104, 1
        %v2253 = vpop.permute.xlu0 %2252
        %2254 = vrot.lane.b32.xlu0 %v2105, 1
        %v2255 = vpop.permute.xlu0 %2254
        %2256 = vrot.lane.b32.xlu0 %v2106, 1
        %v2257 = vpop.permute.xlu0 %2256
        %2258 = vrot.lane.b32.xlu0 %v2107, 1
        %v2259 = vpop.permute.xlu0 %2258
        %2260 = vrot.lane.b32.xlu0 %v2108, 1
        %v2261 = vpop.permute.xlu0 %2260
        %2262 = vrot.lane.b32.xlu0 %v2109, 1
        %v2263 = vpop.permute.xlu0 %2262
        %2264 = vrot.lane.b32.xlu0 %v2110, 1
        %v2265 = vpop.permute.xlu0 %2264
        %2266 = vrot.lane.b32.xlu0 %v2111, 1
        %v2267 = vpop.permute.xlu0 %2266
        %2268 = vrot.lane.b32.xlu0 %v2112, 1
        %v2269 = vpop.permute.xlu0 %2268
        %2270 = vrot.lane.b32.xlu0 %v2113, 1
        %v2271 = vpop.permute.xlu0 %2270
        %2272 = vrot.lane.b32.xlu0 %v2114, 1
        %v2273 = vpop.permute.xlu0 %2272
        %2274 = vrot.lane.b32.xlu0 %v2115, 1
        %v2275 = vpop.permute.xlu0 %2274
        %2276 = vrot.lane.b32.xlu0 %v2116, 1
        %v2277 = vpop.permute.xlu0 %2276
        %2278 = vrot.lane.b32.xlu0 %v2117, 1
        %v2279 = vpop.permute.xlu0 %2278
        %2280 = vrot.lane.b32.xlu0 %v2118, 1
        %v2281 = vpop.permute.xlu0 %2280
        %2282 = vrot.lane.b32.xlu0 %v2119, 1
        %v2283 = vpop.permute.xlu0 %2282
        %2284 = vrot.lane.b32.xlu0 %v2120, 1
        %v2285 = vpop.permute.xlu0 %2284
        %2286 = vrot.lane.b32.xlu0 %v2121, 1
        %v2287 = vpop.permute.xlu0 %2286
        %2288 = vrot.lane.b32.xlu0 %v2122, 1
        %v2289 = vpop.permute.xlu0 %2288
        %2290 = vrot.lane.b32.xlu0 %v2123, 1
        %v2291 = vpop.permute.xlu0 %2290
        %2292 = vrot.lane.b32.xlu0 %v2124, 1
        %v2293 = vpop.permute.xlu0 %2292
        %2294 = vrot.lane.b32.xlu0 %v2125, 1
        %v2295 = vpop.permute.xlu0 %2294
        %2296 = vrot.lane.b32.xlu0 %v2126, 1
        %v2297 = vpop.permute.xlu0 %2296
        %2298 = vrot.lane.b32.xlu0 %v2127, 1
        %v2299 = vpop.permute.xlu0 %2298
        %2300 = vrot.lane.b32.xlu0 %v2128, 1
        %v2301 = vpop.permute.xlu0 %2300
        %2302 = vrot.lane.b32.xlu0 %v2129, 1
        %v2303 = vpop.permute.xlu0 %2302
        %2304 = vrot.lane.b32.xlu0 %v2130, 1
        %v2305 = vpop.permute.xlu0 %2304
        %2306 = vrot.lane.b32.xlu0 %v2131, 1
        %v2307 = vpop.permute.xlu0 %2306
        %2308 = vrot.lane.b32.xlu0 %v2132, 1
        %v2309 = vpop.permute.xlu0 %2308
        %2310 = vrot.lane.b32.xlu0 %v2133, 1
        %v2311 = vpop.permute.xlu0 %2310
        %2312 = vrot.lane.b32.xlu0 %v2134, 1
        %v2313 = vpop.permute.xlu0 %2312
        %2314 = vrot.lane.b32.xlu0 %v2135, 1
        %v2315 = vpop.permute.xlu0 %2314
        %2316 = vrot.lane.b32.xlu0 %v2136, 1
        %v2317 = vpop.permute.xlu0 %2316
        %2318 = vrot.lane.b32.xlu0 %v2137, 1
        %v2319 = vpop.permute.xlu0 %2318
        %2320 = vrot.lane.b32.xlu0 %v2138, 1
        %v2321 = vpop.permute.xlu0 %2320
        %2322 = vrot.lane.b32.xlu0 %v2139, 1
        %v2323 = vpop.permute.xlu0 %2322
        %2324 = vrot.lane.b32.xlu0 %v2140, 1
        %v2325 = vpop.permute.xlu0 %2324
        %2326 = vrot.lane.b32.xlu0 %v2141, 1
        %v2327 = vpop.permute.xlu0 %2326
        %2328 = vrot.lane.b32.xlu0 %v2142, 1
        %v2329 = vpop.permute.xlu0 %2328
        %2330 = vrot.lane.b32.xlu0 %v2143, 1
        %v2331 = vpop.permute.xlu0 %2330
        %2332 = vrot.lane.b32.xlu0 %v2144, 1
        %v2333 = vpop.permute.xlu0 %2332
        %2334 = vrot.lane.b32.xlu0 %v2145, 1
        %v2335 = vpop.permute.xlu0 %2334
        %2336 = vrot.lane.b32.xlu0 %v2146, 1
        %v2337 = vpop.permute.xlu0 %2336
        %2338 = vrot.lane.b32.xlu0 %v2147, 1
        %v2339 = vpop.permute.xlu0 %2338
        %vm2340 = vcmask 7168
        %v2341 = vsel %vm2340, %v2213, %v2215
        %v2342 = vsel %vm2340, %v2217, %v2219
        %v2343 = vsel %vm2340, %v2221, %v2223
        %v2344 = vsel %vm2340, %v2225, %v2227
        %v2345 = vsel %vm2340, %v2229, %v2231
        %v2346 = vsel %vm2340, %v2233, %v2235
        %v2347 = vsel %vm2340, %v2237, %v2239
        %v2348 = vsel %vm2340, %v2241, %v2243
        %v2349 = vsel %vm2340, %v2245, %v2247
        %v2350 = vsel %vm2340, %v2249, %v2251
        %v2351 = vsel %vm2340, %v2253, %v2255
        %v2352 = vsel %vm2340, %v2257, %v2259
        %v2353 = vsel %vm2340, %v2261, %v2263
        %v2354 = vsel %vm2340, %v2265, %v2267
        %v2355 = vsel %vm2340, %v2269, %v2271
        %v2356 = vsel %vm2340, %v2273, %v2275
        %v2357 = vsel %vm2340, %v2277, %v2279
        %v2358 = vsel %vm2340, %v2281, %v2283
        %v2359 = vsel %vm2340, %v2285, %v2287
        %v2360 = vsel %vm2340, %v2289, %v2291
        %v2361 = vsel %vm2340, %v2293, %v2295
        %v2362 = vsel %vm2340, %v2297, %v2299
        %v2363 = vsel %vm2340, %v2301, %v2303
        %v2364 = vsel %vm2340, %v2305, %v2307
        %v2365 = vsel %vm2340, %v2309, %v2311
        %v2366 = vsel %vm2340, %v2313, %v2315
        %v2367 = vsel %vm2340, %v2317, %v2319
        %v2368 = vsel %vm2340, %v2321, %v2323
        %v2369 = vsel %vm2340, %v2325, %v2327
        %v2370 = vsel %vm2340, %v2329, %v2331
        %v2371 = vsel %vm2340, %v2333, %v2335
        %v2372 = vsel %vm2340, %v2337, %v2339
        %v2437 = vsel %vm2340, 0.0, %v2213
        %v2438 = vsel %vm2340, 0.0, %v2217
        %v2439 = vsel %vm2340, 0.0, %v2221
        %v2440 = vsel %vm2340, 0.0, %v2225
        %v2441 = vsel %vm2340, 0.0, %v2229
        %v2442 = vsel %vm2340, 0.0, %v2233
        %v2443 = vsel %vm2340, 0.0, %v2237
        %v2444 = vsel %vm2340, 0.0, %v2241
        %v2445 = vsel %vm2340, 0.0, %v2245
        %v2446 = vsel %vm2340, 0.0, %v2249
        %v2447 = vsel %vm2340, 0.0, %v2253
        %v2448 = vsel %vm2340, 0.0, %v2257
        %v2449 = vsel %vm2340, 0.0, %v2261
        %v2450 = vsel %vm2340, 0.0, %v2265
        %v2451 = vsel %vm2340, 0.0, %v2269
        %v2452 = vsel %vm2340, 0.0, %v2273
        %v2453 = vsel %vm2340, 0.0, %v2277
        %v2454 = vsel %vm2340, 0.0, %v2281
        %v2455 = vsel %vm2340, 0.0, %v2285
        %v2456 = vsel %vm2340, 0.0, %v2289
        %v2457 = vsel %vm2340, 0.0, %v2293
        %v2458 = vsel %vm2340, 0.0, %v2297
        %v2459 = vsel %vm2340, 0.0, %v2301
        %v2460 = vsel %vm2340, 0.0, %v2305
        %v2461 = vsel %vm2340, 0.0, %v2309
        %v2462 = vsel %vm2340, 0.0, %v2313
        %v2463 = vsel %vm2340, 0.0, %v2317
        %v2464 = vsel %vm2340, 0.0, %v2321
        %v2465 = vsel %vm2340, 0.0, %v2325
        %v2466 = vsel %vm2340, 0.0, %v2329
        %v2467 = vsel %vm2340, 0.0, %v2333
        %v2468 = vsel %vm2340, 0.0, %v2337
        %2469 = vrot.lane.b32.xlu0 %v2084, 127
        %v2470 = vpop.permute.xlu0 %2469
        %2471 = vrot.lane.b32.xlu0 %v2085, 127
        %v2472 = vpop.permute.xlu0 %2471
        %2473 = vrot.lane.b32.xlu0 %v2086, 127
        %v2474 = vpop.permute.xlu0 %2473
        %2475 = vrot.lane.b32.xlu0 %v2087, 127
        %v2476 = vpop.permute.xlu0 %2475
        %2477 = vrot.lane.b32.xlu0 %v2088, 127
        %v2478 = vpop.permute.xlu0 %2477
        %2479 = vrot.lane.b32.xlu0 %v2089, 127
        %v2480 = vpop.permute.xlu0 %2479
        %2481 = vrot.lane.b32.xlu0 %v2090, 127
        %v2482 = vpop.permute.xlu0 %2481
        %2483 = vrot.lane.b32.xlu0 %v2091, 127
        %v2484 = vpop.permute.xlu0 %2483
        %2485 = vrot.lane.b32.xlu0 %v2092, 127
        %v2486 = vpop.permute.xlu0 %2485
        %2487 = vrot.lane.b32.xlu0 %v2093, 127
        %v2488 = vpop.permute.xlu0 %2487
        %2489 = vrot.lane.b32.xlu0 %v2094, 127
        %v2490 = vpop.permute.xlu0 %2489
        %2491 = vrot.lane.b32.xlu0 %v2095, 127
        %v2492 = vpop.permute.xlu0 %2491
        %2493 = vrot.lane.b32.xlu0 %v2096, 127
        %v2494 = vpop.permute.xlu0 %2493
        %2495 = vrot.lane.b32.xlu0 %v2097, 127
        %v2496 = vpop.permute.xlu0 %2495
        %2497 = vrot.lane.b32.xlu0 %v2098, 127
        %v2498 = vpop.permute.xlu0 %2497
        %2499 = vrot.lane.b32.xlu0 %v2099, 127
        %v2500 = vpop.permute.xlu0 %2499
        %2501 = vrot.lane.b32.xlu0 %v2100, 127
        %v2502 = vpop.permute.xlu0 %2501
        %2503 = vrot.lane.b32.xlu0 %v2101, 127
        %v2504 = vpop.permute.xlu0 %2503
        %2505 = vrot.lane.b32.xlu0 %v2102, 127
        %v2506 = vpop.permute.xlu0 %2505
        %2507 = vrot.lane.b32.xlu0 %v2103, 127
        %v2508 = vpop.permute.xlu0 %2507
        %2509 = vrot.lane.b32.xlu0 %v2104, 127
        %v2510 = vpop.permute.xlu0 %2509
        %2511 = vrot.lane.b32.xlu0 %v2105, 127
        %v2512 = vpop.permute.xlu0 %2511
        %2513 = vrot.lane.b32.xlu0 %v2106, 127
        %v2514 = vpop.permute.xlu0 %2513
        %2515 = vrot.lane.b32.xlu0 %v2107, 127
        %v2516 = vpop.permute.xlu0 %2515
        %2517 = vrot.lane.b32.xlu0 %v2108, 127
        %v2518 = vpop.permute.xlu0 %2517
        %2519 = vrot.lane.b32.xlu0 %v2109, 127
        %v2520 = vpop.permute.xlu0 %2519
        %2521 = vrot.lane.b32.xlu0 %v2110, 127
        %v2522 = vpop.permute.xlu0 %2521
        %2523 = vrot.lane.b32.xlu0 %v2111, 127
        %v2524 = vpop.permute.xlu0 %2523
        %2525 = vrot.lane.b32.xlu0 %v2112, 127
        %v2526 = vpop.permute.xlu0 %2525
        %2527 = vrot.lane.b32.xlu0 %v2113, 127
        %v2528 = vpop.permute.xlu0 %2527
        %2529 = vrot.lane.b32.xlu0 %v2114, 127
        %v2530 = vpop.permute.xlu0 %2529
        %2531 = vrot.lane.b32.xlu0 %v2115, 127
        %v2532 = vpop.permute.xlu0 %2531
        %2533 = vrot.lane.b32.xlu0 %v2116, 127
        %v2534 = vpop.permute.xlu0 %2533
        %2535 = vrot.lane.b32.xlu0 %v2117, 127
        %v2536 = vpop.permute.xlu0 %2535
        %2537 = vrot.lane.b32.xlu0 %v2118, 127
        %v2538 = vpop.permute.xlu0 %2537
        %2539 = vrot.lane.b32.xlu0 %v2119, 127
        %v2540 = vpop.permute.xlu0 %2539
        %2541 = vrot.lane.b32.xlu0 %v2120, 127
        %v2542 = vpop.permute.xlu0 %2541
        %2543 = vrot.lane.b32.xlu0 %v2121, 127
        %v2544 = vpop.permute.xlu0 %2543
        %2545 = vrot.lane.b32.xlu0 %v2122, 127
        %v2546 = vpop.permute.xlu0 %2545
        %2547 = vrot.lane.b32.xlu0 %v2123, 127
        %v2548 = vpop.permute.xlu0 %2547
        %2549 = vrot.lane.b32.xlu0 %v2124, 127
        %v2550 = vpop.permute.xlu0 %2549
        %2551 = vrot.lane.b32.xlu0 %v2125, 127
        %v2552 = vpop.permute.xlu0 %2551
        %2553 = vrot.lane.b32.xlu0 %v2126, 127
        %v2554 = vpop.permute.xlu0 %2553
        %2555 = vrot.lane.b32.xlu0 %v2127, 127
        %v2556 = vpop.permute.xlu0 %2555
        %2557 = vrot.lane.b32.xlu0 %v2128, 127
        %v2558 = vpop.permute.xlu0 %2557
        %2559 = vrot.lane.b32.xlu0 %v2129, 127
        %v2560 = vpop.permute.xlu0 %2559
        %2561 = vrot.lane.b32.xlu0 %v2130, 127
        %v2562 = vpop.permute.xlu0 %2561
        %2563 = vrot.lane.b32.xlu0 %v2131, 127
        %v2564 = vpop.permute.xlu0 %2563
        %2565 = vrot.lane.b32.xlu0 %v2132, 127
        %v2566 = vpop.permute.xlu0 %2565
        %2567 = vrot.lane.b32.xlu0 %v2133, 127
        %v2568 = vpop.permute.xlu0 %2567
        %2569 = vrot.lane.b32.xlu0 %v2134, 127
        %v2570 = vpop.permute.xlu0 %2569
        %2571 = vrot.lane.b32.xlu0 %v2135, 127
        %v2572 = vpop.permute.xlu0 %2571
        %2573 = vrot.lane.b32.xlu0 %v2136, 127
        %v2574 = vpop.permute.xlu0 %2573
        %2575 = vrot.lane.b32.xlu0 %v2137, 127
        %v2576 = vpop.permute.xlu0 %2575
        %2577 = vrot.lane.b32.xlu0 %v2138, 127
        %v2578 = vpop.permute.xlu0 %2577
        %2579 = vrot.lane.b32.xlu0 %v2139, 127
        %v2580 = vpop.permute.xlu0 %2579
        %2581 = vrot.lane.b32.xlu0 %v2140, 127
        %v2582 = vpop.permute.xlu0 %2581
        %2583 = vrot.lane.b32.xlu0 %v2141, 127
        %v2584 = vpop.permute.xlu0 %2583
        %2585 = vrot.lane.b32.xlu0 %v2142, 127
        %v2586 = vpop.permute.xlu0 %2585
        %2587 = vrot.lane.b32.xlu0 %v2143, 127
        %v2588 = vpop.permute.xlu0 %2587
        %2589 = vrot.lane.b32.xlu0 %v2144, 127
        %v2590 = vpop.permute.xlu0 %2589
        %2591 = vrot.lane.b32.xlu0 %v2145, 127
        %v2592 = vpop.permute.xlu0 %2591
        %2593 = vrot.lane.b32.xlu0 %v2146, 127
        %v2594 = vpop.permute.xlu0 %2593
        %2595 = vrot.lane.b32.xlu0 %v2147, 127
        %v2596 = vpop.permute.xlu0 %2595
        %vm2597 = vcmask 1039360
        %v2598 = vsel %vm2597, %v2470, %v2472
        %v2599 = vsel %vm2597, %v2474, %v2476
        %v2600 = vsel %vm2597, %v2478, %v2480
        %v2601 = vsel %vm2597, %v2482, %v2484
        %v2602 = vsel %vm2597, %v2486, %v2488
        %v2603 = vsel %vm2597, %v2490, %v2492
        %v2604 = vsel %vm2597, %v2494, %v2496
        %v2605 = vsel %vm2597, %v2498, %v2500
        %v2606 = vsel %vm2597, %v2502, %v2504
        %v2607 = vsel %vm2597, %v2506, %v2508
        %v2608 = vsel %vm2597, %v2510, %v2512
        %v2609 = vsel %vm2597, %v2514, %v2516
        %v2610 = vsel %vm2597, %v2518, %v2520
        %v2611 = vsel %vm2597, %v2522, %v2524
        %v2612 = vsel %vm2597, %v2526, %v2528
        %v2613 = vsel %vm2597, %v2530, %v2532
        %v2614 = vsel %vm2597, %v2534, %v2536
        %v2615 = vsel %vm2597, %v2538, %v2540
        %v2616 = vsel %vm2597, %v2542, %v2544
        %v2617 = vsel %vm2597, %v2546, %v2548
        %v2618 = vsel %vm2597, %v2550, %v2552
        %v2619 = vsel %vm2597, %v2554, %v2556
        %v2620 = vsel %vm2597, %v2558, %v2560
        %v2621 = vsel %vm2597, %v2562, %v2564
        %v2622 = vsel %vm2597, %v2566, %v2568
        %v2623 = vsel %vm2597, %v2570, %v2572
        %v2624 = vsel %vm2597, %v2574, %v2576
        %v2625 = vsel %vm2597, %v2578, %v2580
        %v2626 = vsel %vm2597, %v2582, %v2584
        %v2627 = vsel %vm2597, %v2586, %v2588
        %v2628 = vsel %vm2597, %v2590, %v2592
        %v2629 = vsel %vm2597, %v2594, %v2596
        %v2694 = vsel %vm2597, %v2472, 0.0
        %v2695 = vsel %vm2597, %v2476, 0.0
        %v2696 = vsel %vm2597, %v2480, 0.0
        %v2697 = vsel %vm2597, %v2484, 0.0
        %v2698 = vsel %vm2597, %v2488, 0.0
        %v2699 = vsel %vm2597, %v2492, 0.0
        %v2700 = vsel %vm2597, %v2496, 0.0
        %v2701 = vsel %vm2597, %v2500, 0.0
        %v2702 = vsel %vm2597, %v2504, 0.0
        %v2703 = vsel %vm2597, %v2508, 0.0
        %v2704 = vsel %vm2597, %v2512, 0.0
        %v2705 = vsel %vm2597, %v2516, 0.0
        %v2706 = vsel %vm2597, %v2520, 0.0
        %v2707 = vsel %vm2597, %v2524, 0.0
        %v2708 = vsel %vm2597, %v2528, 0.0
        %v2709 = vsel %vm2597, %v2532, 0.0
        %v2710 = vsel %vm2597, %v2536, 0.0
        %v2711 = vsel %vm2597, %v2540, 0.0
        %v2712 = vsel %vm2597, %v2544, 0.0
        %v2713 = vsel %vm2597, %v2548, 0.0
        %v2714 = vsel %vm2597, %v2552, 0.0
        %v2715 = vsel %vm2597, %v2556, 0.0
        %v2716 = vsel %vm2597, %v2560, 0.0
        %v2717 = vsel %vm2597, %v2564, 0.0
        %v2718 = vsel %vm2597, %v2568, 0.0
        %v2719 = vsel %vm2597, %v2572, 0.0
        %v2720 = vsel %vm2597, %v2576, 0.0
        %v2721 = vsel %vm2597, %v2580, 0.0
        %v2722 = vsel %vm2597, %v2584, 0.0
        %v2723 = vsel %vm2597, %v2588, 0.0
        %v2724 = vsel %vm2597, %v2592, 0.0
        %v2725 = vsel %vm2597, %v2596, 0.0
        %v2726 = vld [vmem:[%s2] sm:$0xff]
        %v2727 = vld [vmem:[%s2 + $0x8] sm:$0xff]
        %v2728 = vld [vmem:[%s2 + $0x10] sm:$0xff]
        %v2729 = vld [vmem:[%s2 + $0x18] sm:$0xff]
        %v2730 = vld [vmem:[%s2 + $0x20] sm:$0xff]
        %v2731 = vld [vmem:[%s2 + $0x28] sm:$0xff]
        %v2732 = vld [vmem:[%s2 + $0x30] sm:$0xff]
        %v2733 = vld [vmem:[%s2 + $0x38] sm:$0xff]
        %v2734 = vld [vmem:[%s2 + $0x40] sm:$0xff]
        %v2735 = vld [vmem:[%s2 + $0x48] sm:$0xff]
        %v2736 = vld [vmem:[%s2 + $0x50] sm:$0xff]
        %v2737 = vld [vmem:[%s2 + $0x58] sm:$0xff]
        %v2738 = vld [vmem:[%s2 + $0x60] sm:$0xff]
        %v2739 = vld [vmem:[%s2 + $0x68] sm:$0xff]
        %v2740 = vld [vmem:[%s2 + $0x70] sm:$0xff]
        %v2741 = vld [vmem:[%s2 + $0x78] sm:$0xff]
        %v2742 = vld [vmem:[%s2 + $0x80] sm:$0xff]
        %v2743 = vld [vmem:[%s2 + $0x88] sm:$0xff]
        %v2744 = vld [vmem:[%s2 + $0x90] sm:$0xff]
        %v2745 = vld [vmem:[%s2 + $0x98] sm:$0xff]
        %v2746 = vld [vmem:[%s2 + $0xa0] sm:$0xff]
        %v2747 = vld [vmem:[%s2 + $0xa8] sm:$0xff]
        %v2748 = vld [vmem:[%s2 + $0xb0] sm:$0xff]
        %v2749 = vld [vmem:[%s2 + $0xb8] sm:$0xff]
        %v2750 = vld [vmem:[%s2 + $0xc0] sm:$0xff]
        %v2751 = vld [vmem:[%s2 + $0xc8] sm:$0xff]
        %v2752 = vld [vmem:[%s2 + $0xd0] sm:$0xff]
        %v2753 = vld [vmem:[%s2 + $0xd8] sm:$0xff]
        %v2754 = vld [vmem:[%s2 + $0xe0] sm:$0xff]
        %v2755 = vld [vmem:[%s2 + $0xe8] sm:$0xff]
        %v2756 = vld [vmem:[%s2 + $0xf0] sm:$0xff]
        %v2757 = vld [vmem:[%s2 + $0xf8] sm:$0xff]
        %2759 = vset.pattern.permute.xlu0 0
        %2760 = vperm.xlu0 %2759, %v2726
        %v2761 = vpop.permute.xlu0 %2760
        %2764 = vset.pattern.permute.xlu0 0
        %2765 = vperm.xlu0 %2764, %v2727
        %v2766 = vpop.permute.xlu0 %2765
        %2769 = vset.pattern.permute.xlu0 0
        %2770 = vperm.xlu0 %2769, %v2728
        %v2771 = vpop.permute.xlu0 %2770
        %2774 = vset.pattern.permute.xlu0 0
        %2775 = vperm.xlu0 %2774, %v2729
        %v2776 = vpop.permute.xlu0 %2775
        %2779 = vset.pattern.permute.xlu0 0
        %2780 = vperm.xlu0 %2779, %v2730
        %v2781 = vpop.permute.xlu0 %2780
        %2784 = vset.pattern.permute.xlu0 0
        %2785 = vperm.xlu0 %2784, %v2731
        %v2786 = vpop.permute.xlu0 %2785
        %2789 = vset.pattern.permute.xlu0 0
        %2790 = vperm.xlu0 %2789, %v2732
        %v2791 = vpop.permute.xlu0 %2790
        %2794 = vset.pattern.permute.xlu0 0
        %2795 = vperm.xlu0 %2794, %v2733
        %v2796 = vpop.permute.xlu0 %2795
        %2799 = vset.pattern.permute.xlu0 0
        %2800 = vperm.xlu0 %2799, %v2734
        %v2801 = vpop.permute.xlu0 %2800
        %2804 = vset.pattern.permute.xlu0 0
        %2805 = vperm.xlu0 %2804, %v2735
        %v2806 = vpop.permute.xlu0 %2805
        %2809 = vset.pattern.permute.xlu0 0
        %2810 = vperm.xlu0 %2809, %v2736
        %v2811 = vpop.permute.xlu0 %2810
        %2814 = vset.pattern.permute.xlu0 0
        %2815 = vperm.xlu0 %2814, %v2737
        %v2816 = vpop.permute.xlu0 %2815
        %2819 = vset.pattern.permute.xlu0 0
        %2820 = vperm.xlu0 %2819, %v2738
        %v2821 = vpop.permute.xlu0 %2820
        %2824 = vset.pattern.permute.xlu0 0
        %2825 = vperm.xlu0 %2824, %v2739
        %v2826 = vpop.permute.xlu0 %2825
        %2829 = vset.pattern.permute.xlu0 0
        %2830 = vperm.xlu0 %2829, %v2740
        %v2831 = vpop.permute.xlu0 %2830
        %2834 = vset.pattern.permute.xlu0 0
        %2835 = vperm.xlu0 %2834, %v2741
        %v2836 = vpop.permute.xlu0 %2835
        %2839 = vset.pattern.permute.xlu0 0
        %2840 = vperm.xlu0 %2839, %v2742
        %v2841 = vpop.permute.xlu0 %2840
        %2844 = vset.pattern.permute.xlu0 0
        %2845 = vperm.xlu0 %2844, %v2743
        %v2846 = vpop.permute.xlu0 %2845
        %2849 = vset.pattern.permute.xlu0 0
        %2850 = vperm.xlu0 %2849, %v2744
        %v2851 = vpop.permute.xlu0 %2850
        %2854 = vset.pattern.permute.xlu0 0
        %2855 = vperm.xlu0 %2854, %v2745
        %v2856 = vpop.permute.xlu0 %2855
        %2859 = vset.pattern.permute.xlu0 0
        %2860 = vperm.xlu0 %2859, %v2746
        %v2861 = vpop.permute.xlu0 %2860
        %2864 = vset.pattern.permute.xlu0 0
        %2865 = vperm.xlu0 %2864, %v2747
        %v2866 = vpop.permute.xlu0 %2865
        %2869 = vset.pattern.permute.xlu0 0
        %2870 = vperm.xlu0 %2869, %v2748
        %v2871 = vpop.permute.xlu0 %2870
        %2874 = vset.pattern.permute.xlu0 0
        %2875 = vperm.xlu0 %2874, %v2749
        %v2876 = vpop.permute.xlu0 %2875
        %2879 = vset.pattern.permute.xlu0 0
        %2880 = vperm.xlu0 %2879, %v2750
        %v2881 = vpop.permute.xlu0 %2880
        %2884 = vset.pattern.permute.xlu0 0
        %2885 = vperm.xlu0 %2884, %v2751
        %v2886 = vpop.permute.xlu0 %2885
        %2889 = vset.pattern.permute.xlu0 0
        %2890 = vperm.xlu0 %2889, %v2752
        %v2891 = vpop.permute.xlu0 %2890
        %2894 = vset.pattern.permute.xlu0 0
        %2895 = vperm.xlu0 %2894, %v2753
        %v2896 = vpop.permute.xlu0 %2895
        %2899 = vset.pattern.permute.xlu0 0
        %2900 = vperm.xlu0 %2899, %v2754
        %v2901 = vpop.permute.xlu0 %2900
        %2904 = vset.pattern.permute.xlu0 0
        %2905 = vperm.xlu0 %2904, %v2755
        %v2906 = vpop.permute.xlu0 %2905
        %2909 = vset.pattern.permute.xlu0 0
        %2910 = vperm.xlu0 %2909, %v2756
        %v2911 = vpop.permute.xlu0 %2910
        %2914 = vset.pattern.permute.xlu0 0
        %2915 = vperm.xlu0 %2914, %v2757
        %v2916 = vpop.permute.xlu0 %2915
        %v2918 = vmul.f32 %v2437, %v2761
        %v2919 = vmul.f32 %v2341, %v2761
        %v2920 = vmul.f32 %v2438, %v2766
        %v2921 = vmul.f32 %v2342, %v2766
        %v2922 = vmul.f32 %v2439, %v2771
        %v2923 = vmul.f32 %v2343, %v2771
        %v2924 = vmul.f32 %v2440, %v2776
        %v2925 = vmul.f32 %v2344, %v2776
        %v2926 = vmul.f32 %v2441, %v2781
        %v2927 = vmul.f32 %v2345, %v2781
        %v2928 = vmul.f32 %v2442, %v2786
        %v2929 = vmul.f32 %v2346, %v2786
        %v2930 = vmul.f32 %v2443, %v2791
        %v2931 = vmul.f32 %v2347, %v2791
        %v2932 = vmul.f32 %v2444, %v2796
        %v2933 = vmul.f32 %v2348, %v2796
        %v2934 = vmul.f32 %v2445, %v2801
        %v2935 = vmul.f32 %v2349, %v2801
        %v2936 = vmul.f32 %v2446, %v2806
        %v2937 = vmul.f32 %v2350, %v2806
        %v2938 = vmul.f32 %v2447, %v2811
        %v2939 = vmul.f32 %v2351, %v2811
        %v2940 = vmul.f32 %v2448, %v2816
        %v2941 = vmul.f32 %v2352, %v2816
        %v2942 = vmul.f32 %v2449, %v2821
        %v2943 = vmul.f32 %v2353, %v2821
        %v2944 = vmul.f32 %v2450, %v2826
        %v2945 = vmul.f32 %v2354, %v2826
        %v2946 = vmul.f32 %v2451, %v2831
        %v2947 = vmul.f32 %v2355, %v2831
        %v2948 = vmul.f32 %v2452, %v2836
        %v2949 = vmul.f32 %v2356, %v2836
        %v2950 = vmul.f32 %v2453, %v2841
        %v2951 = vmul.f32 %v2357, %v2841
        %v2952 = vmul.f32 %v2454, %v2846
        %v2953 = vmul.f32 %v2358, %v2846
        %v2954 = vmul.f32 %v2455, %v2851
        %v2955 = vmul.f32 %v2359, %v2851
        %v2956 = vmul.f32 %v2456, %v2856
        %v2957 = vmul.f32 %v2360, %v2856
        %v2958 = vmul.f32 %v2457, %v2861
        %v2959 = vmul.f32 %v2361, %v2861
        %v2960 = vmul.f32 %v2458, %v2866
        %v2961 = vmul.f32 %v2362, %v2866
        %v2962 = vmul.f32 %v2459, %v2871
        %v2963 = vmul.f32 %v2363, %v2871
        %v2964 = vmul.f32 %v2460, %v2876
        %v2965 = vmul.f32 %v2364, %v2876
        %v2966 = vmul.f32 %v2461, %v2881
        %v2967 = vmul.f32 %v2365, %v2881
        %v2968 = vmul.f32 %v2462, %v2886
        %v2969 = vmul.f32 %v2366, %v2886
        %v2970 = vmul.f32 %v2463, %v2891
        %v2971 = vmul.f32 %v2367, %v2891
        %v2972 = vmul.f32 %v2464, %v2896
        %v2973 = vmul.f32 %v2368, %v2896
        %v2974 = vmul.f32 %v2465, %v2901
        %v2975 = vmul.f32 %v2369, %v2901
        %v2976 = vmul.f32 %v2466, %v2906
        %v2977 = vmul.f32 %v2370, %v2906
        %v2978 = vmul.f32 %v2467, %v2911
        %v2979 = vmul.f32 %v2371, %v2911
        %v2980 = vmul.f32 %v2468, %v2916
        %v2981 = vmul.f32 %v2372, %v2916
        %2982 = vset.pattern.permute.xlu0 1
        %2983 = vperm.xlu0 %2982, %v2726
        %v2984 = vpop.permute.xlu0 %2983
        %2986 = vset.pattern.permute.xlu0 1
        %2987 = vperm.xlu0 %2986, %v2727
        %v2988 = vpop.permute.xlu0 %2987
        %2990 = vset.pattern.permute.xlu0 1
        %2991 = vperm.xlu0 %2990, %v2728
        %v2992 = vpop.permute.xlu0 %2991
        %2994 = vset.pattern.permute.xlu0 1
        %2995 = vperm.xlu0 %2994, %v2729
        %v2996 = vpop.permute.xlu0 %2995
        %2998 = vset.pattern.permute.xlu0 1
        %2999 = vperm.xlu0 %2998, %v2730
        %v3000 = vpop.permute.xlu0 %2999
        %3002 = vset.pattern.permute.xlu0 1
        %3003 = vperm.xlu0 %3002, %v2731
        %v3004 = vpop.permute.xlu0 %3003
        %3006 = vset.pattern.permute.xlu0 1
        %3007 = vperm.xlu0 %3006, %v2732
        %v3008 = vpop.permute.xlu0 %3007
        %3010 = vset.pattern.permute.xlu0 1
        %3011 = vperm.xlu0 %3010, %v2733
        %v3012 = vpop.permute.xlu0 %3011
        %3014 = vset.pattern.permute.xlu0 1
        %3015 = vperm.xlu0 %3014, %v2734
        %v3016 = vpop.permute.xlu0 %3015
        %3018 = vset.pattern.permute.xlu0 1
        %3019 = vperm.xlu0 %3018, %v2735
        %v3020 = vpop.permute.xlu0 %3019
        %3022 = vset.pattern.permute.xlu0 1
        %3023 = vperm.xlu0 %3022, %v2736
        %v3024 = vpop.permute.xlu0 %3023
        %3026 = vset.pattern.permute.xlu0 1
        %3027 = vperm.xlu0 %3026, %v2737
        %v3028 = vpop.permute.xlu0 %3027
        %3030 = vset.pattern.permute.xlu0 1
        %3031 = vperm.xlu0 %3030, %v2738
        %v3032 = vpop.permute.xlu0 %3031
        %3034 = vset.pattern.permute.xlu0 1
        %3035 = vperm.xlu0 %3034, %v2739
        %v3036 = vpop.permute.xlu0 %3035
        %3038 = vset.pattern.permute.xlu0 1
        %3039 = vperm.xlu0 %3038, %v2740
        %v3040 = vpop.permute.xlu0 %3039
        %3042 = vset.pattern.permute.xlu0 1
        %3043 = vperm.xlu0 %3042, %v2741
        %v3044 = vpop.permute.xlu0 %3043
        %3046 = vset.pattern.permute.xlu0 1
        %3047 = vperm.xlu0 %3046, %v2742
        %v3048 = vpop.permute.xlu0 %3047
        %3050 = vset.pattern.permute.xlu0 1
        %3051 = vperm.xlu0 %3050, %v2743
        %v3052 = vpop.permute.xlu0 %3051
        %3054 = vset.pattern.permute.xlu0 1
        %3055 = vperm.xlu0 %3054, %v2744
        %v3056 = vpop.permute.xlu0 %3055
        %3058 = vset.pattern.permute.xlu0 1
        %3059 = vperm.xlu0 %3058, %v2745
        %v3060 = vpop.permute.xlu0 %3059
        %3062 = vset.pattern.permute.xlu0 1
        %3063 = vperm.xlu0 %3062, %v2746
        %v3064 = vpop.permute.xlu0 %3063
        %3066 = vset.pattern.permute.xlu0 1
        %3067 = vperm.xlu0 %3066, %v2747
        %v3068 = vpop.permute.xlu0 %3067
        %3070 = vset.pattern.permute.xlu0 1
        %3071 = vperm.xlu0 %3070, %v2748
        %v3072 = vpop.permute.xlu0 %3071
        %3074 = vset.pattern.permute.xlu0 1
        %3075 = vperm.xlu0 %3074, %v2749
        %v3076 = vpop.permute.xlu0 %3075
        %3078 = vset.pattern.permute.xlu0 1
        %3079 = vperm.xlu0 %3078, %v2750
        %v3080 = vpop.permute.xlu0 %3079
        %3082 = vset.pattern.permute.xlu0 1
        %3083 = vperm.xlu0 %3082, %v2751
        %v3084 = vpop.permute.xlu0 %3083
        %3086 = vset.pattern.permute.xlu0 1
        %3087 = vperm.xlu0 %3086, %v2752
        %v3088 = vpop.permute.xlu0 %3087
        %3090 = vset.pattern.permute.xlu0 1
        %3091 = vperm.xlu0 %3090, %v2753
        %v3092 = vpop.permute.xlu0 %3091
        %3094 = vset.pattern.permute.xlu0 1
        %3095 = vperm.xlu0 %3094, %v2754
        %v3096 = vpop.permute.xlu0 %3095
        %3098 = vset.pattern.permute.xlu0 1
        %3099 = vperm.xlu0 %3098, %v2755
        %v3100 = vpop.permute.xlu0 %3099
        %3102 = vset.pattern.permute.xlu0 1
        %3103 = vperm.xlu0 %3102, %v2756
        %v3104 = vpop.permute.xlu0 %3103
        %3106 = vset.pattern.permute.xlu0 1
        %3107 = vperm.xlu0 %3106, %v2757
        %v3108 = vpop.permute.xlu0 %3107
        %v3110 = vmul.f32 %v2084, %v2984
        %v3111 = vmul.f32 %v2085, %v2984
        %v3112 = vmul.f32 %v2086, %v2988
        %v3113 = vmul.f32 %v2087, %v2988
        %v3114 = vmul.f32 %v2088, %v2992
        %v3115 = vmul.f32 %v2089, %v2992
        %v3116 = vmul.f32 %v2090, %v2996
        %v3117 = vmul.f32 %v2091, %v2996
        %v3118 = vmul.f32 %v2092, %v3000
        %v3119 = vmul.f32 %v2093, %v3000
        %v3120 = vmul.f32 %v2094, %v3004
        %v3121 = vmul.f32 %v2095, %v3004
        %v3122 = vmul.f32 %v2096, %v3008
        %v3123 = vmul.f32 %v2097, %v3008
        %v3124 = vmul.f32 %v2098, %v3012
        %v3125 = vmul.f32 %v2099, %v3012
        %v3126 = vmul.f32 %v2100, %v3016
        %v3127 = vmul.f32 %v2101, %v3016
        %v3128 = vmul.f32 %v2102, %v3020
        %v3129 = vmul.f32 %v2103, %v3020
        %v3130 = vmul.f32 %v2104, %v3024
        %v3131 = vmul.f32 %v2105, %v3024
        %v3132 = vmul.f32 %v2106, %v3028
        %v3133 = vmul.f32 %v2107, %v3028
        %v3134 = vmul.f32 %v2108, %v3032
        %v3135 = vmul.f32 %v2109, %v3032
        %v3136 = vmul.f32 %v2110, %v3036
        %v3137 = vmul.f32 %v2111, %v3036
        %v3138 = vmul.f32 %v2112, %v3040
        %v3139 = vmul.f32 %v2113, %v3040
        %v3140 = vmul.f32 %v2114, %v3044
        %v3141 = vmul.f32 %v2115, %v3044
        %v3142 = vmul.f32 %v2116, %v3048
        %v3143 = vmul.f32 %v2117, %v3048
        %v3144 = vmul.f32 %v2118, %v3052
        %v3145 = vmul.f32 %v2119, %v3052
        %v3146 = vmul.f32 %v2120, %v3056
        %v3147 = vmul.f32 %v2121, %v3056
        %v3148 = vmul.f32 %v2122, %v3060
        %v3149 = vmul.f32 %v2123, %v3060
        %v3150 = vmul.f32 %v2124, %v3064
        %v3151 = vmul.f32 %v2125, %v3064
        %v3152 = vmul.f32 %v2126, %v3068
        %v3153 = vmul.f32 %v2127, %v3068
        %v3154 = vmul.f32 %v2128, %v3072
        %v3155 = vmul.f32 %v2129, %v3072
        %v3156 = vmul.f32 %v2130, %v3076
        %v3157 = vmul.f32 %v2131, %v3076
        %v3158 = vmul.f32 %v2132, %v3080
        %v3159 = vmul.f32 %v2133, %v3080
        %v3160 = vmul.f32 %v2134, %v3084
        %v3161 = vmul.f32 %v2135, %v3084
        %v3162 = vmul.f32 %v2136, %v3088
        %v3163 = vmul.f32 %v2137, %v3088
        %v3164 = vmul.f32 %v2138, %v3092
        %v3165 = vmul.f32 %v2139, %v3092
        %v3166 = vmul.f32 %v2140, %v3096
        %v3167 = vmul.f32 %v2141, %v3096
        %v3168 = vmul.f32 %v2142, %v3100
        %v3169 = vmul.f32 %v2143, %v3100
        %v3170 = vmul.f32 %v2144, %v3104
        %v3171 = vmul.f32 %v2145, %v3104
        %v3172 = vmul.f32 %v2146, %v3108
        %v3173 = vmul.f32 %v2147, %v3108
        %v3174 = vadd.f32 %v2918, %v3110
        %v3175 = vadd.f32 %v2919, %v3111
        %v3176 = vadd.f32 %v2920, %v3112
        %v3177 = vadd.f32 %v2921, %v3113
        %v3178 = vadd.f32 %v2922, %v3114
        %v3179 = vadd.f32 %v2923, %v3115
        %v3180 = vadd.f32 %v2924, %v3116
        %v3181 = vadd.f32 %v2925, %v3117
        %v3182 = vadd.f32 %v2926, %v3118
        %v3183 = vadd.f32 %v2927, %v3119
        %v3184 = vadd.f32 %v2928, %v3120
        %v3185 = vadd.f32 %v2929, %v3121
        %v3186 = vadd.f32 %v2930, %v3122
        %v3187 = vadd.f32 %v2931, %v3123
        %v3188 = vadd.f32 %v2932, %v3124
        %v3189 = vadd.f32 %v2933, %v3125
        %v3190 = vadd.f32 %v2934, %v3126
        %v3191 = vadd.f32 %v2935, %v3127
        %v3192 = vadd.f32 %v2936, %v3128
        %v3193 = vadd.f32 %v2937, %v3129
        %v3194 = vadd.f32 %v2938, %v3130
        %v3195 = vadd.f32 %v2939, %v3131
        %v3196 = vadd.f32 %v2940, %v3132
        %v3197 = vadd.f32 %v2941, %v3133
        %v3198 = vadd.f32 %v2942, %v3134
        %v3199 = vadd.f32 %v2943, %v3135
        %v3200 = vadd.f32 %v2944, %v3136
        %v3201 = vadd.f32 %v2945, %v3137
        %v3202 = vadd.f32 %v2946, %v3138
        %v3203 = vadd.f32 %v2947, %v3139
        %v3204 = vadd.f32 %v2948, %v3140
        %v3205 = vadd.f32 %v2949, %v3141
        %v3206 = vadd.f32 %v2950, %v3142
        %v3207 = vadd.f32 %v2951, %v3143
        %v3208 = vadd.f32 %v2952, %v3144
        %v3209 = vadd.f32 %v2953, %v3145
        %v3210 = vadd.f32 %v2954, %v3146
        %v3211 = vadd.f32 %v2955, %v3147
        %v3212 = vadd.f32 %v2956, %v3148
        %v3213 = vadd.f32 %v2957, %v3149
        %v3214 = vadd.f32 %v2958, %v3150
        %v3215 = vadd.f32 %v2959, %v3151
        %v3216 = vadd.f32 %v2960, %v3152
        %v3217 = vadd.f32 %v2961, %v3153
        %v3218 = vadd.f32 %v2962, %v3154
        %v3219 = vadd.f32 %v2963, %v3155
        %v3220 = vadd.f32 %v2964, %v3156
        %v3221 = vadd.f32 %v2965, %v3157
        %v3222 = vadd.f32 %v2966, %v3158
        %v3223 = vadd.f32 %v2967, %v3159
        %v3224 = vadd.f32 %v2968, %v3160
        %v3225 = vadd.f32 %v2969, %v3161
        %v3226 = vadd.f32 %v2970, %v3162
        %v3227 = vadd.f32 %v2971, %v3163
        %v3228 = vadd.f32 %v2972, %v3164
        %v3229 = vadd.f32 %v2973, %v3165
        %v3230 = vadd.f32 %v2974, %v3166
        %v3231 = vadd.f32 %v2975, %v3167
        %v3232 = vadd.f32 %v2976, %v3168
        %v3233 = vadd.f32 %v2977, %v3169
        %v3234 = vadd.f32 %v2978, %v3170
        %v3235 = vadd.f32 %v2979, %v3171
        %v3236 = vadd.f32 %v2980, %v3172
        %v3237 = vadd.f32 %v2981, %v3173
        %3238 = vset.pattern.permute.xlu0 2
        %3239 = vperm.xlu0 %3238, %v2726
        %v3240 = vpop.permute.xlu0 %3239
        %3242 = vset.pattern.permute.xlu0 2
        %3243 = vperm.xlu0 %3242, %v2727
        %v3244 = vpop.permute.xlu0 %3243
        %3246 = vset.pattern.permute.xlu0 2
        %3247 = vperm.xlu0 %3246, %v2728
        %v3248 = vpop.permute.xlu0 %3247
        %3250 = vset.pattern.permute.xlu0 2
        %3251 = vperm.xlu0 %3250, %v2729
        %v3252 = vpop.permute.xlu0 %3251
        %3254 = vset.pattern.permute.xlu0 2
        %3255 = vperm.xlu0 %3254, %v2730
        %v3256 = vpop.permute.xlu0 %3255
        %3258 = vset.pattern.permute.xlu0 2
        %3259 = vperm.xlu0 %3258, %v2731
        %v3260 = vpop.permute.xlu0 %3259
        %3262 = vset.pattern.permute.xlu0 2
        %3263 = vperm.xlu0 %3262, %v2732
        %v3264 = vpop.permute.xlu0 %3263
        %3266 = vset.pattern.permute.xlu0 2
        %3267 = vperm.xlu0 %3266, %v2733
        %v3268 = vpop.permute.xlu0 %3267
        %3270 = vset.pattern.permute.xlu0 2
        %3271 = vperm.xlu0 %3270, %v2734
        %v3272 = vpop.permute.xlu0 %3271
        %3274 = vset.pattern.permute.xlu0 2
        %3275 = vperm.xlu0 %3274, %v2735
        %v3276 = vpop.permute.xlu0 %3275
        %3278 = vset.pattern.permute.xlu0 2
        %3279 = vperm.xlu0 %3278, %v2736
        %v3280 = vpop.permute.xlu0 %3279
        %3282 = vset.pattern.permute.xlu0 2
        %3283 = vperm.xlu0 %3282, %v2737
        %v3284 = vpop.permute.xlu0 %3283
        %3286 = vset.pattern.permute.xlu0 2
        %3287 = vperm.xlu0 %3286, %v2738
        %v3288 = vpop.permute.xlu0 %3287
        %3290 = vset.pattern.permute.xlu0 2
        %3291 = vperm.xlu0 %3290, %v2739
        %v3292 = vpop.permute.xlu0 %3291
        %3294 = vset.pattern.permute.xlu0 2
        %3295 = vperm.xlu0 %3294, %v2740
        %v3296 = vpop.permute.xlu0 %3295
        %3298 = vset.pattern.permute.xlu0 2
        %3299 = vperm.xlu0 %3298, %v2741
        %v3300 = vpop.permute.xlu0 %3299
        %3302 = vset.pattern.permute.xlu0 2
        %3303 = vperm.xlu0 %3302, %v2742
        %v3304 = vpop.permute.xlu0 %3303
        %3306 = vset.pattern.permute.xlu0 2
        %3307 = vperm.xlu0 %3306, %v2743
        %v3308 = vpop.permute.xlu0 %3307
        %3310 = vset.pattern.permute.xlu0 2
        %3311 = vperm.xlu0 %3310, %v2744
        %v3312 = vpop.permute.xlu0 %3311
        %3314 = vset.pattern.permute.xlu0 2
        %3315 = vperm.xlu0 %3314, %v2745
        %v3316 = vpop.permute.xlu0 %3315
        %3318 = vset.pattern.permute.xlu0 2
        %3319 = vperm.xlu0 %3318, %v2746
        %v3320 = vpop.permute.xlu0 %3319
        %3322 = vset.pattern.permute.xlu0 2
        %3323 = vperm.xlu0 %3322, %v2747
        %v3324 = vpop.permute.xlu0 %3323
        %3326 = vset.pattern.permute.xlu0 2
        %3327 = vperm.xlu0 %3326, %v2748
        %v3328 = vpop.permute.xlu0 %3327
        %3330 = vset.pattern.permute.xlu0 2
        %3331 = vperm.xlu0 %3330, %v2749
        %v3332 = vpop.permute.xlu0 %3331
        %3334 = vset.pattern.permute.xlu0 2
        %3335 = vperm.xlu0 %3334, %v2750
        %v3336 = vpop.permute.xlu0 %3335
        %3338 = vset.pattern.permute.xlu0 2
        %3339 = vperm.xlu0 %3338, %v2751
        %v3340 = vpop.permute.xlu0 %3339
        %3342 = vset.pattern.permute.xlu0 2
        %3343 = vperm.xlu0 %3342, %v2752
        %v3344 = vpop.permute.xlu0 %3343
        %3346 = vset.pattern.permute.xlu0 2
        %3347 = vperm.xlu0 %3346, %v2753
        %v3348 = vpop.permute.xlu0 %3347
        %3350 = vset.pattern.permute.xlu0 2
        %3351 = vperm.xlu0 %3350, %v2754
        %v3352 = vpop.permute.xlu0 %3351
        %3354 = vset.pattern.permute.xlu0 2
        %3355 = vperm.xlu0 %3354, %v2755
        %v3356 = vpop.permute.xlu0 %3355
        %3358 = vset.pattern.permute.xlu0 2
        %3359 = vperm.xlu0 %3358, %v2756
        %v3360 = vpop.permute.xlu0 %3359
        %3362 = vset.pattern.permute.xlu0 2
        %3363 = vperm.xlu0 %3362, %v2757
        %v3364 = vpop.permute.xlu0 %3363
        %v3366 = vmul.f32 %v2598, %v3240
        %v3367 = vmul.f32 %v2694, %v3240
        %v3368 = vmul.f32 %v2599, %v3244
        %v3369 = vmul.f32 %v2695, %v3244
        %v3370 = vmul.f32 %v2600, %v3248
        %v3371 = vmul.f32 %v2696, %v3248
        %v3372 = vmul.f32 %v2601, %v3252
        %v3373 = vmul.f32 %v2697, %v3252
        %v3374 = vmul.f32 %v2602, %v3256
        %v3375 = vmul.f32 %v2698, %v3256
        %v3376 = vmul.f32 %v2603, %v3260
        %v3377 = vmul.f32 %v2699, %v3260
        %v3378 = vmul.f32 %v2604, %v3264
        %v3379 = vmul.f32 %v2700, %v3264
        %v3380 = vmul.f32 %v2605, %v3268
        %v3381 = vmul.f32 %v2701, %v3268
        %v3382 = vmul.f32 %v2606, %v3272
        %v3383 = vmul.f32 %v2702, %v3272
        %v3384 = vmul.f32 %v2607, %v3276
        %v3385 = vmul.f32 %v2703, %v3276
        %v3386 = vmul.f32 %v2608, %v3280
        %v3387 = vmul.f32 %v2704, %v3280
        %v3388 = vmul.f32 %v2609, %v3284
        %v3389 = vmul.f32 %v2705, %v3284
        %v3390 = vmul.f32 %v2610, %v3288
        %v3391 = vmul.f32 %v2706, %v3288
        %v3392 = vmul.f32 %v2611, %v3292
        %v3393 = vmul.f32 %v2707, %v3292
        %v3394 = vmul.f32 %v2612, %v3296
        %v3395 = vmul.f32 %v2708, %v3296
        %v3396 = vmul.f32 %v2613, %v3300
        %v3397 = vmul.f32 %v2709, %v3300
        %v3398 = vmul.f32 %v2614, %v3304
        %v3399 = vmul.f32 %v2710, %v3304
        %v3400 = vmul.f32 %v2615, %v3308
        %v3401 = vmul.f32 %v2711, %v3308
        %v3402 = vmul.f32 %v2616, %v3312
        %v3403 = vmul.f32 %v2712, %v3312
        %v3404 = vmul.f32 %v2617, %v3316
        %v3405 = vmul.f32 %v2713, %v3316
        %v3406 = vmul.f32 %v2618, %v3320
        %v3407 = vmul.f32 %v2714, %v3320
        %v3408 = vmul.f32 %v2619, %v3324
        %v3409 = vmul.f32 %v2715, %v3324
        %v3410 = vmul.f32 %v2620, %v3328
        %v3411 = vmul.f32 %v2716, %v3328
        %v3412 = vmul.f32 %v2621, %v3332
        %v3413 = vmul.f32 %v2717, %v3332
        %v3414 = vmul.f32 %v2622, %v3336
        %v3415 = vmul.f32 %v2718, %v3336
        %v3416 = vmul.f32 %v2623, %v3340
        %v3417 = vmul.f32 %v2719, %v3340
        %v3418 = vmul.f32 %v2624, %v3344
        %v3419 = vmul.f32 %v2720, %v3344
        %v3420 = vmul.f32 %v2625, %v3348
        %v3421 = vmul.f32 %v2721, %v3348
        %v3422 = vmul.f32 %v2626, %v3352
        %v3423 = vmul.f32 %v2722, %v3352
        %v3424 = vmul.f32 %v2627, %v3356
        %v3425 = vmul.f32 %v2723, %v3356
        %v3426 = vmul.f32 %v2628, %v3360
        %v3427 = vmul.f32 %v2724, %v3360
        %v3428 = vmul.f32 %v2629, %v3364
        %v3429 = vmul.f32 %v2725, %v3364
        %v3430 = vadd.f32 %v3174, %v3366
        %v3431 = vadd.f32 %v3175, %v3367
        %v3432 = vadd.f32 %v3176, %v3368
        %v3433 = vadd.f32 %v3177, %v3369
        %v3434 = vadd.f32 %v3178, %v3370
        %v3435 = vadd.f32 %v3179, %v3371
        %v3436 = vadd.f32 %v3180, %v3372
        %v3437 = vadd.f32 %v3181, %v3373
        %v3438 = vadd.f32 %v3182, %v3374
        %v3439 = vadd.f32 %v3183, %v3375
        %v3440 = vadd.f32 %v3184, %v3376
        %v3441 = vadd.f32 %v3185, %v3377
        %v3442 = vadd.f32 %v3186, %v3378
        %v3443 = vadd.f32 %v3187, %v3379
        %v3444 = vadd.f32 %v3188, %v3380
        %v3445 = vadd.f32 %v3189, %v3381
        %v3446 = vadd.f32 %v3190, %v3382
        %v3447 = vadd.f32 %v3191, %v3383
        %v3448 = vadd.f32 %v3192, %v3384
        %v3449 = vadd.f32 %v3193, %v3385
        %v3450 = vadd.f32 %v3194, %v3386
        %v3451 = vadd.f32 %v3195, %v3387
        %v3452 = vadd.f32 %v3196, %v3388
        %v3453 = vadd.f32 %v3197, %v3389
        %v3454 = vadd.f32 %v3198, %v3390
        %v3455 = vadd.f32 %v3199, %v3391
        %v3456 = vadd.f32 %v3200, %v3392
        %v3457 = vadd.f32 %v3201, %v3393
        %v3458 = vadd.f32 %v3202, %v3394
        %v3459 = vadd.f32 %v3203, %v3395
        %v3460 = vadd.f32 %v3204, %v3396
        %v3461 = vadd.f32 %v3205, %v3397
        %v3462 = vadd.f32 %v3206, %v3398
        %v3463 = vadd.f32 %v3207, %v3399
        %v3464 = vadd.f32 %v3208, %v3400
        %v3465 = vadd.f32 %v3209, %v3401
        %v3466 = vadd.f32 %v3210, %v3402
        %v3467 = vadd.f32 %v3211, %v3403
        %v3468 = vadd.f32 %v3212, %v3404
        %v3469 = vadd.f32 %v3213, %v3405
        %v3470 = vadd.f32 %v3214, %v3406
        %v3471 = vadd.f32 %v3215, %v3407
        %v3472 = vadd.f32 %v3216, %v3408
        %v3473 = vadd.f32 %v3217, %v3409
        %v3474 = vadd.f32 %v3218, %v3410
        %v3475 = vadd.f32 %v3219, %v3411
        %v3476 = vadd.f32 %v3220, %v3412
        %v3477 = vadd.f32 %v3221, %v3413
        %v3478 = vadd.f32 %v3222, %v3414
        %v3479 = vadd.f32 %v3223, %v3415
        %v3480 = vadd.f32 %v3224, %v3416
        %v3481 = vadd.f32 %v3225, %v3417
        %v3482 = vadd.f32 %v3226, %v3418
        %v3483 = vadd.f32 %v3227, %v3419
        %v3484 = vadd.f32 %v3228, %v3420
        %v3485 = vadd.f32 %v3229, %v3421
        %v3486 = vadd.f32 %v3230, %v3422
        %v3487 = vadd.f32 %v3231, %v3423
        %v3488 = vadd.f32 %v3232, %v3424
        %v3489 = vadd.f32 %v3233, %v3425
        %v3490 = vadd.f32 %v3234, %v3426
        %v3491 = vadd.f32 %v3235, %v3427
        %v3492 = vadd.f32 %v3236, %v3428
        %v3493 = vadd.f32 %v3237, %v3429
        %s3494 = sld [smem:[#allocation2]]
        %vm3495 = vcmp.ge.f32.partialorder %v3430, 0.0
        %vm3496 = vcmp.ge.f32.partialorder %v3431, 0.0
        %vm3497 = vcmp.ge.f32.partialorder %v3432, 0.0
        %vm3498 = vcmp.ge.f32.partialorder %v3433, 0.0
        %vm3499 = vcmp.ge.f32.partialorder %v3434, 0.0
        %vm3500 = vcmp.ge.f32.partialorder %v3435, 0.0
        %vm3501 = vcmp.ge.f32.partialorder %v3436, 0.0
        %vm3502 = vcmp.ge.f32.partialorder %v3437, 0.0
        %vm3503 = vcmp.ge.f32.partialorder %v3438, 0.0
        %vm3504 = vcmp.ge.f32.partialorder %v3439, 0.0
        %vm3505 = vcmp.ge.f32.partialorder %v3440, 0.0
        %vm3506 = vcmp.ge.f32.partialorder %v3441, 0.0
        %vm3507 = vcmp.ge.f32.partialorder %v3442, 0.0
        %vm3508 = vcmp.ge.f32.partialorder %v3443, 0.0
        %vm3509 = vcmp.ge.f32.partialorder %v3444, 0.0
        %vm3510 = vcmp.ge.f32.partialorder %v3445, 0.0
        %vm3511 = vcmp.ge.f32.partialorder %v3446, 0.0
        %vm3512 = vcmp.ge.f32.partialorder %v3447, 0.0
        %vm3513 = vcmp.ge.f32.partialorder %v3448, 0.0
        %vm3514 = vcmp.ge.f32.partialorder %v3449, 0.0
        %vm3515 = vcmp.ge.f32.partialorder %v3450, 0.0
        %vm3516 = vcmp.ge.f32.partialorder %v3451, 0.0
        %vm3517 = vcmp.ge.f32.partialorder %v3452, 0.0
        %vm3518 = vcmp.ge.f32.partialorder %v3453, 0.0
        %vm3519 = vcmp.ge.f32.partialorder %v3454, 0.0
        %vm3520 = vcmp.ge.f32.partialorder %v3455, 0.0
        %vm3521 = vcmp.ge.f32.partialorder %v3456, 0.0
        %vm3522 = vcmp.ge.f32.partialorder %v3457, 0.0
        %vm3523 = vcmp.ge.f32.partialorder %v3458, 0.0
        %vm3524 = vcmp.ge.f32.partialorder %v3459, 0.0
        %vm3525 = vcmp.ge.f32.partialorder %v3460, 0.0
        %vm3526 = vcmp.ge.f32.partialorder %v3461, 0.0
        %vm3527 = vcmp.ge.f32.partialorder %v3462, 0.0
        %vm3528 = vcmp.ge.f32.partialorder %v3463, 0.0
        %vm3529 = vcmp.ge.f32.partialorder %v3464, 0.0
        %vm3530 = vcmp.ge.f32.partialorder %v3465, 0.0
        %vm3531 = vcmp.ge.f32.partialorder %v3466, 0.0
        %vm3532 = vcmp.ge.f32.partialorder %v3467, 0.0
        %vm3533 = vcmp.ge.f32.partialorder %v3468, 0.0
        %vm3534 = vcmp.ge.f32.partialorder %v3469, 0.0
        %vm3535 = vcmp.ge.f32.partialorder %v3470, 0.0
        %vm3536 = vcmp.ge.f32.partialorder %v3471, 0.0
        %vm3537 = vcmp.ge.f32.partialorder %v3472, 0.0
        %vm3538 = vcmp.ge.f32.partialorder %v3473, 0.0
        %vm3539 = vcmp.ge.f32.partialorder %v3474, 0.0
        %vm3540 = vcmp.ge.f32.partialorder %v3475, 0.0
        %vm3541 = vcmp.ge.f32.partialorder %v3476, 0.0
        %vm3542 = vcmp.ge.f32.partialorder %v3477, 0.0
        %vm3543 = vcmp.ge.f32.partialorder %v3478, 0.0
        %vm3544 = vcmp.ge.f32.partialorder %v3479, 0.0
        %vm3545 = vcmp.ge.f32.partialorder %v3480, 0.0
        %vm3546 = vcmp.ge.f32.partialorder %v3481, 0.0
        %vm3547 = vcmp.ge.f32.partialorder %v3482, 0.0
        %vm3548 = vcmp.ge.f32.partialorder %v3483, 0.0
        %vm3549 = vcmp.ge.f32.partialorder %v3484, 0.0
        %vm3550 = vcmp.ge.f32.partialorder %v3485, 0.0
        %vm3551 = vcmp.ge.f32.partialorder %v3486, 0.0
        %vm3552 = vcmp.ge.f32.partialorder %v3487, 0.0
        %vm3553 = vcmp.ge.f32.partialorder %v3488, 0.0
        %vm3554 = vcmp.ge.f32.partialorder %v3489, 0.0
        %vm3555 = vcmp.ge.f32.partialorder %v3490, 0.0
        %vm3556 = vcmp.ge.f32.partialorder %v3491, 0.0
        %vm3557 = vcmp.ge.f32.partialorder %v3492, 0.0
        %vm3558 = vcmp.ge.f32.partialorder %v3493, 0.0
        %v3559 = vstv %s3494
        %v3560 = vmul.f32 %v3559, %v3430
        %v3561 = vmul.f32 %v3559, %v3431
        %v3562 = vmul.f32 %v3559, %v3432
        %v3563 = vmul.f32 %v3559, %v3433
        %v3564 = vmul.f32 %v3559, %v3434
        %v3565 = vmul.f32 %v3559, %v3435
        %v3566 = vmul.f32 %v3559, %v3436
        %v3567 = vmul.f32 %v3559, %v3437
        %v3568 = vmul.f32 %v3559, %v3438
        %v3569 = vmul.f32 %v3559, %v3439
        %v3570 = vmul.f32 %v3559, %v3440
        %v3571 = vmul.f32 %v3559, %v3441
        %v3572 = vmul.f32 %v3559, %v3442
        %v3573 = vmul.f32 %v3559, %v3443
        %v3574 = vmul.f32 %v3559, %v3444
        %v3575 = vmul.f32 %v3559, %v3445
        %v3576 = vmul.f32 %v3559, %v3446
        %v3577 = vmul.f32 %v3559, %v3447
        %v3578 = vmul.f32 %v3559, %v3448
        %v3579 = vmul.f32 %v3559, %v3449
        %v3580 = vmul.f32 %v3559, %v3450
        %v3581 = vmul.f32 %v3559, %v3451
        %v3582 = vmul.f32 %v3559, %v3452
        %v3583 = vmul.f32 %v3559, %v3453
        %v3584 = vmul.f32 %v3559, %v3454
        %v3585 = vmul.f32 %v3559, %v3455
        %v3586 = vmul.f32 %v3559, %v3456
        %v3587 = vmul.f32 %v3559, %v3457
        %v3588 = vmul.f32 %v3559, %v3458
        %v3589 = vmul.f32 %v3559, %v3459
        %v3590 = vmul.f32 %v3559, %v3460
        %v3591 = vmul.f32 %v3559, %v3461
        %v3592 = vmul.f32 %v3559, %v3462
        %v3593 = vmul.f32 %v3559, %v3463
        %v3594 = vmul.f32 %v3559, %v3464
        %v3595 = vmul.f32 %v3559, %v3465
        %v3596 = vmul.f32 %v3559, %v3466
        %v3597 = vmul.f32 %v3559, %v3467
        %v3598 = vmul.f32 %v3559, %v3468
        %v3599 = vmul.f32 %v3559, %v3469
        %v3600 = vmul.f32 %v3559, %v3470
        %v3601 = vmul.f32 %v3559, %v3471
        %v3602 = vmul.f32 %v3559, %v3472
        %v3603 = vmul.f32 %v3559, %v3473
        %v3604 = vmul.f32 %v3559, %v3474
        %v3605 = vmul.f32 %v3559, %v3475
        %v3606 = vmul.f32 %v3559, %v3476
        %v3607 = vmul.f32 %v3559, %v3477
        %v3608 = vmul.f32 %v3559, %v3478
        %v3609 = vmul.f32 %v3559, %v3479
        %v3610 = vmul.f32 %v3559, %v3480
        %v3611 = vmul.f32 %v3559, %v3481
        %v3612 = vmul.f32 %v3559, %v3482
        %v3613 = vmul.f32 %v3559, %v3483
        %v3614 = vmul.f32 %v3559, %v3484
        %v3615 = vmul.f32 %v3559, %v3485
        %v3616 = vmul.f32 %v3559, %v3486
        %v3617 = vmul.f32 %v3559, %v3487
        %v3618 = vmul.f32 %v3559, %v3488
        %v3619 = vmul.f32 %v3559, %v3489
        %v3620 = vmul.f32 %v3559, %v3490
        %v3621 = vmul.f32 %v3559, %v3491
        %v3622 = vmul.f32 %v3559, %v3492
        %v3623 = vmul.f32 %v3559, %v3493
        %v3624 = vsel %vm3495, %v3430, %v3560
        %v3625 = vsel %vm3496, %v3431, %v3561
        %v3626 = vsel %vm3497, %v3432, %v3562
        %v3627 = vsel %vm3498, %v3433, %v3563
        %v3628 = vsel %vm3499, %v3434, %v3564
        %v3629 = vsel %vm3500, %v3435, %v3565
        %v3630 = vsel %vm3501, %v3436, %v3566
        %v3631 = vsel %vm3502, %v3437, %v3567
        %v3632 = vsel %vm3503, %v3438, %v3568
        %v3633 = vsel %vm3504, %v3439, %v3569
        %v3634 = vsel %vm3505, %v3440, %v3570
        %v3635 = vsel %vm3506, %v3441, %v3571
        %v3636 = vsel %vm3507, %v3442, %v3572
        %v3637 = vsel %vm3508, %v3443, %v3573
        %v3638 = vsel %vm3509, %v3444, %v3574
        %v3639 = vsel %vm3510, %v3445, %v3575
        %v3640 = vsel %vm3511, %v3446, %v3576
        %v3641 = vsel %vm3512, %v3447, %v3577
        %v3642 = vsel %vm3513, %v3448, %v3578
        %v3643 = vsel %vm3514, %v3449, %v3579
        %v3644 = vsel %vm3515, %v3450, %v3580
        %v3645 = vsel %vm3516, %v3451, %v3581
        %v3646 = vsel %vm3517, %v3452, %v3582
        %v3647 = vsel %vm3518, %v3453, %v3583
        %v3648 = vsel %vm3519, %v3454, %v3584
        %v3649 = vsel %vm3520, %v3455, %v3585
        %v3650 = vsel %vm3521, %v3456, %v3586
        %v3651 = vsel %vm3522, %v3457, %v3587
        %v3652 = vsel %vm3523, %v3458, %v3588
        %v3653 = vsel %vm3524, %v3459, %v3589
        %v3654 = vsel %vm3525, %v3460, %v3590
        %v3655 = vsel %vm3526, %v3461, %v3591
        %v3656 = vsel %vm3527, %v3462, %v3592
        %v3657 = vsel %vm3528, %v3463, %v3593
        %v3658 = vsel %vm3529, %v3464, %v3594
        %v3659 = vsel %vm3530, %v3465, %v3595
        %v3660 = vsel %vm3531, %v3466, %v3596
        %v3661 = vsel %vm3532, %v3467, %v3597
        %v3662 = vsel %vm3533, %v3468, %v3598
        %v3663 = vsel %vm3534, %v3469, %v3599
        %v3664 = vsel %vm3535, %v3470, %v3600
        %v3665 = vsel %vm3536, %v3471, %v3601
        %v3666 = vsel %vm3537, %v3472, %v3602
        %v3667 = vsel %vm3538, %v3473, %v3603
        %v3668 = vsel %vm3539, %v3474, %v3604
        %v3669 = vsel %vm3540, %v3475, %v3605
        %v3670 = vsel %vm3541, %v3476, %v3606
        %v3671 = vsel %vm3542, %v3477, %v3607
        %v3672 = vsel %vm3543, %v3478, %v3608
        %v3673 = vsel %vm3544, %v3479, %v3609
        %v3674 = vsel %vm3545, %v3480, %v3610
        %v3675 = vsel %vm3546, %v3481, %v3611
        %v3676 = vsel %vm3547, %v3482, %v3612
        %v3677 = vsel %vm3548, %v3483, %v3613
        %v3678 = vsel %vm3549, %v3484, %v3614
        %v3679 = vsel %vm3550, %v3485, %v3615
        %v3680 = vsel %vm3551, %v3486, %v3616
        %v3681 = vsel %vm3552, %v3487, %v3617
        %v3682 = vsel %vm3553, %v3488, %v3618
        %v3683 = vsel %vm3554, %v3489, %v3619
        %v3684 = vsel %vm3555, %v3490, %v3620
        %v3685 = vsel %vm3556, %v3491, %v3621
        %v3686 = vsel %vm3557, %v3492, %v3622
        %v3687 = vsel %vm3558, %v3493, %v3623
        %v3688 = vadd.f32 %v3624, %v3625
        %v3689 = vadd.f32 %v3688, %v3626
        %v3690 = vadd.f32 %v3689, %v3627
        %v3691 = vadd.f32 %v3690, %v3628
        %v3692 = vadd.f32 %v3691, %v3629
        %v3693 = vadd.f32 %v3692, %v3630
        %v3694 = vadd.f32 %v3693, %v3631
        %v3695 = vadd.f32 %v3694, %v3632
        %v3696 = vadd.f32 %v3695, %v3633
        %v3697 = vadd.f32 %v3696, %v3634
        %v3698 = vadd.f32 %v3697, %v3635
        %v3699 = vadd.f32 %v3698, %v3636
        %v3700 = vadd.f32 %v3699, %v3637
        %v3701 = vadd.f32 %v3700, %v3638
        %v3702 = vadd.f32 %v3701, %v3639
        %v3703 = vadd.f32 %v3702, %v3640
        %v3704 = vadd.f32 %v3703, %v3641
        %v3705 = vadd.f32 %v3704, %v3642
        %v3706 = vadd.f32 %v3705, %v3643
        %v3707 = vadd.f32 %v3706, %v3644
        %v3708 = vadd.f32 %v3707, %v3645
        %v3709 = vadd.f32 %v3708, %v3646
        %v3710 = vadd.f32 %v3709, %v3647
        %v3711 = vadd.f32 %v3710, %v3648
        %v3712 = vadd.f32 %v3711, %v3649
        %v3713 = vadd.f32 %v3712, %v3650
        %v3714 = vadd.f32 %v3713, %v3651
        %v3715 = vadd.f32 %v3714, %v3652
        %v3716 = vadd.f32 %v3715, %v3653
        %v3717 = vadd.f32 %v3716, %v3654
        %v3718 = vadd.f32 %v3717, %v3655
        %v3719 = vadd.f32 %v3718, %v3656
        %v3720 = vadd.f32 %v3719, %v3657
        %v3721 = vadd.f32 %v3720, %v3658
        %v3722 = vadd.f32 %v3721, %v3659
        %v3723 = vadd.f32 %v3722, %v3660
        %v3724 = vadd.f32 %v3723, %v3661
        %v3725 = vadd.f32 %v3724, %v3662
        %v3726 = vadd.f32 %v3725, %v3663
        %v3727 = vadd.f32 %v3726, %v3664
        %v3728 = vadd.f32 %v3727, %v3665
        %v3729 = vadd.f32 %v3728, %v3666
        %v3730 = vadd.f32 %v3729, %v3667
        %v3731 = vadd.f32 %v3730, %v3668
        %v3732 = vadd.f32 %v3731, %v3669
        %v3733 = vadd.f32 %v3732, %v3670
        %v3734 = vadd.f32 %v3733, %v3671
        %v3735 = vadd.f32 %v3734, %v3672
        %v3736 = vadd.f32 %v3735, %v3673
        %v3737 = vadd.f32 %v3736, %v3674
        %v3738 = vadd.f32 %v3737, %v3675
        %v3739 = vadd.f32 %v3738, %v3676
        %v3740 = vadd.f32 %v3739, %v3677
        %v3741 = vadd.f32 %v3740, %v3678
        %v3742 = vadd.f32 %v3741, %v3679
        %v3743 = vadd.f32 %v3742, %v3680
        %v3744 = vadd.f32 %v3743, %v3681
        %v3745 = vadd.f32 %v3744, %v3682
        %v3746 = vadd.f32 %v3745, %v3683
        %v3747 = vadd.f32 %v3746, %v3684
        %v3748 = vadd.f32 %v3747, %v3685
        %v3749 = vadd.f32 %v3748, %v3686
        %v3750 = vadd.f32 %v3749, %v3687
        %3751 = vadd.xlane.f32.xlu0 %v3750
        %v3752 = vpop.xlane.xlu0 %3751
        %v3753 = vrot.slane %v3752, 4
        %v3754 = vadd.f32 %v3752, %v3753
        %v3755 = vrot.slane %v3754, 2
        %v3756 = vadd.f32 %v3754, %v3755
        %v3757 = vrot.slane %v3756, 1
        %v3758 = vadd.f32 %v3756, %v3757
        %s3759 = vtos %v3758
        %v3760 = vmul.f32 %v3624, %v3624
        %v3761 = vmul.f32 %v3625, %v3625
        %v3762 = vmul.f32 %v3626, %v3626
        %v3763 = vmul.f32 %v3627, %v3627
        %v3764 = vmul.f32 %v3628, %v3628
        %v3765 = vmul.f32 %v3629, %v3629
        %v3766 = vmul.f32 %v3630, %v3630
        %v3767 = vmul.f32 %v3631, %v3631
        %v3768 = vmul.f32 %v3632, %v3632
        %v3769 = vmul.f32 %v3633, %v3633
        %v3770 = vmul.f32 %v3634, %v3634
        %v3771 = vmul.f32 %v3635, %v3635
        %v3772 = vmul.f32 %v3636, %v3636
        %v3773 = vmul.f32 %v3637, %v3637
        %v3774 = vmul.f32 %v3638, %v3638
        %v3775 = vmul.f32 %v3639, %v3639
        %v3776 = vmul.f32 %v3640, %v3640
        %v3777 = vmul.f32 %v3641, %v3641
        %v3778 = vmul.f32 %v3642, %v3642
        %v3779 = vmul.f32 %v3643, %v3643
        %v3780 = vmul.f32 %v3644, %v3644
        %v3781 = vmul.f32 %v3645, %v3645
        %v3782 = vmul.f32 %v3646, %v3646
        %v3783 = vmul.f32 %v3647, %v3647
        %v3784 = vmul.f32 %v3648, %v3648
        %v3785 = vmul.f32 %v3649, %v3649
        %v3786 = vmul.f32 %v3650, %v3650
        %v3787 = vmul.f32 %v3651, %v3651
        %v3788 = vmul.f32 %v3652, %v3652
        %v3789 = vmul.f32 %v3653, %v3653
        %v3790 = vmul.f32 %v3654, %v3654
        %v3791 = vmul.f32 %v3655, %v3655
        %v3792 = vmul.f32 %v3656, %v3656
        %v3793 = vmul.f32 %v3657, %v3657
        %v3794 = vmul.f32 %v3658, %v3658
        %v3795 = vmul.f32 %v3659, %v3659
        %v3796 = vmul.f32 %v3660, %v3660
        %v3797 = vmul.f32 %v3661, %v3661
        %v3798 = vmul.f32 %v3662, %v3662
        %v3799 = vmul.f32 %v3663, %v3663
        %v3800 = vmul.f32 %v3664, %v3664
        %v3801 = vmul.f32 %v3665, %v3665
        %v3802 = vmul.f32 %v3666, %v3666
        %v3803 = vmul.f32 %v3667, %v3667
        %v3804 = vmul.f32 %v3668, %v3668
        %v3805 = vmul.f32 %v3669, %v3669
        %v3806 = vmul.f32 %v3670, %v3670
        %v3807 = vmul.f32 %v3671, %v3671
        %v3808 = vmul.f32 %v3672, %v3672
        %v3809 = vmul.f32 %v3673, %v3673
        %v3810 = vmul.f32 %v3674, %v3674
        %v3811 = vmul.f32 %v3675, %v3675
        %v3812 = vmul.f32 %v3676, %v3676
        %v3813 = vmul.f32 %v3677, %v3677
        %v3814 = vmul.f32 %v3678, %v3678
        %v3815 = vmul.f32 %v3679, %v3679
        %v3816 = vmul.f32 %v3680, %v3680
        %v3817 = vmul.f32 %v3681, %v3681
        %v3818 = vmul.f32 %v3682, %v3682
        %v3819 = vmul.f32 %v3683, %v3683
        %v3820 = vmul.f32 %v3684, %v3684
        %v3821 = vmul.f32 %v3685, %v3685
        %v3822 = vmul.f32 %v3686, %v3686
        %v3823 = vmul.f32 %v3687, %v3687
        %v3824 = vadd.f32 %v3760, %v3761
        %v3825 = vadd.f32 %v3824, %v3762
        %v3826 = vadd.f32 %v3825, %v3763
        %v3827 = vadd.f32 %v3826, %v3764
        %v3828 = vadd.f32 %v3827, %v3765
        %v3829 = vadd.f32 %v3828, %v3766
        %v3830 = vadd.f32 %v3829, %v3767
        %v3831 = vadd.f32 %v3830, %v3768
        %v3832 = vadd.f32 %v3831, %v3769
        %v3833 = vadd.f32 %v3832, %v3770
        %v3834 = vadd.f32 %v3833, %v3771
        %v3835 = vadd.f32 %v3834, %v3772
        %v3836 = vadd.f32 %v3835, %v3773
        %v3837 = vadd.f32 %v3836, %v3774
        %v3838 = vadd.f32 %v3837, %v3775
        %v3839 = vadd.f32 %v3838, %v3776
        %v3840 = vadd.f32 %v3839, %v3777
        %v3841 = vadd.f32 %v3840, %v3778
        %v3842 = vadd.f32 %v3841, %v3779
        %v3843 = vadd.f32 %v3842, %v3780
        %v3844 = vadd.f32 %v3843, %v3781
        %v3845 = vadd.f32 %v3844, %v3782
        %v3846 = vadd.f32 %v3845, %v3783
        %v3847 = vadd.f32 %v3846, %v3784
        %v3848 = vadd.f32 %v3847, %v3785
        %v3849 = vadd.f32 %v3848, %v3786
        %v3850 = vadd.f32 %v3849, %v3787
        %v3851 = vadd.f32 %v3850, %v3788
        %v3852 = vadd.f32 %v3851, %v3789
        %v3853 = vadd.f32 %v3852, %v3790
        %v3854 = vadd.f32 %v3853, %v3791
        %v3855 = vadd.f32 %v3854, %v3792
        %v3856 = vadd.f32 %v3855, %v3793
        %v3857 = vadd.f32 %v3856, %v3794
        %v3858 = vadd.f32 %v3857, %v3795
        %v3859 = vadd.f32 %v3858, %v3796
        %v3860 = vadd.f32 %v3859, %v3797
        %v3861 = vadd.f32 %v3860, %v3798
        %v3862 = vadd.f32 %v3861, %v3799
        %v3863 = vadd.f32 %v3862, %v3800
        %v3864 = vadd.f32 %v3863, %v3801
        %v3865 = vadd.f32 %v3864, %v3802
        %v3866 = vadd.f32 %v3865, %v3803
        %v3867 = vadd.f32 %v3866, %v3804
        %v3868 = vadd.f32 %v3867, %v3805
        %v3869 = vadd.f32 %v3868, %v3806
        %v3870 = vadd.f32 %v3869, %v3807
        %v3871 = vadd.f32 %v3870, %v3808
        %v3872 = vadd.f32 %v3871, %v3809
        %v3873 = vadd.f32 %v3872, %v3810
        %v3874 = vadd.f32 %v3873, %v3811
        %v3875 = vadd.f32 %v3874, %v3812
        %v3876 = vadd.f32 %v3875, %v3813
        %v3877 = vadd.f32 %v3876, %v3814
        %v3878 = vadd.f32 %v3877, %v3815
        %v3879 = vadd.f32 %v3878, %v3816
        %v3880 = vadd.f32 %v3879, %v3817
        %v3881 = vadd.f32 %v3880, %v3818
        %v3882 = vadd.f32 %v3881, %v3819
        %v3883 = vadd.f32 %v3882, %v3820
        %v3884 = vadd.f32 %v3883, %v3821
        %v3885 = vadd.f32 %v3884, %v3822
        %v3886 = vadd.f32 %v3885, %v3823
        %3887 = vadd.xlane.f32.xlu0 %v3886
        %v3888 = vpop.xlane.xlu0 %3887
        %v3889 = vrot.slane %v3888, 4
        %v3890 = vadd.f32 %v3888, %v3889
        %v3891 = vrot.slane %v3890, 2
        %v3892 = vadd.f32 %v3890, %v3891
        %v3893 = vrot.slane %v3892, 1
        %v3894 = vadd.f32 %v3892, %v3893
        %s3895 = vtos %v3894
        %s3896 = smul.f32 %s3759, 1.5258789e-05
        %s3897 = smul.f32 %s3895, 1.5258789e-05
        %s3898 = smul.f32 %s3896, %s3896
        %s3899 = ssub.f32 %s3897, %s3898
        %s3900 = smax.f32 %s3899, 0.0
        %s3901 = sadd.f32 %s3900, 1e-08
        %v3902 = vstv %s3901
        %v3903 = vrsqrt.pop %v3902
        %v3904 = vmul.f32 %v3903, %v3902
        %v3905 = vmul.f32 %v3904, %v3903
        %v3906 = vmul.f32 0.5, %v3905
        %v3907 = vsub.f32 1.5, %v3906
        %v3908 = vmul.f32 %v3903, %v3907
        %vm3909 = vweird.f32 %v3902
        %vm3910 = vweird.f32 %v3903
        %vm3911 = vmor %vm3909, %vm3910
        %v3912 = vsel %vm3911, %v3903, %v3908
        %s3913 = vtos %v3912
        %v3914 = vld [vmem:[%s5] sm:$0xff]
        %v3915 = vld [vmem:[%s5 + $0x8] sm:$0xff]
        %v3916 = vld [vmem:[%s5 + $0x10] sm:$0xff]
        %v3917 = vld [vmem:[%s5 + $0x18] sm:$0xff]
        %v3918 = vld [vmem:[%s5 + $0x20] sm:$0xff]
        %v3919 = vld [vmem:[%s5 + $0x28] sm:$0xff]
        %v3920 = vld [vmem:[%s5 + $0x30] sm:$0xff]
        %v3921 = vld [vmem:[%s5 + $0x38] sm:$0xff]
        %v3922 = vld [vmem:[%s5 + $0x40] sm:$0xff]
        %v3923 = vld [vmem:[%s5 + $0x48] sm:$0xff]
        %v3924 = vld [vmem:[%s5 + $0x50] sm:$0xff]
        %v3925 = vld [vmem:[%s5 + $0x58] sm:$0xff]
        %v3926 = vld [vmem:[%s5 + $0x60] sm:$0xff]
        %v3927 = vld [vmem:[%s5 + $0x68] sm:$0xff]
        %v3928 = vld [vmem:[%s5 + $0x70] sm:$0xff]
        %v3929 = vld [vmem:[%s5 + $0x78] sm:$0xff]
        %s3930 = smul.f32 %s3896, %s3913
        %v3931 = vstv %s3930
        %v3932 = vmul.f32 %v3931, %v3914
        %v3933 = vmul.f32 %v3931, %v3915
        %v3934 = vmul.f32 %v3931, %v3916
        %v3935 = vmul.f32 %v3931, %v3917
        %v3936 = vmul.f32 %v3931, %v3918
        %v3937 = vmul.f32 %v3931, %v3919
        %v3938 = vmul.f32 %v3931, %v3920
        %v3939 = vmul.f32 %v3931, %v3921
        %v3940 = vmul.f32 %v3931, %v3922
        %v3941 = vmul.f32 %v3931, %v3923
        %v3942 = vmul.f32 %v3931, %v3924
        %v3943 = vmul.f32 %v3931, %v3925
        %v3944 = vmul.f32 %v3931, %v3926
        %v3945 = vmul.f32 %v3931, %v3927
        %v3946 = vmul.f32 %v3931, %v3928
        %v3947 = vmul.f32 %v3931, %v3929
        %3964 = vrot.lane.b32.xlu0 %v3932, 1
        %v3965 = vpop.permute.xlu0 %3964
        %3966 = vrot.lane.b32.xlu0 %v3933, 1
        %v3967 = vpop.permute.xlu0 %3966
        %3968 = vrot.lane.b32.xlu0 %v3934, 1
        %v3969 = vpop.permute.xlu0 %3968
        %3970 = vrot.lane.b32.xlu0 %v3935, 1
        %v3971 = vpop.permute.xlu0 %3970
        %3972 = vrot.lane.b32.xlu0 %v3936, 1
        %v3973 = vpop.permute.xlu0 %3972
        %3974 = vrot.lane.b32.xlu0 %v3937, 1
        %v3975 = vpop.permute.xlu0 %3974
        %3976 = vrot.lane.b32.xlu0 %v3938, 1
        %v3977 = vpop.permute.xlu0 %3976
        %3978 = vrot.lane.b32.xlu0 %v3939, 1
        %v3979 = vpop.permute.xlu0 %3978
        %3980 = vrot.lane.b32.xlu0 %v3940, 1
        %v3981 = vpop.permute.xlu0 %3980
        %3982 = vrot.lane.b32.xlu0 %v3941, 1
        %v3983 = vpop.permute.xlu0 %3982
        %3984 = vrot.lane.b32.xlu0 %v3942, 1
        %v3985 = vpop.permute.xlu0 %3984
        %3986 = vrot.lane.b32.xlu0 %v3943, 1
        %v3987 = vpop.permute.xlu0 %3986
        %3988 = vrot.lane.b32.xlu0 %v3944, 1
        %v3989 = vpop.permute.xlu0 %3988
        %3990 = vrot.lane.b32.xlu0 %v3945, 1
        %v3991 = vpop.permute.xlu0 %3990
        %3992 = vrot.lane.b32.xlu0 %v3946, 1
        %v3993 = vpop.permute.xlu0 %3992
        %3994 = vrot.lane.b32.xlu0 %v3947, 1
        %v3995 = vpop.permute.xlu0 %3994
        %v4012 = vsub.f32 %v3914, %v3965
        %v4013 = vsub.f32 %v3915, %v3967
        %v4014 = vsub.f32 %v3916, %v3969
        %v4015 = vsub.f32 %v3917, %v3971
        %v4016 = vsub.f32 %v3918, %v3973
        %v4017 = vsub.f32 %v3919, %v3975
        %v4018 = vsub.f32 %v3920, %v3977
        %v4019 = vsub.f32 %v3921, %v3979
        %v4020 = vsub.f32 %v3922, %v3981
        %v4021 = vsub.f32 %v3923, %v3983
        %v4022 = vsub.f32 %v3924, %v3985
        %v4023 = vsub.f32 %v3925, %v3987
        %v4024 = vsub.f32 %v3926, %v3989
        %v4025 = vsub.f32 %v3927, %v3991
        %v4026 = vsub.f32 %v3928, %v3993
        %v4027 = vsub.f32 %v3929, %v3995
        %v4028 = vld [vmem:[#allocation6] sm:$0xff]
        %v4029 = vld [vmem:[#allocation6 + $0x8] sm:$0xff]
        %v4030 = vld [vmem:[#allocation6 + $0x10] sm:$0xff]
        %v4031 = vld [vmem:[#allocation6 + $0x18] sm:$0xff]
        %v4032 = vld [vmem:[#allocation6 + $0x20] sm:$0xff]
        %v4033 = vld [vmem:[#allocation6 + $0x28] sm:$0xff]
        %v4034 = vld [vmem:[#allocation6 + $0x30] sm:$0xff]
        %v4035 = vld [vmem:[#allocation6 + $0x38] sm:$0xff]
        %v4036 = vld [vmem:[#allocation6 + $0x40] sm:$0xff]
        %v4037 = vld [vmem:[#allocation6 + $0x48] sm:$0xff]
        %v4038 = vld [vmem:[#allocation6 + $0x50] sm:$0xff]
        %v4039 = vld [vmem:[#allocation6 + $0x58] sm:$0xff]
        %v4040 = vld [vmem:[#allocation6 + $0x60] sm:$0xff]
        %v4041 = vld [vmem:[#allocation6 + $0x68] sm:$0xff]
        %v4042 = vld [vmem:[#allocation6 + $0x70] sm:$0xff]
        %v4043 = vld [vmem:[#allocation6 + $0x78] sm:$0xff]
        %v4044 = vld [vmem:[#allocation6 + $0x80] sm:$0xff]
        %v4045 = vld [vmem:[#allocation6 + $0x88] sm:$0xff]
        %v4046 = vld [vmem:[#allocation6 + $0x90] sm:$0xff]
        %v4047 = vld [vmem:[#allocation6 + $0x98] sm:$0xff]
        %v4048 = vld [vmem:[#allocation6 + $0xa0] sm:$0xff]
        %v4049 = vld [vmem:[#allocation6 + $0xa8] sm:$0xff]
        %v4050 = vld [vmem:[#allocation6 + $0xb0] sm:$0xff]
        %v4051 = vld [vmem:[#allocation6 + $0xb8] sm:$0xff]
        %v4052 = vld [vmem:[#allocation6 + $0xc0] sm:$0xff]
        %v4053 = vld [vmem:[#allocation6 + $0xc8] sm:$0xff]
        %v4054 = vld [vmem:[#allocation6 + $0xd0] sm:$0xff]
        %v4055 = vld [vmem:[#allocation6 + $0xd8] sm:$0xff]
        %v4056 = vld [vmem:[#allocation6 + $0xe0] sm:$0xff]
        %v4057 = vld [vmem:[#allocation6 + $0xe8] sm:$0xff]
        %v4058 = vld [vmem:[#allocation6 + $0xf0] sm:$0xff]
        %v4059 = vld [vmem:[#allocation6 + $0xf8] sm:$0xff]
        %4060 = vmatpush.msra.mxu0 %v3654
        %4061 = vmatpush.msra.mxu0 %v3652
        %4062 = vmatpush.msra.mxu0 %v3650
        %4063 = vmatpush.msra.mxu0 %v3648
        %4064 = vmatpush.msra.mxu0 %v3646
        %4065 = vmatpush.msra.mxu0 %v3644
        %4066 = vmatpush.msra.mxu0 %v3642
        %4067 = vmatpush.msra.mxu0 %v3640
        %4068 = vmatpush.msra.mxu0 %v3638
        %4069 = vmatpush.msra.mxu0 %v3636
        %4070 = vmatpush.msra.mxu0 %v3634
        %4071 = vmatpush.msra.mxu0 %v3632
        %4072 = vmatpush.msra.mxu0 %v3630
        %4073 = vmatpush.msra.mxu0 %v3628
        %4074 = vmatpush.msra.mxu0 %v3626
        %4075 = vmatpush.msra.mxu0 %v3624
        %4076 = vmatmul.f32.gmra.mxu0 %v4028
        %v4077 = vpop.f32.mrf.mxu0
        %v4078 = vadd.f32 0.0, %v4077
        %4079 = vmatmul.f32.gmra.mxu0 %v4030
        %v4080 = vpop.f32.mrf.mxu0
        %v4081 = vadd.f32 0.0, %v4080
        %4082 = vmatmul.f32.gmra.mxu0 %v4032
        %v4083 = vpop.f32.mrf.mxu0
        %v4084 = vadd.f32 0.0, %v4083
        %4085 = vmatmul.f32.gmra.mxu0 %v4034
        %v4086 = vpop.f32.mrf.mxu0
        %v4087 = vadd.f32 0.0, %v4086
        %4088 = vmatmul.f32.gmra.mxu0 %v4036
        %v4089 = vpop.f32.mrf.mxu0
        %v4090 = vadd.f32 0.0, %v4089
        %4091 = vmatmul.f32.gmra.mxu0 %v4038
        %v4092 = vpop.f32.mrf.mxu0
        %v4093 = vadd.f32 0.0, %v4092
        %4094 = vmatmul.f32.gmra.mxu0 %v4040
        %v4095 = vpop.f32.mrf.mxu0
        %v4096 = vadd.f32 0.0, %v4095
        %4097 = vmatmul.f32.gmra.mxu0 %v4042
        %v4098 = vpop.f32.mrf.mxu0
        %v4099 = vadd.f32 0.0, %v4098
        %4100 = vmatmul.f32.gmra.mxu0 %v4044
        %v4101 = vpop.f32.mrf.mxu0
        %v4102 = vadd.f32 0.0, %v4101
        %4103 = vmatmul.f32.gmra.mxu0 %v4046
        %v4104 = vpop.f32.mrf.mxu0
        %v4105 = vadd.f32 0.0, %v4104
        %4106 = vmatmul.f32.gmra.mxu0 %v4048
        %v4107 = vpop.f32.mrf.mxu0
        %v4108 = vadd.f32 0.0, %v4107
        %4109 = vmatmul.f32.gmra.mxu0 %v4050
        %v4110 = vpop.f32.mrf.mxu0
        %v4111 = vadd.f32 0.0, %v4110
        %4112 = vmatmul.f32.gmra.mxu0 %v4052
        %v4113 = vpop.f32.mrf.mxu0
        %v4114 = vadd.f32 0.0, %v4113
        %4115 = vmatmul.f32.gmra.mxu0 %v4054
        %v4116 = vpop.f32.mrf.mxu0
        %v4117 = vadd.f32 0.0, %v4116
        %4118 = vmatmul.f32.gmra.mxu0 %v4056
        %v4119 = vpop.f32.mrf.mxu0
        %v4120 = vadd.f32 0.0, %v4119
        %4121 = vmatmul.f32.gmra.mxu0 %v4058
        %v4122 = vpop.f32.mrf.mxu0
        %v4123 = vadd.f32 0.0, %v4122
        %4124 = vdwg.mxu0
        %4125 = vmatpush.msra.mxu0 %v3686
        %4126 = vmatpush.msra.mxu0 %v3684
        %4127 = vmatpush.msra.mxu0 %v3682
        %4128 = vmatpush.msra.mxu0 %v3680
        %4129 = vmatpush.msra.mxu0 %v3678
        %4130 = vmatpush.msra.mxu0 %v3676
        %4131 = vmatpush.msra.mxu0 %v3674
        %4132 = vmatpush.msra.mxu0 %v3672
        %4133 = vmatpush.msra.mxu0 %v3670
        %4134 = vmatpush.msra.mxu0 %v3668
        %4135 = vmatpush.msra.mxu0 %v3666
        %4136 = vmatpush.msra.mxu0 %v3664
        %4137 = vmatpush.msra.mxu0 %v3662
        %4138 = vmatpush.msra.mxu0 %v3660
        %4139 = vmatpush.msra.mxu0 %v3658
        %4140 = vmatpush.msra.mxu0 %v3656
        %4141 = vmatmul.f32.gmra.mxu0 %v4029
        %v4142 = vpop.f32.mrf.mxu0
        %v4143 = vadd.f32 %v4078, %v4142
        %4144 = vmatmul.f32.gmra.mxu0 %v4031
        %v4145 = vpop.f32.mrf.mxu0
        %v4146 = vadd.f32 %v4081, %v4145
        %4147 = vmatmul.f32.gmra.mxu0 %v4033
        %v4148 = vpop.f32.mrf.mxu0
        %v4149 = vadd.f32 %v4084, %v4148
        %4150 = vmatmul.f32.gmra.mxu0 %v4035
        %v4151 = vpop.f32.mrf.mxu0
        %v4152 = vadd.f32 %v4087, %v4151
        %4153 = vmatmul.f32.gmra.mxu0 %v4037
        %v4154 = vpop.f32.mrf.mxu0
        %v4155 = vadd.f32 %v4090, %v4154
        %4156 = vmatmul.f32.gmra.mxu0 %v4039
        %v4157 = vpop.f32.mrf.mxu0
        %v4158 = vadd.f32 %v4093, %v4157
        %4159 = vmatmul.f32.gmra.mxu0 %v4041
        %v4160 = vpop.f32.mrf.mxu0
        %v4161 = vadd.f32 %v4096, %v4160
        %4162 = vmatmul.f32.gmra.mxu0 %v4043
        %v4163 = vpop.f32.mrf.mxu0
        %v4164 = vadd.f32 %v4099, %v4163
        %4165 = vmatmul.f32.gmra.mxu0 %v4045
        %v4166 = vpop.f32.mrf.mxu0
        %v4167 = vadd.f32 %v4102, %v4166
        %4168 = vmatmul.f32.gmra.mxu0 %v4047
        %v4169 = vpop.f32.mrf.mxu0
        %v4170 = vadd.f32 %v4105, %v4169
        %4171 = vmatmul.f32.gmra.mxu0 %v4049
        %v4172 = vpop.f32.mrf.mxu0
        %v4173 = vadd.f32 %v4108, %v4172
        %4174 = vmatmul.f32.gmra.mxu0 %v4051
        %v4175 = vpop.f32.mrf.mxu0
        %v4176 = vadd.f32 %v4111, %v4175
        %4177 = vmatmul.f32.gmra.mxu0 %v4053
        %v4178 = vpop.f32.mrf.mxu0
        %v4179 = vadd.f32 %v4114, %v4178
        %4180 = vmatmul.f32.gmra.mxu0 %v4055
        %v4181 = vpop.f32.mrf.mxu0
        %v4182 = vadd.f32 %v4117, %v4181
        %4183 = vmatmul.f32.gmra.mxu0 %v4057
        %v4184 = vpop.f32.mrf.mxu0
        %v4185 = vadd.f32 %v4120, %v4184
        %4186 = vmatmul.f32.gmra.mxu0 %v4059
        %v4187 = vpop.f32.mrf.mxu0
        %v4188 = vadd.f32 %v4123, %v4187
        %4189 = vdwg.mxu0
        %4190 = vmatpush.msra.mxu0 %v3655
        %4191 = vmatpush.msra.mxu0 %v3653
        %4192 = vmatpush.msra.mxu0 %v3651
        %4193 = vmatpush.msra.mxu0 %v3649
        %4194 = vmatpush.msra.mxu0 %v3647
        %4195 = vmatpush.msra.mxu0 %v3645
        %4196 = vmatpush.msra.mxu0 %v3643
        %4197 = vmatpush.msra.mxu0 %v3641
        %4198 = vmatpush.msra.mxu0 %v3639
        %4199 = vmatpush.msra.mxu0 %v3637
        %4200 = vmatpush.msra.mxu0 %v3635
        %4201 = vmatpush.msra.mxu0 %v3633
        %4202 = vmatpush.msra.mxu0 %v3631
        %4203 = vmatpush.msra.mxu0 %v3629
        %4204 = vmatpush.msra.mxu0 %v3627
        %4205 = vmatpush.msra.mxu0 %v3625
        %4206 = vmatmul.f32.gmra.mxu0 %v4028
        %v4207 = vpop.f32.mrf.mxu0
        %v4208 = vadd.f32 0.0, %v4207
        %4209 = vmatmul.f32.gmra.mxu0 %v4030
        %v4210 = vpop.f32.mrf.mxu0
        %v4211 = vadd.f32 0.0, %v4210
        %4212 = vmatmul.f32.gmra.mxu0 %v4032
        %v4213 = vpop.f32.mrf.mxu0
        %v4214 = vadd.f32 0.0, %v4213
        %4215 = vmatmul.f32.gmra.mxu0 %v4034
        %v4216 = vpop.f32.mrf.mxu0
        %v4217 = vadd.f32 0.0, %v4216
        %4218 = vmatmul.f32.gmra.mxu0 %v4036
        %v4219 = vpop.f32.mrf.mxu0
        %v4220 = vadd.f32 0.0, %v4219
        %4221 = vmatmul.f32.gmra.mxu0 %v4038
        %v4222 = vpop.f32.mrf.mxu0
        %v4223 = vadd.f32 0.0, %v4222
        %4224 = vmatmul.f32.gmra.mxu0 %v4040
        %v4225 = vpop.f32.mrf.mxu0
        %v4226 = vadd.f32 0.0, %v4225
        %4227 = vmatmul.f32.gmra.mxu0 %v4042
        %v4228 = vpop.f32.mrf.mxu0
        %v4229 = vadd.f32 0.0, %v4228
        %4230 = vmatmul.f32.gmra.mxu0 %v4044
        %v4231 = vpop.f32.mrf.mxu0
        %v4232 = vadd.f32 0.0, %v4231
        %4233 = vmatmul.f32.gmra.mxu0 %v4046
        %v4234 = vpop.f32.mrf.mxu0
        %v4235 = vadd.f32 0.0, %v4234
        %4236 = vmatmul.f32.gmra.mxu0 %v4048
        %v4237 = vpop.f32.mrf.mxu0
        %v4238 = vadd.f32 0.0, %v4237
        %4239 = vmatmul.f32.gmra.mxu0 %v4050
        %v4240 = vpop.f32.mrf.mxu0
        %v4241 = vadd.f32 0.0, %v4240
        %4242 = vmatmul.f32.gmra.mxu0 %v4052
        %v4243 = vpop.f32.mrf.mxu0
        %v4244 = vadd.f32 0.0, %v4243
        %4245 = vmatmul.f32.gmra.mxu0 %v4054
        %v4246 = vpop.f32.mrf.mxu0
        %v4247 = vadd.f32 0.0, %v4246
        %4248 = vmatmul.f32.gmra.mxu0 %v4056
        %v4249 = vpop.f32.mrf.mxu0
        %v4250 = vadd.f32 0.0, %v4249
        %4251 = vmatmul.f32.gmra.mxu0 %v4058
        %v4252 = vpop.f32.mrf.mxu0
        %v4253 = vadd.f32 0.0, %v4252
        %4254 = vdwg.mxu0
        %4255 = vmatpush.msra.mxu0 %v3687
        %4256 = vmatpush.msra.mxu0 %v3685
        %4257 = vmatpush.msra.mxu0 %v3683
        %4258 = vmatpush.msra.mxu0 %v3681
        %4259 = vmatpush.msra.mxu0 %v3679
        %4260 = vmatpush.msra.mxu0 %v3677
        %4261 = vmatpush.msra.mxu0 %v3675
        %4262 = vmatpush.msra.mxu0 %v3673
        %4263 = vmatpush.msra.mxu0 %v3671
        %4264 = vmatpush.msra.mxu0 %v3669
        %4265 = vmatpush.msra.mxu0 %v3667
        %4266 = vmatpush.msra.mxu0 %v3665
        %4267 = vmatpush.msra.mxu0 %v3663
        %4268 = vmatpush.msra.mxu0 %v3661
        %4269 = vmatpush.msra.mxu0 %v3659
        %4270 = vmatpush.msra.mxu0 %v3657
        %4271 = vmatmul.f32.gmra.mxu0 %v4029
        %v4272 = vpop.f32.mrf.mxu0
        %v4273 = vadd.f32 %v4208, %v4272
        %4274 = vmatmul.f32.gmra.mxu0 %v4031
        %v4275 = vpop.f32.mrf.mxu0
        %v4276 = vadd.f32 %v4211, %v4275
        %4277 = vmatmul.f32.gmra.mxu0 %v4033
        %v4278 = vpop.f32.mrf.mxu0
        %v4279 = vadd.f32 %v4214, %v4278
        %4280 = vmatmul.f32.gmra.mxu0 %v4035
        %v4281 = vpop.f32.mrf.mxu0
        %v4282 = vadd.f32 %v4217, %v4281
        %4283 = vmatmul.f32.gmra.mxu0 %v4037
        %v4284 = vpop.f32.mrf.mxu0
        %v4285 = vadd.f32 %v4220, %v4284
        %4286 = vmatmul.f32.gmra.mxu0 %v4039
        %v4287 = vpop.f32.mrf.mxu0
        %v4288 = vadd.f32 %v4223, %v4287
        %4289 = vmatmul.f32.gmra.mxu0 %v4041
        %v4290 = vpop.f32.mrf.mxu0
        %v4291 = vadd.f32 %v4226, %v4290
        %4292 = vmatmul.f32.gmra.mxu0 %v4043
        %v4293 = vpop.f32.mrf.mxu0
        %v4294 = vadd.f32 %v4229, %v4293
        %4295 = vmatmul.f32.gmra.mxu0 %v4045
        %v4296 = vpop.f32.mrf.mxu0
        %v4297 = vadd.f32 %v4232, %v4296
        %4298 = vmatmul.f32.gmra.mxu0 %v4047
        %v4299 = vpop.f32.mrf.mxu0
        %v4300 = vadd.f32 %v4235, %v4299
        %4301 = vmatmul.f32.gmra.mxu0 %v4049
        %v4302 = vpop.f32.mrf.mxu0
        %v4303 = vadd.f32 %v4238, %v4302
        %4304 = vmatmul.f32.gmra.mxu0 %v4051
        %v4305 = vpop.f32.mrf.mxu0
        %v4306 = vadd.f32 %v4241, %v4305
        %4307 = vmatmul.f32.gmra.mxu0 %v4053
        %v4308 = vpop.f32.mrf.mxu0
        %v4309 = vadd.f32 %v4244, %v4308
        %4310 = vmatmul.f32.gmra.mxu0 %v4055
        %v4311 = vpop.f32.mrf.mxu0
        %v4312 = vadd.f32 %v4247, %v4311
        %4313 = vmatmul.f32.gmra.mxu0 %v4057
        %v4314 = vpop.f32.mrf.mxu0
        %v4315 = vadd.f32 %v4250, %v4314
        %4316 = vmatmul.f32.gmra.mxu0 %v4059
        %v4317 = vpop.f32.mrf.mxu0
        %v4318 = vadd.f32 %v4253, %v4317
        %4319 = vdwg.mxu0
        %v4320 = vstv %s3913
        %v4321 = vmul.f32 %v4143, %v4320
        %v4322 = vmul.f32 %v4273, %v4320
        %v4323 = vmul.f32 %v4146, %v4320
        %v4324 = vmul.f32 %v4276, %v4320
        %v4325 = vmul.f32 %v4149, %v4320
        %v4326 = vmul.f32 %v4279, %v4320
        %v4327 = vmul.f32 %v4152, %v4320
        %v4328 = vmul.f32 %v4282, %v4320
        %v4329 = vmul.f32 %v4155, %v4320
        %v4330 = vmul.f32 %v4285, %v4320
        %v4331 = vmul.f32 %v4158, %v4320
        %v4332 = vmul.f32 %v4288, %v4320
        %v4333 = vmul.f32 %v4161, %v4320
        %v4334 = vmul.f32 %v4291, %v4320
        %v4335 = vmul.f32 %v4164, %v4320
        %v4336 = vmul.f32 %v4294, %v4320
        %v4337 = vmul.f32 %v4167, %v4320
        %v4338 = vmul.f32 %v4297, %v4320
        %v4339 = vmul.f32 %v4170, %v4320
        %v4340 = vmul.f32 %v4300, %v4320
        %v4341 = vmul.f32 %v4173, %v4320
        %v4342 = vmul.f32 %v4303, %v4320
        %v4343 = vmul.f32 %v4176, %v4320
        %v4344 = vmul.f32 %v4306, %v4320
        %v4345 = vmul.f32 %v4179, %v4320
        %v4346 = vmul.f32 %v4309, %v4320
        %v4347 = vmul.f32 %v4182, %v4320
        %v4348 = vmul.f32 %v4312, %v4320
        %v4349 = vmul.f32 %v4185, %v4320
        %v4350 = vmul.f32 %v4315, %v4320
        %v4351 = vmul.f32 %v4188, %v4320
        %v4352 = vmul.f32 %v4318, %v4320
        %4354 = vset.pattern.permute.xlu0 1
        %4355 = vperm.xlu0 %4354, %v4012
        %v4356 = vpop.permute.xlu0 %4355
        %4359 = vset.pattern.permute.xlu0 1
        %4360 = vperm.xlu0 %4359, %v4013
        %v4361 = vpop.permute.xlu0 %4360
        %4364 = vset.pattern.permute.xlu0 1
        %4365 = vperm.xlu0 %4364, %v4014
        %v4366 = vpop.permute.xlu0 %4365
        %4369 = vset.pattern.permute.xlu0 1
        %4370 = vperm.xlu0 %4369, %v4015
        %v4371 = vpop.permute.xlu0 %4370
        %4374 = vset.pattern.permute.xlu0 1
        %4375 = vperm.xlu0 %4374, %v4016
        %v4376 = vpop.permute.xlu0 %4375
        %4379 = vset.pattern.permute.xlu0 1
        %4380 = vperm.xlu0 %4379, %v4017
        %v4381 = vpop.permute.xlu0 %4380
        %4384 = vset.pattern.permute.xlu0 1
        %4385 = vperm.xlu0 %4384, %v4018
        %v4386 = vpop.permute.xlu0 %4385
        %4389 = vset.pattern.permute.xlu0 1
        %4390 = vperm.xlu0 %4389, %v4019
        %v4391 = vpop.permute.xlu0 %4390
        %4394 = vset.pattern.permute.xlu0 1
        %4395 = vperm.xlu0 %4394, %v4020
        %v4396 = vpop.permute.xlu0 %4395
        %4399 = vset.pattern.permute.xlu0 1
        %4400 = vperm.xlu0 %4399, %v4021
        %v4401 = vpop.permute.xlu0 %4400
        %4404 = vset.pattern.permute.xlu0 1
        %4405 = vperm.xlu0 %4404, %v4022
        %v4406 = vpop.permute.xlu0 %4405
        %4409 = vset.pattern.permute.xlu0 1
        %4410 = vperm.xlu0 %4409, %v4023
        %v4411 = vpop.permute.xlu0 %4410
        %4414 = vset.pattern.permute.xlu0 1
        %4415 = vperm.xlu0 %4414, %v4024
        %v4416 = vpop.permute.xlu0 %4415
        %4419 = vset.pattern.permute.xlu0 1
        %4420 = vperm.xlu0 %4419, %v4025
        %v4421 = vpop.permute.xlu0 %4420
        %4424 = vset.pattern.permute.xlu0 1
        %4425 = vperm.xlu0 %4424, %v4026
        %v4426 = vpop.permute.xlu0 %4425
        %4429 = vset.pattern.permute.xlu0 1
        %4430 = vperm.xlu0 %4429, %v4027
        %v4431 = vpop.permute.xlu0 %4430
        %v4433 = vadd.f32 %v4321, %v4356
        %v4434 = vadd.f32 %v4322, %v4356
        %v4435 = vadd.f32 %v4323, %v4361
        %v4436 = vadd.f32 %v4324, %v4361
        %v4437 = vadd.f32 %v4325, %v4366
        %v4438 = vadd.f32 %v4326, %v4366
        %v4439 = vadd.f32 %v4327, %v4371
        %v4440 = vadd.f32 %v4328, %v4371
        %v4441 = vadd.f32 %v4329, %v4376
        %v4442 = vadd.f32 %v4330, %v4376
        %v4443 = vadd.f32 %v4331, %v4381
        %v4444 = vadd.f32 %v4332, %v4381
        %v4445 = vadd.f32 %v4333, %v4386
        %v4446 = vadd.f32 %v4334, %v4386
        %v4447 = vadd.f32 %v4335, %v4391
        %v4448 = vadd.f32 %v4336, %v4391
        %v4449 = vadd.f32 %v4337, %v4396
        %v4450 = vadd.f32 %v4338, %v4396
        %v4451 = vadd.f32 %v4339, %v4401
        %v4452 = vadd.f32 %v4340, %v4401
        %v4453 = vadd.f32 %v4341, %v4406
        %v4454 = vadd.f32 %v4342, %v4406
        %v4455 = vadd.f32 %v4343, %v4411
        %v4456 = vadd.f32 %v4344, %v4411
        %v4457 = vadd.f32 %v4345, %v4416
        %v4458 = vadd.f32 %v4346, %v4416
        %v4459 = vadd.f32 %v4347, %v4421
        %v4460 = vadd.f32 %v4348, %v4421
        %v4461 = vadd.f32 %v4349, %v4426
        %v4462 = vadd.f32 %v4350, %v4426
        %v4463 = vadd.f32 %v4351, %v4431
        %v4464 = vadd.f32 %v4352, %v4431
        %v4465 = vadd.f32 %v4433, %v312
        %v4466 = vadd.f32 %v4434, %v313
        %v4467 = vadd.f32 %v4435, %v314
        %v4468 = vadd.f32 %v4436, %v315
        %v4469 = vadd.f32 %v4437, %v316
        %v4470 = vadd.f32 %v4438, %v317
        %v4471 = vadd.f32 %v4439, %v318
        %v4472 = vadd.f32 %v4440, %v319
        %v4473 = vadd.f32 %v4441, %v320
        %v4474 = vadd.f32 %v4442, %v321
        %v4475 = vadd.f32 %v4443, %v322
        %v4476 = vadd.f32 %v4444, %v323
        %v4477 = vadd.f32 %v4445, %v324
        %v4478 = vadd.f32 %v4446, %v325
        %v4479 = vadd.f32 %v4447, %v326
        %v4480 = vadd.f32 %v4448, %v327
        %v4481 = vadd.f32 %v4449, %v328
        %v4482 = vadd.f32 %v4450, %v329
        %v4483 = vadd.f32 %v4451, %v330
        %v4484 = vadd.f32 %v4452, %v331
        %v4485 = vadd.f32 %v4453, %v332
        %v4486 = vadd.f32 %v4454, %v333
        %v4487 = vadd.f32 %v4455, %v334
        %v4488 = vadd.f32 %v4456, %v335
        %v4489 = vadd.f32 %v4457, %v336
        %v4490 = vadd.f32 %v4458, %v337
        %v4491 = vadd.f32 %v4459, %v338
        %v4492 = vadd.f32 %v4460, %v339
        %v4493 = vadd.f32 %v4461, %v340
        %v4494 = vadd.f32 %v4462, %v341
        %v4495 = vadd.f32 %v4463, %v342
        %v4496 = vadd.f32 %v4464, %v343
        %4497 = vst [vmem:[%s306] sm:$0xff] %v4465
        %4498 = vst [vmem:[%s306 + $0x8] sm:$0xff] %v4466
        %4499 = vst [vmem:[%s306 + $0x10] sm:$0xff] %v4467
        %4500 = vst [vmem:[%s306 + $0x18] sm:$0xff] %v4468
        %4501 = vst [vmem:[%s306 + $0x20] sm:$0xff] %v4469
        %4502 = vst [vmem:[%s306 + $0x28] sm:$0xff] %v4470
        %4503 = vst [vmem:[%s306 + $0x30] sm:$0xff] %v4471
        %4504 = vst [vmem:[%s306 + $0x38] sm:$0xff] %v4472
        %4505 = vst [vmem:[%s306 + $0x40] sm:$0xff] %v4473
        %4506 = vst [vmem:[%s306 + $0x48] sm:$0xff] %v4474
        %4507 = vst [vmem:[%s306 + $0x50] sm:$0xff] %v4475
        %4508 = vst [vmem:[%s306 + $0x58] sm:$0xff] %v4476
        %4509 = vst [vmem:[%s306 + $0x60] sm:$0xff] %v4477
        %4510 = vst [vmem:[%s306 + $0x68] sm:$0xff] %v4478
        %4511 = vst [vmem:[%s306 + $0x70] sm:$0xff] %v4479
        %4512 = vst [vmem:[%s306 + $0x78] sm:$0xff] %v4480
        %4513 = vst [vmem:[%s306 + $0x80] sm:$0xff] %v4481
        %4514 = vst [vmem:[%s306 + $0x88] sm:$0xff] %v4482
        %4515 = vst [vmem:[%s306 + $0x90] sm:$0xff] %v4483
        %4516 = vst [vmem:[%s306 + $0x98] sm:$0xff] %v4484
        %4517 = vst [vmem:[%s306 + $0xa0] sm:$0xff] %v4485
        %4518 = vst [vmem:[%s306 + $0xa8] sm:$0xff] %v4486
        %4519 = vst [vmem:[%s306 + $0xb0] sm:$0xff] %v4487
        %4520 = vst [vmem:[%s306 + $0xb8] sm:$0xff] %v4488
        %4521 = vst [vmem:[%s306 + $0xc0] sm:$0xff] %v4489
        %4522 = vst [vmem:[%s306 + $0xc8] sm:$0xff] %v4490
        %4523 = vst [vmem:[%s306 + $0xd0] sm:$0xff] %v4491
        %4524 = vst [vmem:[%s306 + $0xd8] sm:$0xff] %v4492
        %4525 = vst [vmem:[%s306 + $0xe0] sm:$0xff] %v4493
        %4526 = vst [vmem:[%s306 + $0xe8] sm:$0xff] %v4494
        %4527 = vst [vmem:[%s306 + $0xf0] sm:$0xff] %v4495
        %4528 = vst [vmem:[%s306 + $0xf8] sm:$0xff] %v4496
        %s4529 = sand.u32 %s184, 1
        %s4530 = scalar_lea.sflag [#allocation5], %s4529
        %s4531 = sand.u32 %s184, 1
        %s4532 = smul.addr %s4531, 256
        %s4533 = scalar_lea.vmem [#allocation8], %s4532
        // Predicated region
        $region57: #{tpu_custom_call.1} parent=47 // pred_check
          %p4534 = pneg %p194
        $region58: #{tpu_custom_call.1} parent=47 // pred_check_branch
          %4536 = sbr.rel (%p4534) target = $region60
        $region59: #{tpu_custom_call.1} parent=47 // pred_region
          %4538 = vsyncadd %s4530, 0
          %s4539 = smul.addr %s24, 32
          %s4540 = smul.addr %s4539, 8
          %s4541 = scalar_lea.hbm %s7, %s4540
          %s4542 = sshll.u32 %s4533, 4
          %s4543 = int_to_ptr.vmem [resolvable:$true] %s4542
          %s4544 = sshll.u32 %s4541, 4
          %s4545 = int_to_ptr.hbm [resolvable:$true] %s4544
          %4550 = dma.vmem_to_hbm [thread:$0]  %s4543, 4096, %s4545, %s4530, 256, 256, 16
        $region60: #{tpu_custom_call.1} parent=47 // pred_fallthru
          _
      $region48: #{tpu_custom_call.1} parent=5 // pred_fallthru
        _
      %p4551 = scmp.le.s32.totalorder 2, %s19
      // Predicated region
      $region61: #{tpu_custom_call.1} parent=5 // pred_check
        %p4552 = pneg %p4551
      $region62: #{tpu_custom_call.1} parent=5 // pred_check_branch
        %4554 = sbr.rel (%p4552) target = $region64
      $region63: #{tpu_custom_call.1} parent=5 // pred_region
        %s4555 = ssub.s32 %s19, 2
        // Predicated region
        $region65: #{tpu_custom_call.1} parent=63 // pred_check
          %p4556 = pneg %p200
        $region66: #{tpu_custom_call.1} parent=63 // pred_check_branch
          %4558 = sbr.rel (%p4556) target = $region68
        $region67: #{tpu_custom_call.1} parent=63 // pred_region
          %s4559 = sand.u32 %s185, 1
          %s4560 = scalar_lea.sflag [#allocation5], %s4559
          %s4561 = sand.u32 %s185, 1
          %s4562 = smul.addr %s4561, 256
          %s4563 = scalar_lea.vmem [#allocation8], %s4562
          %4565 = dma.done %s4560, 4096
        $region68: #{tpu_custom_call.1} parent=63 // pred_fallthru
          _
      $region64: #{tpu_custom_call.1} parent=5 // pred_fallthru
        _
    $region6: #{tpu_custom_call.1} parent=1 // loop_footer
      %s23 = sadd.s32 1, %s19
    $region7: #{tpu_custom_call.1} parent=1 // loop_footer_branch
      %18 = sbr.rel target = $region3
    $region8: #{tpu_custom_call.1} parent=1 // loop_exit
      _
    %4566 = vsyncpa [#allocation4], 1
    %s4567 = scalar_lea.sflag [#allocation4], 1
    %4568 = vsyncpa %s4567, 1
    %4569 = vsyncpa [#allocation7], 1
    %4570 = vsyncpa [#allocation5], 1
    %s4571 = scalar_lea.sflag [#allocation5], 1
    %4572 = vsyncpa %s4571, 1

</llo_original>
